<compile_context>
chip_gen: v5e
topology: v5e:2x2
jax: 0.10.0
libtpu: 0.0.40
codegen_flags: <defaults>
</compile_context>

<pallas_src>
import functools

import jax
import jax.numpy as jnp
from jax import lax
from jax.experimental import pallas as pl
from jax.experimental.pallas import tpu as pltpu

# -------- synthetic "configer" / DTOffsetConfig / env values (in-script) --------
DT_MAX_DISTANCE = 5.0          # DTOffsetConfig.max_distance
DT_MIN_DISTANCE = 0.0          # DTOffsetConfig.min_distance
NUM_DIR_CLASSES = 8            # DTOffsetConfig.num_classes (default 8)
MASK_THRESHOLD = 0.5           # os.environ 'mask_threshold'
MASK_WEIGHT = 1.0              # os.environ 'mask_weight'
DIRECTION_WEIGHT = 1.0         # os.environ 'direction_weight'

TARGET_PIXELS_PER_STEP = 1 << 16   # ~64K GT pixels per grid step (review: 16K-64K)


def _cdiv(a, b):
    return -(-a // b)


# =====================  fused Pallas kernel  =====================

def _segfix_kernel(xm_ref, xd_ref, my_ref, mx_ref, seg_ref, dist_ref, ang_ref,
                   mls_ref, mcnt_ref, dls_ref, dcnt_ref,
                   *, gh, tr, jb, mask_rows):
    """One grid step = one band of `tr` ground-truth rows for one (split, batch) pair.

    Fuses the align_corners bilinear upsample (MXU matmuls against My / Mx),
    gt_mask / gt_direction construction, and per-class CE partial sums."""
    j = pl.program_id(2)

    # Output blocks are resident across the band axis (index map constant in j):
    # zero them once, accumulate directly into them (no scratch, no epilogue copy).
    @pl.when(j == 0)
    def _():
        mls_ref[...] = jnp.zeros_like(mls_ref)
        mcnt_ref[...] = jnp.zeros_like(mcnt_ref)
        dls_ref[...] = jnp.zeros_like(dls_ref)
        dcnt_ref[...] = jnp.zeros_like(dcnt_ref)

    nd = dls_ref.shape[0]

    my = my_ref[...]          # (tr, h)  H-interp weights for this row band (f32)
    mx = mx_ref[...]          # (w, gw)  W-interp weights, VMEM-resident (f32)

    def resize(x_ref, c):
        # fused F.interpolate(..., mode='bilinear', align_corners=True) for channel c:
        # H-axis then W-axis interpolation, both as MXU matmuls.
        yc = jnp.dot(my, x_ref[c].astype(jnp.float32),
                     preferred_element_type=jnp.float32)             # (tr, w)
        return jnp.dot(yc, mx, preferred_element_type=jnp.float32)   # (tr, gw)

    m0 = resize(xm_ref, 0)
    m1 = resize(xm_ref, 1)

    seg = seg_ref[...]                           # (tr, gw) int32
    dist = dist_ref[...].astype(jnp.float32)     # streamed as bf16, compared in f32
    ang = ang_ref[...].astype(jnp.float32)

    valid = seg != -1
    if mask_rows:   # only traced when the last band is partial
        band = pl.program_id(0) * jb + j
        rows = lax.broadcasted_iota(jnp.int32, seg.shape, 0)
        valid = valid & ((band * tr + rows) < gh)

    # ---- gt_mask = DTOffsetHelper.distance_to_mask_label(distance, seg) ----
    keep = (dist >= DT_MIN_DISTANCE) & (dist <= DT_MAX_DISTANCE)
    gt_m = jnp.where(keep, 1, 0)
    gt_m = jnp.where(valid, gt_m, -1)

    # ---- binary_pred_mask = softmax(pred_mask)[1] > threshold ----
    if MASK_THRESHOLD == 0.5:
        pred_pos = m1 > m0            # exactly softmax_1 > 0.5; no sigmoid / EUP call
    else:
        pred_pos = jax.nn.sigmoid(m1 - m0) > MASK_THRESHOLD

    # ---- gt_direction = angle_to_direction_label(angle, seg, extra_ignore) ----
    # closed-form binning of (middle - step/2, middle + step/2] intervals, wrap -> 0
    step = 360.0 / nd
    t = (ang + (180.0 - 0.5 * step)) * (1.0 / step)
    idx = jnp.ceil(t).astype(jnp.int32)
    idx = jnp.where(idx >= nd, idx - nd, idx)
    idx = jnp.maximum(idx, 0)
    gt_d = jnp.where(valid & pred_pos, idx, -1)

    def accum_ce(logits, gt, ls_ref, cnt_ref):
        """Accumulate per-class CE loss sums / counts (ignore_index = -1).

        Reductions are sublane-only (over the row band); the lane reduction is
        deferred to the wrapper, keeping the accumulators lane-dense."""
        mval = logits[0]
        for x in logits[1:]:
            mval = jnp.maximum(mval, x)
        se = jnp.zeros_like(mval)
        for x in logits:
            se = se + jnp.exp(x - mval)
        lse = jnp.log(se) + mval                      # (tr, gw)
        x_gt = jnp.zeros_like(mval)
        for c, x in enumerate(logits):
            x_gt = jnp.where(gt == c, x, x_gt)
        pixloss = lse - x_gt                          # valid only where gt >= 0
        for c in range(len(logits)):
            sel = gt == c
            ls_ref[c:c + 1, :] += jnp.sum(jnp.where(sel, pixloss, 0.0),
                                          axis=0, keepdims=True)
            cnt_ref[c:c + 1, :] += jnp.sum(sel.astype(jnp.float32),
                                           axis=0, keepdims=True)

    accum_ce([m0, m1], gt_m, mls_ref, mcnt_ref)
    accum_ce([resize(xd_ref, c) for c in range(nd)], gt_d, dls_ref, dcnt_ref)


# =====================  wrappers  =====================

def _interp_matrix(out_n, in_n):
    """(out_n, in_n) weight matrix of F.interpolate(..., align_corners=True)."""
    if out_n == 1 or in_n == 1:
        src = jnp.zeros((out_n,), jnp.float32)
    else:
        src = jnp.arange(out_n, dtype=jnp.float32) * ((in_n - 1) / (out_n - 1))
    i0 = jnp.clip(jnp.floor(src).astype(jnp.int32), 0, in_n - 1)
    i1 = jnp.clip(i0 + 1, 0, in_n - 1)
    f = src - i0.astype(jnp.float32)
    return (jax.nn.one_hot(i0, in_n, dtype=jnp.float32) * (1.0 - f)[:, None]
            + jax.nn.one_hot(i1, in_n, dtype=jnp.float32) * f[:, None])


def _weighted_mean_ce(loss_sums, counts):
    """F.cross_entropy(weight=calc_weights(...), ignore_index=-1, reduction='mean')
    finished from per-class partial sums.  Shapes: (n_split, N, C, GW)."""
    ls = jnp.sum(loss_sums, axis=(0, 1, 3))        # (C,)
    cnt = jnp.sum(counts, axis=(0, 1, 3))          # (C,)
    total = jnp.sum(cnt)
    wgt = 1.0 - cnt / jnp.maximum(total, 1.0)      # calc_weights (guard total==0)
    num = jnp.sum(wgt * ls)
    den = jnp.sum(wgt * cnt)                       # sum of per-pixel weights
    return num / jnp.maximum(den, 1e-12)


def segfix_loss(pred_mask, pred_direction, seg_label_map, distance_map, angle_map):
    """SegFixLoss.forward((pred_mask, pred_direction), (seg, distance, angle))."""
    n, cm, h, w = pred_mask.shape
    nd = pred_direction.shape[1]
    gh, gw = seg_label_map.shape[1], seg_label_map.shape[2]

    # align_corners bilinear interpolation weight matrices (tiny, built at trace time)
    my = _interp_matrix(gh, h)             # (gh, h)
    mx = _interp_matrix(gw, w).T           # (w, gw)

    xm = pred_mask.astype(jnp.float32)             # (N, 2, h, w)  native layout
    xd = pred_direction.astype(jnp.float32)        # (N, D, h, w)
    seg = seg_label_map.astype(jnp.int32)          # (N, gh, gw)
    dist = distance_map.astype(jnp.bfloat16)       # halved label traffic (review item)
    ang = angle_map.astype(jnp.bfloat16)
    # TODO(synk): seg could be streamed as int16/int8 when the dataset label range
    # allows, shaving another ~2-3 B/pixel of HBM traffic.

    # ---- tiling: bands of GT rows, ~TARGET_PIXELS_PER_STEP pixels per grid step ----
    tr = max(16, (TARGET_PIXELS_PER_STEP // max(gw, 1)) // 16 * 16)
    if tr >= gh:
        tr = gh                                    # whole image height in one band
    num_bands = _cdiv(gh, tr)
    mask_rows = (gh % tr) != 0                     # partial last band -> mask rows

    # megacore: split the band axis across a leading parallel grid dim so both
    # TensorCores are busy even when the batch is 1 (v7x review item)
    n_split = 2 if (num_bands % 2 == 0) else 1
    jb = num_bands // n_split

    grid = (n_split, n, jb)
    kernel = functools.partial(_segfix_kernel, gh=gh, tr=tr, jb=jb,
                               mask_rows=mask_rows)

    in_specs = [
        # low-res predictions: whole tensor per batch element, VMEM-resident across bands
        pl.BlockSpec((pl.Squeezed(), cm, h, w), lambda s, b, j: (b, 0, 0, 0)),
        pl.BlockSpec((pl.Squeezed(), nd, h, w), lambda s, b, j: (b, 0, 0, 0)),
        # interpolation weights
        pl.BlockSpec((tr, h), lambda s, b, j: (s * jb + j, 0)),
        pl.BlockSpec((w, gw), lambda s, b, j: (0, 0)),
        # streamed GT label maps (one row band per step)
        pl.BlockSpec((pl.Squeezed(), tr, gw), lambda s, b, j: (b, s * jb + j, 0)),
        pl.BlockSpec((pl.Squeezed(), tr, gw), lambda s, b, j: (b, s * jb + j, 0)),
        pl.BlockSpec((pl.Squeezed(), tr, gw), lambda s, b, j: (b, s * jb + j, 0)),
    ]
    out_specs = [
        pl.BlockSpec((pl.Squeezed(), pl.Squeezed(), cm, gw), lambda s, b, j: (s, b, 0, 0)),
        pl.BlockSpec((pl.Squeezed(), pl.Squeezed(), cm, gw), lambda s, b, j: (s, b, 0, 0)),
        pl.BlockSpec((pl.Squeezed(), pl.Squeezed(), nd, gw), lambda s, b, j: (s, b, 0, 0)),
        pl.BlockSpec((pl.Squeezed(), pl.Squeezed(), nd, gw), lambda s, b, j: (s, b, 0, 0)),
    ]
    out_shape = (
        jax.ShapeDtypeStruct((n_split, n, cm, gw), jnp.float32),   # mask CE loss sums
        jax.ShapeDtypeStruct((n_split, n, cm, gw), jnp.float32),   # mask class counts
        jax.ShapeDtypeStruct((n_split, n, nd, gw), jnp.float32),   # dir CE loss sums
        jax.ShapeDtypeStruct((n_split, n, nd, gw), jnp.float32),   # dir class counts
    )

    # explicit VMEM limit only when the per-step footprint outgrows the scoped default
    blk_bytes = (4 * h * w * (cm + nd) + 4 * tr * h + 4 * w * gw
                 + (4 + 2 + 2) * tr * gw)
    out_bytes = 4 * gw * 2 * (cm + nd)
    interm = 4 * tr * gw * (nd + 6)
    est = 2 * blk_bytes + out_bytes + interm
    vmem_limit = None
    if est > 24 * 1024 * 1024:
        vmem_limit = min(int(est * 3 // 2), 64 * 1024 * 1024)

    mls, mcnt, dls, dcnt = pl.pallas_call(
        kernel,
        out_shape=out_shape,
        grid_spec=pltpu.PrefetchScalarGridSpec(
            num_scalar_prefetch=0,
            grid=grid,
            in_specs=in_specs,
            out_specs=out_specs),
        compiler_params=pltpu.CompilerParams(
            dimension_semantics=("parallel", "parallel", "arbitrary"),
            vmem_limit_bytes=vmem_limit),
    )(xm, xd, my, mx, seg, dist, ang)

    mask_loss = _weighted_mean_ce(mls, mcnt)
    direction_loss = _weighted_mean_ce(dls, dcnt)
    return MASK_WEIGHT * mask_loss + DIRECTION_WEIGHT * direction_loss


if __name__ == "__main__":
    key = jax.random.PRNGKey(0)
    k1, k2, k3, k4, k5 = jax.random.split(key, 5)

    N = 2
    h, w = 16, 16              # prediction resolution
    GH, GW = 32, 32            # ground-truth / label resolution (2x upsample in forward)
    pred_mask = jax.random.normal(k1, (N, 2, h, w), jnp.float32)
    pred_direction = jax.random.normal(k2, (N, NUM_DIR_CLASSES, h, w), jnp.float32)
    seg_label_map = jax.random.randint(k3, (N, GH, GW), -1, 5, dtype=jnp.int32)
    distance_map = jax.random.uniform(k4, (N, GH, GW), jnp.float32, 0.0, 10.0)
    angle_map = jax.random.uniform(k5, (N, GH, GW), jnp.float32, -180.0, 180.0)

    loss = jax.jit(segfix_loss)(pred_mask, pred_direction,
                                seg_label_map, distance_map, angle_map)
    loss = jax.block_until_ready(loss)
    assert bool(jnp.isfinite(loss))
    print("KERNEL_OK")
</pallas_src>

<mosaic_0001>
module attributes {stable_mosaic.version = 11 : i64} {
  func.func @_segfix_kernel(%arg0: i32, %arg1: i32, %arg2: i32, %arg3: memref<1x2x16x16xf32, #tpu.memory_space<vmem>>, %arg4: memref<1x8x16x16xf32, #tpu.memory_space<vmem>>, %arg5: memref<32x16xf32, #tpu.memory_space<vmem>>, %arg6: memref<16x32xf32, #tpu.memory_space<vmem>>, %arg7: memref<1x32x32xi32, #tpu.memory_space<vmem>>, %arg8: memref<1x32x32xbf16, #tpu.memory_space<vmem>>, %arg9: memref<1x32x32xbf16, #tpu.memory_space<vmem>>, %arg10: memref<1x1x2x32xf32, #tpu.memory_space<vmem>>, %arg11: memref<1x1x2x32xf32, #tpu.memory_space<vmem>>, %arg12: memref<1x1x8x32xf32, #tpu.memory_space<vmem>>, %arg13: memref<1x1x8x32xf32, #tpu.memory_space<vmem>>) attributes {dimension_semantics = [#tpu.dimension_semantics<parallel>, #tpu.dimension_semantics<parallel>, #tpu.dimension_semantics<arbitrary>], iteration_bounds = array<i64: 1, 2, 1>, scalar_prefetch = 0 : i64, scratch_operands = 0 : i64, tpu.core_type = #tpu.core_type<tc>, window_params = [{transform_indices = @transform_0, window_bounds = array<i64: 1, 2, 16, 16>}, {transform_indices = @transform_1, window_bounds = array<i64: 1, 8, 16, 16>}, {transform_indices = @transform_2, window_bounds = array<i64: 32, 16>}, {pipeline_mode = #tpu.pipeline_mode<synchronous>, transform_indices = @transform_3, window_bounds = array<i64: 16, 32>}, {transform_indices = @transform_4, window_bounds = array<i64: 1, 32, 32>}, {transform_indices = @transform_5, window_bounds = array<i64: 1, 32, 32>}, {transform_indices = @transform_6, window_bounds = array<i64: 1, 32, 32>}, {transform_indices = @transform_7, window_bounds = array<i64: 1, 1, 2, 32>}, {transform_indices = @transform_8, window_bounds = array<i64: 1, 1, 2, 32>}, {transform_indices = @transform_9, window_bounds = array<i64: 1, 1, 8, 32>}, {transform_indices = @transform_10, window_bounds = array<i64: 1, 1, 8, 32>}]} {
    %c0_i32 = arith.constant 0 : i32
    %0 = arith.cmpi eq, %arg2, %c0_i32 : i32
    %1 = arith.extui %0 : i1 to i32
    %c0_i32_0 = arith.constant 0 : i32
    %2 = arith.cmpi ne, %1, %c0_i32_0 : i32
    scf.if %2 {
      %cst_282 = arith.constant 0.000000e+00 : f32
      %380 = vector.broadcast %cst_282 : f32 to vector<2x32xf32>
      %c0_283 = arith.constant 0 : index
      %c0_284 = arith.constant 0 : index
      %c0_285 = arith.constant 0 : index
      %c0_286 = arith.constant 0 : index
      %381 = vector.load %arg10[%c0_283, %c0_284, %c0_285, %c0_286] : memref<1x1x2x32xf32, #tpu.memory_space<vmem>>, vector<1x1x2x32xf32>
      %382 = vector.shape_cast %381 : vector<1x1x2x32xf32> to vector<2x32xf32>
      %383 = vector.shape_cast %380 : vector<2x32xf32> to vector<1x1x2x32xf32>
      tpu.vector_store %arg10[%c0_283, %c0_284, %c0_285, %c0_286], %383 {strides = array<i32>} : memref<1x1x2x32xf32, #tpu.memory_space<vmem>>, vector<1x1x2x32xf32>,
      %cst_287 = arith.constant 0.000000e+00 : f32
      %384 = vector.broadcast %cst_287 : f32 to vector<2x32xf32>
      %c0_288 = arith.constant 0 : index
      %c0_289 = arith.constant 0 : index
      %c0_290 = arith.constant 0 : index
      %c0_291 = arith.constant 0 : index
      %385 = vector.load %arg11[%c0_288, %c0_289, %c0_290, %c0_291] : memref<1x1x2x32xf32, #tpu.memory_space<vmem>>, vector<1x1x2x32xf32>
      %386 = vector.shape_cast %385 : vector<1x1x2x32xf32> to vector<2x32xf32>
      %387 = vector.shape_cast %384 : vector<2x32xf32> to vector<1x1x2x32xf32>
      tpu.vector_store %arg11[%c0_288, %c0_289, %c0_290, %c0_291], %387 {strides = array<i32>} : memref<1x1x2x32xf32, #tpu.memory_space<vmem>>, vector<1x1x2x32xf32>,
      %cst_292 = arith.constant 0.000000e+00 : f32
      %388 = vector.broadcast %cst_292 : f32 to vector<8x32xf32>
      %c0_293 = arith.constant 0 : index
      %c0_294 = arith.constant 0 : index
      %c0_295 = arith.constant 0 : index
      %c0_296 = arith.constant 0 : index
      %389 = vector.load %arg12[%c0_293, %c0_294, %c0_295, %c0_296] : memref<1x1x8x32xf32, #tpu.memory_space<vmem>>, vector<1x1x8x32xf32>
      %390 = vector.shape_cast %389 : vector<1x1x8x32xf32> to vector<8x32xf32>
      %391 = vector.shape_cast %388 : vector<8x32xf32> to vector<1x1x8x32xf32>
      tpu.vector_store %arg12[%c0_293, %c0_294, %c0_295, %c0_296], %391 {strides = array<i32>} : memref<1x1x8x32xf32, #tpu.memory_space<vmem>>, vector<1x1x8x32xf32>,
      %cst_297 = arith.constant 0.000000e+00 : f32
      %392 = vector.broadcast %cst_297 : f32 to vector<8x32xf32>
      %c0_298 = arith.constant 0 : index
      %c0_299 = arith.constant 0 : index
      %c0_300 = arith.constant 0 : index
      %c0_301 = arith.constant 0 : index
      %393 = vector.load %arg13[%c0_298, %c0_299, %c0_300, %c0_301] : memref<1x1x8x32xf32, #tpu.memory_space<vmem>>, vector<1x1x8x32xf32>
      %394 = vector.shape_cast %393 : vector<1x1x8x32xf32> to vector<8x32xf32>
      %395 = vector.shape_cast %392 : vector<8x32xf32> to vector<1x1x8x32xf32>
      tpu.vector_store %arg13[%c0_298, %c0_299, %c0_300, %c0_301], %395 {strides = array<i32>} : memref<1x1x8x32xf32, #tpu.memory_space<vmem>>, vector<1x1x8x32xf32>,
    } else {
    }
    %c0 = arith.constant 0 : index
    %c0_1 = arith.constant 0 : index
    %3 = vector.load %arg5[%c0, %c0_1] : memref<32x16xf32, #tpu.memory_space<vmem>>, vector<32x16xf32>
    %c0_2 = arith.constant 0 : index
    %c0_3 = arith.constant 0 : index
    %4 = vector.load %arg6[%c0_2, %c0_3] : memref<16x32xf32, #tpu.memory_space<vmem>>, vector<16x32xf32>
    %c0_4 = arith.constant 0 : index
    %c0_5 = arith.constant 0 : index
    %c0_6 = arith.constant 0 : index
    %c0_7 = arith.constant 0 : index
    %5 = vector.load %arg3[%c0_4, %c0_5, %c0_6, %c0_7] : memref<1x2x16x16xf32, #tpu.memory_space<vmem>>, vector<1x1x16x16xf32>
    %6 = vector.shape_cast %5 : vector<1x1x16x16xf32> to vector<16x16xf32>
    %cst = arith.constant dense<0.000000e+00> : vector<32x16xf32>
    %7 = tpu.matmul %3, %6, %cst {dimension_numbers = #tpu.dot_dimension_numbers<[1], [0], [0], [1], [0, 0, 1, 1], [], []>} : vector<32x16xf32>, vector<16x16xf32>, vector<32x16xf32> -> vector<32x16xf32>
    %cst_8 = arith.constant dense<0.000000e+00> : vector<32x32xf32>
    %8 = tpu.matmul %7, %4, %cst_8 {dimension_numbers = #tpu.dot_dimension_numbers<[1], [0], [0], [1], [0, 0, 1, 1], [], []>} : vector<32x16xf32>, vector<16x32xf32>, vector<32x32xf32> -> vector<32x32xf32>
    %c0_9 = arith.constant 0 : index
    %c1 = arith.constant 1 : index
    %c0_10 = arith.constant 0 : index
    %c0_11 = arith.constant 0 : index
    %9 = vector.load %arg3[%c0_9, %c1, %c0_10, %c0_11] : memref<1x2x16x16xf32, #tpu.memory_space<vmem>>, vector<1x1x16x16xf32>
    %10 = vector.shape_cast %9 : vector<1x1x16x16xf32> to vector<16x16xf32>
    %cst_12 = arith.constant dense<0.000000e+00> : vector<32x16xf32>
    %11 = tpu.matmul %3, %10, %cst_12 {dimension_numbers = #tpu.dot_dimension_numbers<[1], [0], [0], [1], [0, 0, 1, 1], [], []>} : vector<32x16xf32>, vector<16x16xf32>, vector<32x16xf32> -> vector<32x16xf32>
    %cst_13 = arith.constant dense<0.000000e+00> : vector<32x32xf32>
    %12 = tpu.matmul %11, %4, %cst_13 {dimension_numbers = #tpu.dot_dimension_numbers<[1], [0], [0], [1], [0, 0, 1, 1], [], []>} : vector<32x16xf32>, vector<16x32xf32>, vector<32x32xf32> -> vector<32x32xf32>
    %c0_14 = arith.constant 0 : index
    %c0_15 = arith.constant 0 : index
    %c0_16 = arith.constant 0 : index
    %13 = vector.load %arg7[%c0_14, %c0_15, %c0_16] : memref<1x32x32xi32, #tpu.memory_space<vmem>>, vector<1x32x32xi32>
    %14 = vector.shape_cast %13 : vector<1x32x32xi32> to vector<32x32xi32>
    %c0_17 = arith.constant 0 : index
    %c0_18 = arith.constant 0 : index
    %c0_19 = arith.constant 0 : index
    %15 = vector.load %arg8[%c0_17, %c0_18, %c0_19] : memref<1x32x32xbf16, #tpu.memory_space<vmem>>, vector<1x32x32xbf16>
    %16 = vector.shape_cast %15 : vector<1x32x32xbf16> to vector<32x32xbf16>
    %17 = arith.extf %16 : vector<32x32xbf16> to vector<32x32xf32>
    %c0_20 = arith.constant 0 : index
    %c0_21 = arith.constant 0 : index
    %c0_22 = arith.constant 0 : index
    %18 = vector.load %arg9[%c0_20, %c0_21, %c0_22] : memref<1x32x32xbf16, #tpu.memory_space<vmem>>, vector<1x32x32xbf16>
    %19 = vector.shape_cast %18 : vector<1x32x32xbf16> to vector<32x32xbf16>
    %20 = arith.extf %19 : vector<32x32xbf16> to vector<32x32xf32>
    %c-1_i32 = arith.constant -1 : i32
    %21 = vector.broadcast %c-1_i32 : i32 to vector<32x32xi32>
    %22 = arith.cmpi ne, %14, %21 : vector<32x32xi32>
    %cst_23 = arith.constant 0.000000e+00 : f32
    %23 = vector.broadcast %cst_23 : f32 to vector<32x32xf32>
    %24 = arith.cmpf oge, %17, %23 : vector<32x32xf32>
    %cst_24 = arith.constant 5.000000e+00 : f32
    %25 = vector.broadcast %cst_24 : f32 to vector<32x32xf32>
    %26 = arith.cmpf ole, %17, %25 : vector<32x32xf32>
    %27 = arith.andi %24, %26 : vector<32x32xi1>
    %c1_i32 = arith.constant 1 : i32
    %c0_i32_25 = arith.constant 0 : i32
    %28 = vector.broadcast %c1_i32 : i32 to vector<32x32xi32>
    %29 = vector.broadcast %c0_i32_25 : i32 to vector<32x32xi32>
    %30 = arith.select %27, %28, %29 : vector<32x32xi1>, vector<32x32xi32>
    %c-1_i32_26 = arith.constant -1 : i32
    %31 = vector.broadcast %c-1_i32_26 : i32 to vector<32x32xi32>
    %32 = arith.select %22, %30, %31 : vector<32x32xi1>, vector<32x32xi32>
    %33 = arith.cmpf ogt, %12, %8 : vector<32x32xf32>
    %cst_27 = arith.constant 1.575000e+02 : f32
    %34 = vector.broadcast %cst_27 : f32 to vector<32x32xf32>
    %35 = arith.addf %20, %34 : vector<32x32xf32>
    %cst_28 = arith.constant 0.0222222228 : f32
    %36 = vector.broadcast %cst_28 : f32 to vector<32x32xf32>
    %37 = arith.mulf %35, %36 : vector<32x32xf32>
    %38 = math.ceil %37 : vector<32x32xf32>
    %39 = arith.fptosi %38 : vector<32x32xf32> to vector<32x32xi32>
    %c8_i32 = arith.constant 8 : i32
    %40 = vector.broadcast %c8_i32 : i32 to vector<32x32xi32>
    %41 = arith.cmpi sge, %39, %40 : vector<32x32xi32>
    %c8_i32_29 = arith.constant 8 : i32
    %42 = vector.broadcast %c8_i32_29 : i32 to vector<32x32xi32>
    %43 = arith.subi %39, %42 : vector<32x32xi32>
    %44 = arith.select %41, %43, %39 : vector<32x32xi1>, vector<32x32xi32>
    %c0_i32_30 = arith.constant 0 : i32
    %45 = vector.broadcast %c0_i32_30 : i32 to vector<32x32xi32>
    %46 = arith.maxsi %44, %45 : vector<32x32xi32>
    %47 = arith.andi %22, %33 : vector<32x32xi1>
    %c-1_i32_31 = arith.constant -1 : i32
    %48 = vector.broadcast %c-1_i32_31 : i32 to vector<32x32xi32>
    %49 = arith.select %47, %46, %48 : vector<32x32xi1>, vector<32x32xi32>
    %50 = arith.maximumf %8, %12 : vector<32x32xf32>
    %cst_32 = arith.constant 0.000000e+00 : f32
    %51 = vector.broadcast %cst_32 : f32 to vector<32x32xf32>
    %52 = arith.subf %8, %50 : vector<32x32xf32>
    %53 = math.exp %52 : vector<32x32xf32>
    %54 = arith.addf %51, %53 : vector<32x32xf32>
    %55 = arith.subf %12, %50 : vector<32x32xf32>
    %56 = math.exp %55 : vector<32x32xf32>
    %57 = arith.addf %54, %56 : vector<32x32xf32>
    %58 = math.log %57 : vector<32x32xf32>
    %59 = arith.addf %58, %50 : vector<32x32xf32>
    %cst_33 = arith.constant 0.000000e+00 : f32
    %60 = vector.broadcast %cst_33 : f32 to vector<32x32xf32>
    %c0_i32_34 = arith.constant 0 : i32
    %61 = vector.broadcast %c0_i32_34 : i32 to vector<32x32xi32>
    %62 = arith.cmpi eq, %32, %61 : vector<32x32xi32>
    %63 = arith.select %62, %8, %60 : vector<32x32xi1>, vector<32x32xf32>
    %c1_i32_35 = arith.constant 1 : i32
    %64 = vector.broadcast %c1_i32_35 : i32 to vector<32x32xi32>
    %65 = arith.cmpi eq, %32, %64 : vector<32x32xi32>
    %66 = arith.select %65, %12, %63 : vector<32x32xi1>, vector<32x32xf32>
    %67 = arith.subf %59, %66 : vector<32x32xf32>
    %c0_i32_36 = arith.constant 0 : i32
    %68 = vector.broadcast %c0_i32_36 : i32 to vector<32x32xi32>
    %69 = arith.cmpi eq, %32, %68 : vector<32x32xi32>
    %c0_37 = arith.constant 0 : index
    %c0_38 = arith.constant 0 : index
    %c0_39 = arith.constant 0 : index
    %c0_40 = arith.constant 0 : index
    %70 = vector.load %arg10[%c0_37, %c0_38, %c0_39, %c0_40] : memref<1x1x2x32xf32, #tpu.memory_space<vmem>>, vector<1x1x1x32xf32>
    %71 = vector.shape_cast %70 : vector<1x1x1x32xf32> to vector<1x32xf32>
    %cst_41 = arith.constant 0.000000e+00 : f32
    %72 = vector.broadcast %cst_41 : f32 to vector<32x32xf32>
    %73 = arith.select %69, %67, %72 : vector<32x32xi1>, vector<32x32xf32>
    %cst_42 = arith.constant dense<0.000000e+00> : vector<32xf32>
    %74 = vector.multi_reduction <add>, %73, %cst_42 [0] : vector<32x32xf32> to vector<32xf32>
    %75 = vector.shape_cast %74 : vector<32xf32> to vector<1x32xf32>
    %76 = arith.addf %71, %75 : vector<1x32xf32>
    %c0_43 = arith.constant 0 : index
    %c0_44 = arith.constant 0 : index
    %c0_45 = arith.constant 0 : index
    %c0_46 = arith.constant 0 : index
    %77 = vector.load %arg10[%c0_43, %c0_44, %c0_45, %c0_46] : memref<1x1x2x32xf32, #tpu.memory_space<vmem>>, vector<1x1x1x32xf32>
    %78 = vector.shape_cast %77 : vector<1x1x1x32xf32> to vector<1x32xf32>
    %79 = vector.shape_cast %76 : vector<1x32xf32> to vector<1x1x1x32xf32>
    tpu.vector_store %arg10[%c0_43, %c0_44, %c0_45, %c0_46], %79 {strides = array<i32>} : memref<1x1x2x32xf32, #tpu.memory_space<vmem>>, vector<1x1x1x32xf32>,
    %c0_47 = arith.constant 0 : index
    %c0_48 = arith.constant 0 : index
    %c0_49 = arith.constant 0 : index
    %c0_50 = arith.constant 0 : index
    %80 = vector.load %arg11[%c0_47, %c0_48, %c0_49, %c0_50] : memref<1x1x2x32xf32, #tpu.memory_space<vmem>>, vector<1x1x1x32xf32>
    %81 = vector.shape_cast %80 : vector<1x1x1x32xf32> to vector<1x32xf32>
    %82 = arith.extui %69 : vector<32x32xi1> to vector<32x32xi32>
    %83 = arith.sitofp %82 : vector<32x32xi32> to vector<32x32xf32>
    %cst_51 = arith.constant dense<0.000000e+00> : vector<32xf32>
    %84 = vector.multi_reduction <add>, %83, %cst_51 [0] : vector<32x32xf32> to vector<32xf32>
    %85 = vector.shape_cast %84 : vector<32xf32> to vector<1x32xf32>
    %86 = arith.addf %81, %85 : vector<1x32xf32>
    %c0_52 = arith.constant 0 : index
    %c0_53 = arith.constant 0 : index
    %c0_54 = arith.constant 0 : index
    %c0_55 = arith.constant 0 : index
    %87 = vector.load %arg11[%c0_52, %c0_53, %c0_54, %c0_55] : memref<1x1x2x32xf32, #tpu.memory_space<vmem>>, vector<1x1x1x32xf32>
    %88 = vector.shape_cast %87 : vector<1x1x1x32xf32> to vector<1x32xf32>
    %89 = vector.shape_cast %86 : vector<1x32xf32> to vector<1x1x1x32xf32>
    tpu.vector_store %arg11[%c0_52, %c0_53, %c0_54, %c0_55], %89 {strides = array<i32>} : memref<1x1x2x32xf32, #tpu.memory_space<vmem>>, vector<1x1x1x32xf32>,
    %c1_i32_56 = arith.constant 1 : i32
    %90 = vector.broadcast %c1_i32_56 : i32 to vector<32x32xi32>
    %91 = arith.cmpi eq, %32, %90 : vector<32x32xi32>
    %c0_57 = arith.constant 0 : index
    %c0_58 = arith.constant 0 : index
    %c1_59 = arith.constant 1 : index
    %c0_60 = arith.constant 0 : index
    %92 = vector.load %arg10[%c0_57, %c0_58, %c1_59, %c0_60] : memref<1x1x2x32xf32, #tpu.memory_space<vmem>>, vector<1x1x1x32xf32>
    %93 = vector.shape_cast %92 : vector<1x1x1x32xf32> to vector<1x32xf32>
    %cst_61 = arith.constant 0.000000e+00 : f32
    %94 = vector.broadcast %cst_61 : f32 to vector<32x32xf32>
    %95 = arith.select %91, %67, %94 : vector<32x32xi1>, vector<32x32xf32>
    %cst_62 = arith.constant dense<0.000000e+00> : vector<32xf32>
    %96 = vector.multi_reduction <add>, %95, %cst_62 [0] : vector<32x32xf32> to vector<32xf32>
    %97 = vector.shape_cast %96 : vector<32xf32> to vector<1x32xf32>
    %98 = arith.addf %93, %97 : vector<1x32xf32>
    %c0_63 = arith.constant 0 : index
    %c0_64 = arith.constant 0 : index
    %c1_65 = arith.constant 1 : index
    %c0_66 = arith.constant 0 : index
    %99 = vector.load %arg10[%c0_63, %c0_64, %c1_65, %c0_66] : memref<1x1x2x32xf32, #tpu.memory_space<vmem>>, vector<1x1x1x32xf32>
    %100 = vector.shape_cast %99 : vector<1x1x1x32xf32> to vector<1x32xf32>
    %101 = vector.shape_cast %98 : vector<1x32xf32> to vector<1x1x1x32xf32>
    tpu.vector_store %arg10[%c0_63, %c0_64, %c1_65, %c0_66], %101 {strides = array<i32>} : memref<1x1x2x32xf32, #tpu.memory_space<vmem>>, vector<1x1x1x32xf32>,
    %c0_67 = arith.constant 0 : index
    %c0_68 = arith.constant 0 : index
    %c1_69 = arith.constant 1 : index
    %c0_70 = arith.constant 0 : index
    %102 = vector.load %arg11[%c0_67, %c0_68, %c1_69, %c0_70] : memref<1x1x2x32xf32, #tpu.memory_space<vmem>>, vector<1x1x1x32xf32>
    %103 = vector.shape_cast %102 : vector<1x1x1x32xf32> to vector<1x32xf32>
    %104 = arith.extui %91 : vector<32x32xi1> to vector<32x32xi32>
    %105 = arith.sitofp %104 : vector<32x32xi32> to vector<32x32xf32>
    %cst_71 = arith.constant dense<0.000000e+00> : vector<32xf32>
    %106 = vector.multi_reduction <add>, %105, %cst_71 [0] : vector<32x32xf32> to vector<32xf32>
    %107 = vector.shape_cast %106 : vector<32xf32> to vector<1x32xf32>
    %108 = arith.addf %103, %107 : vector<1x32xf32>
    %c0_72 = arith.constant 0 : index
    %c0_73 = arith.constant 0 : index
    %c1_74 = arith.constant 1 : index
    %c0_75 = arith.constant 0 : index
    %109 = vector.load %arg11[%c0_72, %c0_73, %c1_74, %c0_75] : memref<1x1x2x32xf32, #tpu.memory_space<vmem>>, vector<1x1x1x32xf32>
    %110 = vector.shape_cast %109 : vector<1x1x1x32xf32> to vector<1x32xf32>
    %111 = vector.shape_cast %108 : vector<1x32xf32> to vector<1x1x1x32xf32>
    tpu.vector_store %arg11[%c0_72, %c0_73, %c1_74, %c0_75], %111 {strides = array<i32>} : memref<1x1x2x32xf32, #tpu.memory_space<vmem>>, vector<1x1x1x32xf32>,
    %c0_76 = arith.constant 0 : index
    %c0_77 = arith.constant 0 : index
    %c0_78 = arith.constant 0 : index
    %c0_79 = arith.constant 0 : index
    %112 = vector.load %arg4[%c0_76, %c0_77, %c0_78, %c0_79] : memref<1x8x16x16xf32, #tpu.memory_space<vmem>>, vector<1x1x16x16xf32>
    %113 = vector.shape_cast %112 : vector<1x1x16x16xf32> to vector<16x16xf32>
    %cst_80 = arith.constant dense<0.000000e+00> : vector<32x16xf32>
    %114 = tpu.matmul %3, %113, %cst_80 {dimension_numbers = #tpu.dot_dimension_numbers<[1], [0], [0], [1], [0, 0, 1, 1], [], []>} : vector<32x16xf32>, vector<16x16xf32>, vector<32x16xf32> -> vector<32x16xf32>
    %cst_81 = arith.constant dense<0.000000e+00> : vector<32x32xf32>
    %115 = tpu.matmul %114, %4, %cst_81 {dimension_numbers = #tpu.dot_dimension_numbers<[1], [0], [0], [1], [0, 0, 1, 1], [], []>} : vector<32x16xf32>, vector<16x32xf32>, vector<32x32xf32> -> vector<32x32xf32>
    %c0_82 = arith.constant 0 : index
    %c1_83 = arith.constant 1 : index
    %c0_84 = arith.constant 0 : index
    %c0_85 = arith.constant 0 : index
    %116 = vector.load %arg4[%c0_82, %c1_83, %c0_84, %c0_85] : memref<1x8x16x16xf32, #tpu.memory_space<vmem>>, vector<1x1x16x16xf32>
    %117 = vector.shape_cast %116 : vector<1x1x16x16xf32> to vector<16x16xf32>
    %cst_86 = arith.constant dense<0.000000e+00> : vector<32x16xf32>
    %118 = tpu.matmul %3, %117, %cst_86 {dimension_numbers = #tpu.dot_dimension_numbers<[1], [0], [0], [1], [0, 0, 1, 1], [], []>} : vector<32x16xf32>, vector<16x16xf32>, vector<32x16xf32> -> vector<32x16xf32>
    %cst_87 = arith.constant dense<0.000000e+00> : vector<32x32xf32>
    %119 = tpu.matmul %118, %4, %cst_87 {dimension_numbers = #tpu.dot_dimension_numbers<[1], [0], [0], [1], [0, 0, 1, 1], [], []>} : vector<32x16xf32>, vector<16x32xf32>, vector<32x32xf32> -> vector<32x32xf32>
    %c0_88 = arith.constant 0 : index
    %c2 = arith.constant 2 : index
    %c0_89 = arith.constant 0 : index
    %c0_90 = arith.constant 0 : index
    %120 = vector.load %arg4[%c0_88, %c2, %c0_89, %c0_90] : memref<1x8x16x16xf32, #tpu.memory_space<vmem>>, vector<1x1x16x16xf32>
    %121 = vector.shape_cast %120 : vector<1x1x16x16xf32> to vector<16x16xf32>
    %cst_91 = arith.constant dense<0.000000e+00> : vector<32x16xf32>
    %122 = tpu.matmul %3, %121, %cst_91 {dimension_numbers = #tpu.dot_dimension_numbers<[1], [0], [0], [1], [0, 0, 1, 1], [], []>} : vector<32x16xf32>, vector<16x16xf32>, vector<32x16xf32> -> vector<32x16xf32>
    %cst_92 = arith.constant dense<0.000000e+00> : vector<32x32xf32>
    %123 = tpu.matmul %122, %4, %cst_92 {dimension_numbers = #tpu.dot_dimension_numbers<[1], [0], [0], [1], [0, 0, 1, 1], [], []>} : vector<32x16xf32>, vector<16x32xf32>, vector<32x32xf32> -> vector<32x32xf32>
    %c0_93 = arith.constant 0 : index
    %c3 = arith.constant 3 : index
    %c0_94 = arith.constant 0 : index
    %c0_95 = arith.constant 0 : index
    %124 = vector.load %arg4[%c0_93, %c3, %c0_94, %c0_95] : memref<1x8x16x16xf32, #tpu.memory_space<vmem>>, vector<1x1x16x16xf32>
    %125 = vector.shape_cast %124 : vector<1x1x16x16xf32> to vector<16x16xf32>
    %cst_96 = arith.constant dense<0.000000e+00> : vector<32x16xf32>
    %126 = tpu.matmul %3, %125, %cst_96 {dimension_numbers = #tpu.dot_dimension_numbers<[1], [0], [0], [1], [0, 0, 1, 1], [], []>} : vector<32x16xf32>, vector<16x16xf32>, vector<32x16xf32> -> vector<32x16xf32>
    %cst_97 = arith.constant dense<0.000000e+00> : vector<32x32xf32>
    %127 = tpu.matmul %126, %4, %cst_97 {dimension_numbers = #tpu.dot_dimension_numbers<[1], [0], [0], [1], [0, 0, 1, 1], [], []>} : vector<32x16xf32>, vector<16x32xf32>, vector<32x32xf32> -> vector<32x32xf32>
    %c0_98 = arith.constant 0 : index
    %c4 = arith.constant 4 : index
    %c0_99 = arith.constant 0 : index
    %c0_100 = arith.constant 0 : index
    %128 = vector.load %arg4[%c0_98, %c4, %c0_99, %c0_100] : memref<1x8x16x16xf32, #tpu.memory_space<vmem>>, vector<1x1x16x16xf32>
    %129 = vector.shape_cast %128 : vector<1x1x16x16xf32> to vector<16x16xf32>
    %cst_101 = arith.constant dense<0.000000e+00> : vector<32x16xf32>
    %130 = tpu.matmul %3, %129, %cst_101 {dimension_numbers = #tpu.dot_dimension_numbers<[1], [0], [0], [1], [0, 0, 1, 1], [], []>} : vector<32x16xf32>, vector<16x16xf32>, vector<32x16xf32> -> vector<32x16xf32>
    %cst_102 = arith.constant dense<0.000000e+00> : vector<32x32xf32>
    %131 = tpu.matmul %130, %4, %cst_102 {dimension_numbers = #tpu.dot_dimension_numbers<[1], [0], [0], [1], [0, 0, 1, 1], [], []>} : vector<32x16xf32>, vector<16x32xf32>, vector<32x32xf32> -> vector<32x32xf32>
    %c0_103 = arith.constant 0 : index
    %c5 = arith.constant 5 : index
    %c0_104 = arith.constant 0 : index
    %c0_105 = arith.constant 0 : index
    %132 = vector.load %arg4[%c0_103, %c5, %c0_104, %c0_105] : memref<1x8x16x16xf32, #tpu.memory_space<vmem>>, vector<1x1x16x16xf32>
    %133 = vector.shape_cast %132 : vector<1x1x16x16xf32> to vector<16x16xf32>
    %cst_106 = arith.constant dense<0.000000e+00> : vector<32x16xf32>
    %134 = tpu.matmul %3, %133, %cst_106 {dimension_numbers = #tpu.dot_dimension_numbers<[1], [0], [0], [1], [0, 0, 1, 1], [], []>} : vector<32x16xf32>, vector<16x16xf32>, vector<32x16xf32> -> vector<32x16xf32>
    %cst_107 = arith.constant dense<0.000000e+00> : vector<32x32xf32>
    %135 = tpu.matmul %134, %4, %cst_107 {dimension_numbers = #tpu.dot_dimension_numbers<[1], [0], [0], [1], [0, 0, 1, 1], [], []>} : vector<32x16xf32>, vector<16x32xf32>, vector<32x32xf32> -> vector<32x32xf32>
    %c0_108 = arith.constant 0 : index
    %c6 = arith.constant 6 : index
    %c0_109 = arith.constant 0 : index
    %c0_110 = arith.constant 0 : index
    %136 = vector.load %arg4[%c0_108, %c6, %c0_109, %c0_110] : memref<1x8x16x16xf32, #tpu.memory_space<vmem>>, vector<1x1x16x16xf32>
    %137 = vector.shape_cast %136 : vector<1x1x16x16xf32> to vector<16x16xf32>
    %cst_111 = arith.constant dense<0.000000e+00> : vector<32x16xf32>
    %138 = tpu.matmul %3, %137, %cst_111 {dimension_numbers = #tpu.dot_dimension_numbers<[1], [0], [0], [1], [0, 0, 1, 1], [], []>} : vector<32x16xf32>, vector<16x16xf32>, vector<32x16xf32> -> vector<32x16xf32>
    %cst_112 = arith.constant dense<0.000000e+00> : vector<32x32xf32>
    %139 = tpu.matmul %138, %4, %cst_112 {dimension_numbers = #tpu.dot_dimension_numbers<[1], [0], [0], [1], [0, 0, 1, 1], [], []>} : vector<32x16xf32>, vector<16x32xf32>, vector<32x32xf32> -> vector<32x32xf32>
    %c0_113 = arith.constant 0 : index
    %c7 = arith.constant 7 : index
    %c0_114 = arith.constant 0 : index
    %c0_115 = arith.constant 0 : index
    %140 = vector.load %arg4[%c0_113, %c7, %c0_114, %c0_115] : memref<1x8x16x16xf32, #tpu.memory_space<vmem>>, vector<1x1x16x16xf32>
    %141 = vector.shape_cast %140 : vector<1x1x16x16xf32> to vector<16x16xf32>
    %cst_116 = arith.constant dense<0.000000e+00> : vector<32x16xf32>
    %142 = tpu.matmul %3, %141, %cst_116 {dimension_numbers = #tpu.dot_dimension_numbers<[1], [0], [0], [1], [0, 0, 1, 1], [], []>} : vector<32x16xf32>, vector<16x16xf32>, vector<32x16xf32> -> vector<32x16xf32>
    %cst_117 = arith.constant dense<0.000000e+00> : vector<32x32xf32>
    %143 = tpu.matmul %142, %4, %cst_117 {dimension_numbers = #tpu.dot_dimension_numbers<[1], [0], [0], [1], [0, 0, 1, 1], [], []>} : vector<32x16xf32>, vector<16x32xf32>, vector<32x32xf32> -> vector<32x32xf32>
    %144 = arith.maximumf %115, %119 : vector<32x32xf32>
    %145 = arith.maximumf %144, %123 : vector<32x32xf32>
    %146 = arith.maximumf %145, %127 : vector<32x32xf32>
    %147 = arith.maximumf %146, %131 : vector<32x32xf32>
    %148 = arith.maximumf %147, %135 : vector<32x32xf32>
    %149 = arith.maximumf %148, %139 : vector<32x32xf32>
    %150 = arith.maximumf %149, %143 : vector<32x32xf32>
    %cst_118 = arith.constant 0.000000e+00 : f32
    %151 = vector.broadcast %cst_118 : f32 to vector<32x32xf32>
    %152 = arith.subf %115, %150 : vector<32x32xf32>
    %153 = math.exp %152 : vector<32x32xf32>
    %154 = arith.addf %151, %153 : vector<32x32xf32>
    %155 = arith.subf %119, %150 : vector<32x32xf32>
    %156 = math.exp %155 : vector<32x32xf32>
    %157 = arith.addf %154, %156 : vector<32x32xf32>
    %158 = arith.subf %123, %150 : vector<32x32xf32>
    %159 = math.exp %158 : vector<32x32xf32>
    %160 = arith.addf %157, %159 : vector<32x32xf32>
    %161 = arith.subf %127, %150 : vector<32x32xf32>
    %162 = math.exp %161 : vector<32x32xf32>
    %163 = arith.addf %160, %162 : vector<32x32xf32>
    %164 = arith.subf %131, %150 : vector<32x32xf32>
    %165 = math.exp %164 : vector<32x32xf32>
    %166 = arith.addf %163, %165 : vector<32x32xf32>
    %167 = arith.subf %135, %150 : vector<32x32xf32>
    %168 = math.exp %167 : vector<32x32xf32>
    %169 = arith.addf %166, %168 : vector<32x32xf32>
    %170 = arith.subf %139, %150 : vector<32x32xf32>
    %171 = math.exp %170 : vector<32x32xf32>
    %172 = arith.addf %169, %171 : vector<32x32xf32>
    %173 = arith.subf %143, %150 : vector<32x32xf32>
    %174 = math.exp %173 : vector<32x32xf32>
    %175 = arith.addf %172, %174 : vector<32x32xf32>
    %176 = math.log %175 : vector<32x32xf32>
    %177 = arith.addf %176, %150 : vector<32x32xf32>
    %cst_119 = arith.constant 0.000000e+00 : f32
    %178 = vector.broadcast %cst_119 : f32 to vector<32x32xf32>
    %c0_i32_120 = arith.constant 0 : i32
    %179 = vector.broadcast %c0_i32_120 : i32 to vector<32x32xi32>
    %180 = arith.cmpi eq, %49, %179 : vector<32x32xi32>
    %181 = arith.select %180, %115, %178 : vector<32x32xi1>, vector<32x32xf32>
    %c1_i32_121 = arith.constant 1 : i32
    %182 = vector.broadcast %c1_i32_121 : i32 to vector<32x32xi32>
    %183 = arith.cmpi eq, %49, %182 : vector<32x32xi32>
    %184 = arith.select %183, %119, %181 : vector<32x32xi1>, vector<32x32xf32>
    %c2_i32 = arith.constant 2 : i32
    %185 = vector.broadcast %c2_i32 : i32 to vector<32x32xi32>
    %186 = arith.cmpi eq, %49, %185 : vector<32x32xi32>
    %187 = arith.select %186, %123, %184 : vector<32x32xi1>, vector<32x32xf32>
    %c3_i32 = arith.constant 3 : i32
    %188 = vector.broadcast %c3_i32 : i32 to vector<32x32xi32>
    %189 = arith.cmpi eq, %49, %188 : vector<32x32xi32>
    %190 = arith.select %189, %127, %187 : vector<32x32xi1>, vector<32x32xf32>
    %c4_i32 = arith.constant 4 : i32
    %191 = vector.broadcast %c4_i32 : i32 to vector<32x32xi32>
    %192 = arith.cmpi eq, %49, %191 : vector<32x32xi32>
    %193 = arith.select %192, %131, %190 : vector<32x32xi1>, vector<32x32xf32>
    %c5_i32 = arith.constant 5 : i32
    %194 = vector.broadcast %c5_i32 : i32 to vector<32x32xi32>
    %195 = arith.cmpi eq, %49, %194 : vector<32x32xi32>
    %196 = arith.select %195, %135, %193 : vector<32x32xi1>, vector<32x32xf32>
    %c6_i32 = arith.constant 6 : i32
    %197 = vector.broadcast %c6_i32 : i32 to vector<32x32xi32>
    %198 = arith.cmpi eq, %49, %197 : vector<32x32xi32>
    %199 = arith.select %198, %139, %196 : vector<32x32xi1>, vector<32x32xf32>
    %c7_i32 = arith.constant 7 : i32
    %200 = vector.broadcast %c7_i32 : i32 to vector<32x32xi32>
    %201 = arith.cmpi eq, %49, %200 : vector<32x32xi32>
    %202 = arith.select %201, %143, %199 : vector<32x32xi1>, vector<32x32xf32>
    %203 = arith.subf %177, %202 : vector<32x32xf32>
    %c0_i32_122 = arith.constant 0 : i32
    %204 = vector.broadcast %c0_i32_122 : i32 to vector<32x32xi32>
    %205 = arith.cmpi eq, %49, %204 : vector<32x32xi32>
    %c0_123 = arith.constant 0 : index
    %c0_124 = arith.constant 0 : index
    %c0_125 = arith.constant 0 : index
    %c0_126 = arith.constant 0 : index
    %206 = vector.load %arg12[%c0_123, %c0_124, %c0_125, %c0_126] : memref<1x1x8x32xf32, #tpu.memory_space<vmem>>, vector<1x1x1x32xf32>
    %207 = vector.shape_cast %206 : vector<1x1x1x32xf32> to vector<1x32xf32>
    %cst_127 = arith.constant 0.000000e+00 : f32
    %208 = vector.broadcast %cst_127 : f32 to vector<32x32xf32>
    %209 = arith.select %205, %203, %208 : vector<32x32xi1>, vector<32x32xf32>
    %cst_128 = arith.constant dense<0.000000e+00> : vector<32xf32>
    %210 = vector.multi_reduction <add>, %209, %cst_128 [0] : vector<32x32xf32> to vector<32xf32>
    %211 = vector.shape_cast %210 : vector<32xf32> to vector<1x32xf32>
    %212 = arith.addf %207, %211 : vector<1x32xf32>
    %c0_129 = arith.constant 0 : index
    %c0_130 = arith.constant 0 : index
    %c0_131 = arith.constant 0 : index
    %c0_132 = arith.constant 0 : index
    %213 = vector.load %arg12[%c0_129, %c0_130, %c0_131, %c0_132] : memref<1x1x8x32xf32, #tpu.memory_space<vmem>>, vector<1x1x1x32xf32>
    %214 = vector.shape_cast %213 : vector<1x1x1x32xf32> to vector<1x32xf32>
    %215 = vector.shape_cast %212 : vector<1x32xf32> to vector<1x1x1x32xf32>
    tpu.vector_store %arg12[%c0_129, %c0_130, %c0_131, %c0_132], %215 {strides = array<i32>} : memref<1x1x8x32xf32, #tpu.memory_space<vmem>>, vector<1x1x1x32xf32>,
    %c0_133 = arith.constant 0 : index
    %c0_134 = arith.constant 0 : index
    %c0_135 = arith.constant 0 : index
    %c0_136 = arith.constant 0 : index
    %216 = vector.load %arg13[%c0_133, %c0_134, %c0_135, %c0_136] : memref<1x1x8x32xf32, #tpu.memory_space<vmem>>, vector<1x1x1x32xf32>
    %217 = vector.shape_cast %216 : vector<1x1x1x32xf32> to vector<1x32xf32>
    %218 = arith.extui %205 : vector<32x32xi1> to vector<32x32xi32>
    %219 = arith.sitofp %218 : vector<32x32xi32> to vector<32x32xf32>
    %cst_137 = arith.constant dense<0.000000e+00> : vector<32xf32>
    %220 = vector.multi_reduction <add>, %219, %cst_137 [0] : vector<32x32xf32> to vector<32xf32>
    %221 = vector.shape_cast %220 : vector<32xf32> to vector<1x32xf32>
    %222 = arith.addf %217, %221 : vector<1x32xf32>
    %c0_138 = arith.constant 0 : index
    %c0_139 = arith.constant 0 : index
    %c0_140 = arith.constant 0 : index
    %c0_141 = arith.constant 0 : index
    %223 = vector.load %arg13[%c0_138, %c0_139, %c0_140, %c0_141] : memref<1x1x8x32xf32, #tpu.memory_space<vmem>>, vector<1x1x1x32xf32>
    %224 = vector.shape_cast %223 : vector<1x1x1x32xf32> to vector<1x32xf32>
    %225 = vector.shape_cast %222 : vector<1x32xf32> to vector<1x1x1x32xf32>
    tpu.vector_store %arg13[%c0_138, %c0_139, %c0_140, %c0_141], %225 {strides = array<i32>} : memref<1x1x8x32xf32, #tpu.memory_space<vmem>>, vector<1x1x1x32xf32>,
    %c1_i32_142 = arith.constant 1 : i32
    %226 = vector.broadcast %c1_i32_142 : i32 to vector<32x32xi32>
    %227 = arith.cmpi eq, %49, %226 : vector<32x32xi32>
    %c0_143 = arith.constant 0 : index
    %c0_144 = arith.constant 0 : index
    %c1_145 = arith.constant 1 : index
    %c0_146 = arith.constant 0 : index
    %228 = vector.load %arg12[%c0_143, %c0_144, %c1_145, %c0_146] : memref<1x1x8x32xf32, #tpu.memory_space<vmem>>, vector<1x1x1x32xf32>
    %229 = vector.shape_cast %228 : vector<1x1x1x32xf32> to vector<1x32xf32>
    %cst_147 = arith.constant 0.000000e+00 : f32
    %230 = vector.broadcast %cst_147 : f32 to vector<32x32xf32>
    %231 = arith.select %227, %203, %230 : vector<32x32xi1>, vector<32x32xf32>
    %cst_148 = arith.constant dense<0.000000e+00> : vector<32xf32>
    %232 = vector.multi_reduction <add>, %231, %cst_148 [0] : vector<32x32xf32> to vector<32xf32>
    %233 = vector.shape_cast %232 : vector<32xf32> to vector<1x32xf32>
    %234 = arith.addf %229, %233 : vector<1x32xf32>
    %c0_149 = arith.constant 0 : index
    %c0_150 = arith.constant 0 : index
    %c1_151 = arith.constant 1 : index
    %c0_152 = arith.constant 0 : index
    %235 = vector.load %arg12[%c0_149, %c0_150, %c1_151, %c0_152] : memref<1x1x8x32xf32, #tpu.memory_space<vmem>>, vector<1x1x1x32xf32>
    %236 = vector.shape_cast %235 : vector<1x1x1x32xf32> to vector<1x32xf32>
    %237 = vector.shape_cast %234 : vector<1x32xf32> to vector<1x1x1x32xf32>
    tpu.vector_store %arg12[%c0_149, %c0_150, %c1_151, %c0_152], %237 {strides = array<i32>} : memref<1x1x8x32xf32, #tpu.memory_space<vmem>>, vector<1x1x1x32xf32>,
    %c0_153 = arith.constant 0 : index
    %c0_154 = arith.constant 0 : index
    %c1_155 = arith.constant 1 : index
    %c0_156 = arith.constant 0 : index
    %238 = vector.load %arg13[%c0_153, %c0_154, %c1_155, %c0_156] : memref<1x1x8x32xf32, #tpu.memory_space<vmem>>, vector<1x1x1x32xf32>
    %239 = vector.shape_cast %238 : vector<1x1x1x32xf32> to vector<1x32xf32>
    %240 = arith.extui %227 : vector<32x32xi1> to vector<32x32xi32>
    %241 = arith.sitofp %240 : vector<32x32xi32> to vector<32x32xf32>
    %cst_157 = arith.constant dense<0.000000e+00> : vector<32xf32>
    %242 = vector.multi_reduction <add>, %241, %cst_157 [0] : vector<32x32xf32> to vector<32xf32>
    %243 = vector.shape_cast %242 : vector<32xf32> to vector<1x32xf32>
    %244 = arith.addf %239, %243 : vector<1x32xf32>
    %c0_158 = arith.constant 0 : index
    %c0_159 = arith.constant 0 : index
    %c1_160 = arith.constant 1 : index
    %c0_161 = arith.constant 0 : index
    %245 = vector.load %arg13[%c0_158, %c0_159, %c1_160, %c0_161] : memref<1x1x8x32xf32, #tpu.memory_space<vmem>>, vector<1x1x1x32xf32>
    %246 = vector.shape_cast %245 : vector<1x1x1x32xf32> to vector<1x32xf32>
    %247 = vector.shape_cast %244 : vector<1x32xf32> to vector<1x1x1x32xf32>
    tpu.vector_store %arg13[%c0_158, %c0_159, %c1_160, %c0_161], %247 {strides = array<i32>} : memref<1x1x8x32xf32, #tpu.memory_space<vmem>>, vector<1x1x1x32xf32>,
    %c2_i32_162 = arith.constant 2 : i32
    %248 = vector.broadcast %c2_i32_162 : i32 to vector<32x32xi32>
    %249 = arith.cmpi eq, %49, %248 : vector<32x32xi32>
    %c0_163 = arith.constant 0 : index
    %c0_164 = arith.constant 0 : index
    %c2_165 = arith.constant 2 : index
    %c0_166 = arith.constant 0 : index
    %250 = vector.load %arg12[%c0_163, %c0_164, %c2_165, %c0_166] : memref<1x1x8x32xf32, #tpu.memory_space<vmem>>, vector<1x1x1x32xf32>
    %251 = vector.shape_cast %250 : vector<1x1x1x32xf32> to vector<1x32xf32>
    %cst_167 = arith.constant 0.000000e+00 : f32
    %252 = vector.broadcast %cst_167 : f32 to vector<32x32xf32>
    %253 = arith.select %249, %203, %252 : vector<32x32xi1>, vector<32x32xf32>
    %cst_168 = arith.constant dense<0.000000e+00> : vector<32xf32>
    %254 = vector.multi_reduction <add>, %253, %cst_168 [0] : vector<32x32xf32> to vector<32xf32>
    %255 = vector.shape_cast %254 : vector<32xf32> to vector<1x32xf32>
    %256 = arith.addf %251, %255 : vector<1x32xf32>
    %c0_169 = arith.constant 0 : index
    %c0_170 = arith.constant 0 : index
    %c2_171 = arith.constant 2 : index
    %c0_172 = arith.constant 0 : index
    %257 = vector.load %arg12[%c0_169, %c0_170, %c2_171, %c0_172] : memref<1x1x8x32xf32, #tpu.memory_space<vmem>>, vector<1x1x1x32xf32>
    %258 = vector.shape_cast %257 : vector<1x1x1x32xf32> to vector<1x32xf32>
    %259 = vector.shape_cast %256 : vector<1x32xf32> to vector<1x1x1x32xf32>
    tpu.vector_store %arg12[%c0_169, %c0_170, %c2_171, %c0_172], %259 {strides = array<i32>} : memref<1x1x8x32xf32, #tpu.memory_space<vmem>>, vector<1x1x1x32xf32>,
    %c0_173 = arith.constant 0 : index
    %c0_174 = arith.constant 0 : index
    %c2_175 = arith.constant 2 : index
    %c0_176 = arith.constant 0 : index
    %260 = vector.load %arg13[%c0_173, %c0_174, %c2_175, %c0_176] : memref<1x1x8x32xf32, #tpu.memory_space<vmem>>, vector<1x1x1x32xf32>
    %261 = vector.shape_cast %260 : vector<1x1x1x32xf32> to vector<1x32xf32>
    %262 = arith.extui %249 : vector<32x32xi1> to vector<32x32xi32>
    %263 = arith.sitofp %262 : vector<32x32xi32> to vector<32x32xf32>
    %cst_177 = arith.constant dense<0.000000e+00> : vector<32xf32>
    %264 = vector.multi_reduction <add>, %263, %cst_177 [0] : vector<32x32xf32> to vector<32xf32>
    %265 = vector.shape_cast %264 : vector<32xf32> to vector<1x32xf32>
    %266 = arith.addf %261, %265 : vector<1x32xf32>
    %c0_178 = arith.constant 0 : index
    %c0_179 = arith.constant 0 : index
    %c2_180 = arith.constant 2 : index
    %c0_181 = arith.constant 0 : index
    %267 = vector.load %arg13[%c0_178, %c0_179, %c2_180, %c0_181] : memref<1x1x8x32xf32, #tpu.memory_space<vmem>>, vector<1x1x1x32xf32>
    %268 = vector.shape_cast %267 : vector<1x1x1x32xf32> to vector<1x32xf32>
    %269 = vector.shape_cast %266 : vector<1x32xf32> to vector<1x1x1x32xf32>
    tpu.vector_store %arg13[%c0_178, %c0_179, %c2_180, %c0_181], %269 {strides = array<i32>} : memref<1x1x8x32xf32, #tpu.memory_space<vmem>>, vector<1x1x1x32xf32>,
    %c3_i32_182 = arith.constant 3 : i32
    %270 = vector.broadcast %c3_i32_182 : i32 to vector<32x32xi32>
    %271 = arith.cmpi eq, %49, %270 : vector<32x32xi32>
    %c0_183 = arith.constant 0 : index
    %c0_184 = arith.constant 0 : index
    %c3_185 = arith.constant 3 : index
    %c0_186 = arith.constant 0 : index
    %272 = vector.load %arg12[%c0_183, %c0_184, %c3_185, %c0_186] : memref<1x1x8x32xf32, #tpu.memory_space<vmem>>, vector<1x1x1x32xf32>
    %273 = vector.shape_cast %272 : vector<1x1x1x32xf32> to vector<1x32xf32>
    %cst_187 = arith.constant 0.000000e+00 : f32
    %274 = vector.broadcast %cst_187 : f32 to vector<32x32xf32>
    %275 = arith.select %271, %203, %274 : vector<32x32xi1>, vector<32x32xf32>
    %cst_188 = arith.constant dense<0.000000e+00> : vector<32xf32>
    %276 = vector.multi_reduction <add>, %275, %cst_188 [0] : vector<32x32xf32> to vector<32xf32>
    %277 = vector.shape_cast %276 : vector<32xf32> to vector<1x32xf32>
    %278 = arith.addf %273, %277 : vector<1x32xf32>
    %c0_189 = arith.constant 0 : index
    %c0_190 = arith.constant 0 : index
    %c3_191 = arith.constant 3 : index
    %c0_192 = arith.constant 0 : index
    %279 = vector.load %arg12[%c0_189, %c0_190, %c3_191, %c0_192] : memref<1x1x8x32xf32, #tpu.memory_space<vmem>>, vector<1x1x1x32xf32>
    %280 = vector.shape_cast %279 : vector<1x1x1x32xf32> to vector<1x32xf32>
    %281 = vector.shape_cast %278 : vector<1x32xf32> to vector<1x1x1x32xf32>
    tpu.vector_store %arg12[%c0_189, %c0_190, %c3_191, %c0_192], %281 {strides = array<i32>} : memref<1x1x8x32xf32, #tpu.memory_space<vmem>>, vector<1x1x1x32xf32>,
    %c0_193 = arith.constant 0 : index
    %c0_194 = arith.constant 0 : index
    %c3_195 = arith.constant 3 : index
    %c0_196 = arith.constant 0 : index
    %282 = vector.load %arg13[%c0_193, %c0_194, %c3_195, %c0_196] : memref<1x1x8x32xf32, #tpu.memory_space<vmem>>, vector<1x1x1x32xf32>
    %283 = vector.shape_cast %282 : vector<1x1x1x32xf32> to vector<1x32xf32>
    %284 = arith.extui %271 : vector<32x32xi1> to vector<32x32xi32>
    %285 = arith.sitofp %284 : vector<32x32xi32> to vector<32x32xf32>
    %cst_197 = arith.constant dense<0.000000e+00> : vector<32xf32>
    %286 = vector.multi_reduction <add>, %285, %cst_197 [0] : vector<32x32xf32> to vector<32xf32>
    %287 = vector.shape_cast %286 : vector<32xf32> to vector<1x32xf32>
    %288 = arith.addf %283, %287 : vector<1x32xf32>
    %c0_198 = arith.constant 0 : index
    %c0_199 = arith.constant 0 : index
    %c3_200 = arith.constant 3 : index
    %c0_201 = arith.constant 0 : index
    %289 = vector.load %arg13[%c0_198, %c0_199, %c3_200, %c0_201] : memref<1x1x8x32xf32, #tpu.memory_space<vmem>>, vector<1x1x1x32xf32>
    %290 = vector.shape_cast %289 : vector<1x1x1x32xf32> to vector<1x32xf32>
    %291 = vector.shape_cast %288 : vector<1x32xf32> to vector<1x1x1x32xf32>
    tpu.vector_store %arg13[%c0_198, %c0_199, %c3_200, %c0_201], %291 {strides = array<i32>} : memref<1x1x8x32xf32, #tpu.memory_space<vmem>>, vector<1x1x1x32xf32>,
    %c4_i32_202 = arith.constant 4 : i32
    %292 = vector.broadcast %c4_i32_202 : i32 to vector<32x32xi32>
    %293 = arith.cmpi eq, %49, %292 : vector<32x32xi32>
    %c0_203 = arith.constant 0 : index
    %c0_204 = arith.constant 0 : index
    %c4_205 = arith.constant 4 : index
    %c0_206 = arith.constant 0 : index
    %294 = vector.load %arg12[%c0_203, %c0_204, %c4_205, %c0_206] : memref<1x1x8x32xf32, #tpu.memory_space<vmem>>, vector<1x1x1x32xf32>
    %295 = vector.shape_cast %294 : vector<1x1x1x32xf32> to vector<1x32xf32>
    %cst_207 = arith.constant 0.000000e+00 : f32
    %296 = vector.broadcast %cst_207 : f32 to vector<32x32xf32>
    %297 = arith.select %293, %203, %296 : vector<32x32xi1>, vector<32x32xf32>
    %cst_208 = arith.constant dense<0.000000e+00> : vector<32xf32>
    %298 = vector.multi_reduction <add>, %297, %cst_208 [0] : vector<32x32xf32> to vector<32xf32>
    %299 = vector.shape_cast %298 : vector<32xf32> to vector<1x32xf32>
    %300 = arith.addf %295, %299 : vector<1x32xf32>
    %c0_209 = arith.constant 0 : index
    %c0_210 = arith.constant 0 : index
    %c4_211 = arith.constant 4 : index
    %c0_212 = arith.constant 0 : index
    %301 = vector.load %arg12[%c0_209, %c0_210, %c4_211, %c0_212] : memref<1x1x8x32xf32, #tpu.memory_space<vmem>>, vector<1x1x1x32xf32>
    %302 = vector.shape_cast %301 : vector<1x1x1x32xf32> to vector<1x32xf32>
    %303 = vector.shape_cast %300 : vector<1x32xf32> to vector<1x1x1x32xf32>
    tpu.vector_store %arg12[%c0_209, %c0_210, %c4_211, %c0_212], %303 {strides = array<i32>} : memref<1x1x8x32xf32, #tpu.memory_space<vmem>>, vector<1x1x1x32xf32>,
    %c0_213 = arith.constant 0 : index
    %c0_214 = arith.constant 0 : index
    %c4_215 = arith.constant 4 : index
    %c0_216 = arith.constant 0 : index
    %304 = vector.load %arg13[%c0_213, %c0_214, %c4_215, %c0_216] : memref<1x1x8x32xf32, #tpu.memory_space<vmem>>, vector<1x1x1x32xf32>
    %305 = vector.shape_cast %304 : vector<1x1x1x32xf32> to vector<1x32xf32>
    %306 = arith.extui %293 : vector<32x32xi1> to vector<32x32xi32>
    %307 = arith.sitofp %306 : vector<32x32xi32> to vector<32x32xf32>
    %cst_217 = arith.constant dense<0.000000e+00> : vector<32xf32>
    %308 = vector.multi_reduction <add>, %307, %cst_217 [0] : vector<32x32xf32> to vector<32xf32>
    %309 = vector.shape_cast %308 : vector<32xf32> to vector<1x32xf32>
    %310 = arith.addf %305, %309 : vector<1x32xf32>
    %c0_218 = arith.constant 0 : index
    %c0_219 = arith.constant 0 : index
    %c4_220 = arith.constant 4 : index
    %c0_221 = arith.constant 0 : index
    %311 = vector.load %arg13[%c0_218, %c0_219, %c4_220, %c0_221] : memref<1x1x8x32xf32, #tpu.memory_space<vmem>>, vector<1x1x1x32xf32>
    %312 = vector.shape_cast %311 : vector<1x1x1x32xf32> to vector<1x32xf32>
    %313 = vector.shape_cast %310 : vector<1x32xf32> to vector<1x1x1x32xf32>
    tpu.vector_store %arg13[%c0_218, %c0_219, %c4_220, %c0_221], %313 {strides = array<i32>} : memref<1x1x8x32xf32, #tpu.memory_space<vmem>>, vector<1x1x1x32xf32>,
    %c5_i32_222 = arith.constant 5 : i32
    %314 = vector.broadcast %c5_i32_222 : i32 to vector<32x32xi32>
    %315 = arith.cmpi eq, %49, %314 : vector<32x32xi32>
    %c0_223 = arith.constant 0 : index
    %c0_224 = arith.constant 0 : index
    %c5_225 = arith.constant 5 : index
    %c0_226 = arith.constant 0 : index
    %316 = vector.load %arg12[%c0_223, %c0_224, %c5_225, %c0_226] : memref<1x1x8x32xf32, #tpu.memory_space<vmem>>, vector<1x1x1x32xf32>
    %317 = vector.shape_cast %316 : vector<1x1x1x32xf32> to vector<1x32xf32>
    %cst_227 = arith.constant 0.000000e+00 : f32
    %318 = vector.broadcast %cst_227 : f32 to vector<32x32xf32>
    %319 = arith.select %315, %203, %318 : vector<32x32xi1>, vector<32x32xf32>
    %cst_228 = arith.constant dense<0.000000e+00> : vector<32xf32>
    %320 = vector.multi_reduction <add>, %319, %cst_228 [0] : vector<32x32xf32> to vector<32xf32>
    %321 = vector.shape_cast %320 : vector<32xf32> to vector<1x32xf32>
    %322 = arith.addf %317, %321 : vector<1x32xf32>
    %c0_229 = arith.constant 0 : index
    %c0_230 = arith.constant 0 : index
    %c5_231 = arith.constant 5 : index
    %c0_232 = arith.constant 0 : index
    %323 = vector.load %arg12[%c0_229, %c0_230, %c5_231, %c0_232] : memref<1x1x8x32xf32, #tpu.memory_space<vmem>>, vector<1x1x1x32xf32>
    %324 = vector.shape_cast %323 : vector<1x1x1x32xf32> to vector<1x32xf32>
    %325 = vector.shape_cast %322 : vector<1x32xf32> to vector<1x1x1x32xf32>
    tpu.vector_store %arg12[%c0_229, %c0_230, %c5_231, %c0_232], %325 {strides = array<i32>} : memref<1x1x8x32xf32, #tpu.memory_space<vmem>>, vector<1x1x1x32xf32>,
    %c0_233 = arith.constant 0 : index
    %c0_234 = arith.constant 0 : index
    %c5_235 = arith.constant 5 : index
    %c0_236 = arith.constant 0 : index
    %326 = vector.load %arg13[%c0_233, %c0_234, %c5_235, %c0_236] : memref<1x1x8x32xf32, #tpu.memory_space<vmem>>, vector<1x1x1x32xf32>
    %327 = vector.shape_cast %326 : vector<1x1x1x32xf32> to vector<1x32xf32>
    %328 = arith.extui %315 : vector<32x32xi1> to vector<32x32xi32>
    %329 = arith.sitofp %328 : vector<32x32xi32> to vector<32x32xf32>
    %cst_237 = arith.constant dense<0.000000e+00> : vector<32xf32>
    %330 = vector.multi_reduction <add>, %329, %cst_237 [0] : vector<32x32xf32> to vector<32xf32>
    %331 = vector.shape_cast %330 : vector<32xf32> to vector<1x32xf32>
    %332 = arith.addf %327, %331 : vector<1x32xf32>
    %c0_238 = arith.constant 0 : index
    %c0_239 = arith.constant 0 : index
    %c5_240 = arith.constant 5 : index
    %c0_241 = arith.constant 0 : index
    %333 = vector.load %arg13[%c0_238, %c0_239, %c5_240, %c0_241] : memref<1x1x8x32xf32, #tpu.memory_space<vmem>>, vector<1x1x1x32xf32>
    %334 = vector.shape_cast %333 : vector<1x1x1x32xf32> to vector<1x32xf32>
    %335 = vector.shape_cast %332 : vector<1x32xf32> to vector<1x1x1x32xf32>
    tpu.vector_store %arg13[%c0_238, %c0_239, %c5_240, %c0_241], %335 {strides = array<i32>} : memref<1x1x8x32xf32, #tpu.memory_space<vmem>>, vector<1x1x1x32xf32>,
    %c6_i32_242 = arith.constant 6 : i32
    %336 = vector.broadcast %c6_i32_242 : i32 to vector<32x32xi32>
    %337 = arith.cmpi eq, %49, %336 : vector<32x32xi32>
    %c0_243 = arith.constant 0 : index
    %c0_244 = arith.constant 0 : index
    %c6_245 = arith.constant 6 : index
    %c0_246 = arith.constant 0 : index
    %338 = vector.load %arg12[%c0_243, %c0_244, %c6_245, %c0_246] : memref<1x1x8x32xf32, #tpu.memory_space<vmem>>, vector<1x1x1x32xf32>
    %339 = vector.shape_cast %338 : vector<1x1x1x32xf32> to vector<1x32xf32>
    %cst_247 = arith.constant 0.000000e+00 : f32
    %340 = vector.broadcast %cst_247 : f32 to vector<32x32xf32>
    %341 = arith.select %337, %203, %340 : vector<32x32xi1>, vector<32x32xf32>
    %cst_248 = arith.constant dense<0.000000e+00> : vector<32xf32>
    %342 = vector.multi_reduction <add>, %341, %cst_248 [0] : vector<32x32xf32> to vector<32xf32>
    %343 = vector.shape_cast %342 : vector<32xf32> to vector<1x32xf32>
    %344 = arith.addf %339, %343 : vector<1x32xf32>
    %c0_249 = arith.constant 0 : index
    %c0_250 = arith.constant 0 : index
    %c6_251 = arith.constant 6 : index
    %c0_252 = arith.constant 0 : index
    %345 = vector.load %arg12[%c0_249, %c0_250, %c6_251, %c0_252] : memref<1x1x8x32xf32, #tpu.memory_space<vmem>>, vector<1x1x1x32xf32>
    %346 = vector.shape_cast %345 : vector<1x1x1x32xf32> to vector<1x32xf32>
    %347 = vector.shape_cast %344 : vector<1x32xf32> to vector<1x1x1x32xf32>
    tpu.vector_store %arg12[%c0_249, %c0_250, %c6_251, %c0_252], %347 {strides = array<i32>} : memref<1x1x8x32xf32, #tpu.memory_space<vmem>>, vector<1x1x1x32xf32>,
    %c0_253 = arith.constant 0 : index
    %c0_254 = arith.constant 0 : index
    %c6_255 = arith.constant 6 : index
    %c0_256 = arith.constant 0 : index
    %348 = vector.load %arg13[%c0_253, %c0_254, %c6_255, %c0_256] : memref<1x1x8x32xf32, #tpu.memory_space<vmem>>, vector<1x1x1x32xf32>
    %349 = vector.shape_cast %348 : vector<1x1x1x32xf32> to vector<1x32xf32>
    %350 = arith.extui %337 : vector<32x32xi1> to vector<32x32xi32>
    %351 = arith.sitofp %350 : vector<32x32xi32> to vector<32x32xf32>
    %cst_257 = arith.constant dense<0.000000e+00> : vector<32xf32>
    %352 = vector.multi_reduction <add>, %351, %cst_257 [0] : vector<32x32xf32> to vector<32xf32>
    %353 = vector.shape_cast %352 : vector<32xf32> to vector<1x32xf32>
    %354 = arith.addf %349, %353 : vector<1x32xf32>
    %c0_258 = arith.constant 0 : index
    %c0_259 = arith.constant 0 : index
    %c6_260 = arith.constant 6 : index
    %c0_261 = arith.constant 0 : index
    %355 = vector.load %arg13[%c0_258, %c0_259, %c6_260, %c0_261] : memref<1x1x8x32xf32, #tpu.memory_space<vmem>>, vector<1x1x1x32xf32>
    %356 = vector.shape_cast %355 : vector<1x1x1x32xf32> to vector<1x32xf32>
    %357 = vector.shape_cast %354 : vector<1x32xf32> to vector<1x1x1x32xf32>
    tpu.vector_store %arg13[%c0_258, %c0_259, %c6_260, %c0_261], %357 {strides = array<i32>} : memref<1x1x8x32xf32, #tpu.memory_space<vmem>>, vector<1x1x1x32xf32>,
    %c7_i32_262 = arith.constant 7 : i32
    %358 = vector.broadcast %c7_i32_262 : i32 to vector<32x32xi32>
    %359 = arith.cmpi eq, %49, %358 : vector<32x32xi32>
    %c0_263 = arith.constant 0 : index
    %c0_264 = arith.constant 0 : index
    %c7_265 = arith.constant 7 : index
    %c0_266 = arith.constant 0 : index
    %360 = vector.load %arg12[%c0_263, %c0_264, %c7_265, %c0_266] : memref<1x1x8x32xf32, #tpu.memory_space<vmem>>, vector<1x1x1x32xf32>
    %361 = vector.shape_cast %360 : vector<1x1x1x32xf32> to vector<1x32xf32>
    %cst_267 = arith.constant 0.000000e+00 : f32
    %362 = vector.broadcast %cst_267 : f32 to vector<32x32xf32>
    %363 = arith.select %359, %203, %362 : vector<32x32xi1>, vector<32x32xf32>
    %cst_268 = arith.constant dense<0.000000e+00> : vector<32xf32>
    %364 = vector.multi_reduction <add>, %363, %cst_268 [0] : vector<32x32xf32> to vector<32xf32>
    %365 = vector.shape_cast %364 : vector<32xf32> to vector<1x32xf32>
    %366 = arith.addf %361, %365 : vector<1x32xf32>
    %c0_269 = arith.constant 0 : index
    %c0_270 = arith.constant 0 : index
    %c7_271 = arith.constant 7 : index
    %c0_272 = arith.constant 0 : index
    %367 = vector.load %arg12[%c0_269, %c0_270, %c7_271, %c0_272] : memref<1x1x8x32xf32, #tpu.memory_space<vmem>>, vector<1x1x1x32xf32>
    %368 = vector.shape_cast %367 : vector<1x1x1x32xf32> to vector<1x32xf32>
    %369 = vector.shape_cast %366 : vector<1x32xf32> to vector<1x1x1x32xf32>
    tpu.vector_store %arg12[%c0_269, %c0_270, %c7_271, %c0_272], %369 {strides = array<i32>} : memref<1x1x8x32xf32, #tpu.memory_space<vmem>>, vector<1x1x1x32xf32>,
    %c0_273 = arith.constant 0 : index
    %c0_274 = arith.constant 0 : index
    %c7_275 = arith.constant 7 : index
    %c0_276 = arith.constant 0 : index
    %370 = vector.load %arg13[%c0_273, %c0_274, %c7_275, %c0_276] : memref<1x1x8x32xf32, #tpu.memory_space<vmem>>, vector<1x1x1x32xf32>
    %371 = vector.shape_cast %370 : vector<1x1x1x32xf32> to vector<1x32xf32>
    %372 = arith.extui %359 : vector<32x32xi1> to vector<32x32xi32>
    %373 = arith.sitofp %372 : vector<32x32xi32> to vector<32x32xf32>
    %cst_277 = arith.constant dense<0.000000e+00> : vector<32xf32>
    %374 = vector.multi_reduction <add>, %373, %cst_277 [0] : vector<32x32xf32> to vector<32xf32>
    %375 = vector.shape_cast %374 : vector<32xf32> to vector<1x32xf32>
    %376 = arith.addf %371, %375 : vector<1x32xf32>
    %c0_278 = arith.constant 0 : index
    %c0_279 = arith.constant 0 : index
    %c7_280 = arith.constant 7 : index
    %c0_281 = arith.constant 0 : index
    %377 = vector.load %arg13[%c0_278, %c0_279, %c7_280, %c0_281] : memref<1x1x8x32xf32, #tpu.memory_space<vmem>>, vector<1x1x1x32xf32>
    %378 = vector.shape_cast %377 : vector<1x1x1x32xf32> to vector<1x32xf32>
    %379 = vector.shape_cast %376 : vector<1x32xf32> to vector<1x1x1x32xf32>
    tpu.vector_store %arg13[%c0_278, %c0_279, %c7_280, %c0_281], %379 {strides = array<i32>} : memref<1x1x8x32xf32, #tpu.memory_space<vmem>>, vector<1x1x1x32xf32>,
    return
  }
  func.func @transform_0(%arg0: i32, %arg1: i32, %arg2: i32) -> (i32, i32, i32, i32) {
    %c0_i32 = arith.constant 0 : i32
    %c0_i32_0 = arith.constant 0 : i32
    %c0_i32_1 = arith.constant 0 : i32
    %c0_i32_2 = arith.constant 0 : i32
    return %arg1, %c0_i32, %c0_i32_0, %c0_i32_1 : i32, i32, i32, i32
  }
  func.func @transform_1(%arg0: i32, %arg1: i32, %arg2: i32) -> (i32, i32, i32, i32) {
    %c0_i32 = arith.constant 0 : i32
    %c0_i32_0 = arith.constant 0 : i32
    %c0_i32_1 = arith.constant 0 : i32
    %c0_i32_2 = arith.constant 0 : i32
    return %arg1, %c0_i32, %c0_i32_0, %c0_i32_1 : i32, i32, i32, i32
  }
  func.func @transform_2(%arg0: i32, %arg1: i32, %arg2: i32) -> (i32, i32) {
    %c1_i32 = arith.constant 1 : i32
    %0 = arith.muli %arg0, %c1_i32 : i32
    %1 = arith.addi %0, %arg2 : i32
    %c0_i32 = arith.constant 0 : i32
    %c0_i32_0 = arith.constant 0 : i32
    return %1, %c0_i32 : i32, i32
  }
  func.func @transform_3(%arg0: i32, %arg1: i32, %arg2: i32) -> (i32, i32) {
    %c0_i32 = arith.constant 0 : i32
    %c0_i32_0 = arith.constant 0 : i32
    %c0_i32_1 = arith.constant 0 : i32
    return %c0_i32, %c0_i32_0 : i32, i32
  }
  func.func @transform_4(%arg0: i32, %arg1: i32, %arg2: i32) -> (i32, i32, i32) {
    %c1_i32 = arith.constant 1 : i32
    %0 = arith.muli %arg0, %c1_i32 : i32
    %1 = arith.addi %0, %arg2 : i32
    %c0_i32 = arith.constant 0 : i32
    %c0_i32_0 = arith.constant 0 : i32
    return %arg1, %1, %c0_i32 : i32, i32, i32
  }
  func.func @transform_5(%arg0: i32, %arg1: i32, %arg2: i32) -> (i32, i32, i32) {
    %c1_i32 = arith.constant 1 : i32
    %0 = arith.muli %arg0, %c1_i32 : i32
    %1 = arith.addi %0, %arg2 : i32
    %c0_i32 = arith.constant 0 : i32
    %c0_i32_0 = arith.constant 0 : i32
    return %arg1, %1, %c0_i32 : i32, i32, i32
  }
  func.func @transform_6(%arg0: i32, %arg1: i32, %arg2: i32) -> (i32, i32, i32) {
    %c1_i32 = arith.constant 1 : i32
    %0 = arith.muli %arg0, %c1_i32 : i32
    %1 = arith.addi %0, %arg2 : i32
    %c0_i32 = arith.constant 0 : i32
    %c0_i32_0 = arith.constant 0 : i32
    return %arg1, %1, %c0_i32 : i32, i32, i32
  }
  func.func @transform_7(%arg0: i32, %arg1: i32, %arg2: i32) -> (i32, i32, i32, i32) {
    %c0_i32 = arith.constant 0 : i32
    %c0_i32_0 = arith.constant 0 : i32
    %c0_i32_1 = arith.constant 0 : i32
    return %arg0, %arg1, %c0_i32, %c0_i32_0 : i32, i32, i32, i32
  }
  func.func @transform_8(%arg0: i32, %arg1: i32, %arg2: i32) -> (i32, i32, i32, i32) {
    %c0_i32 = arith.constant 0 : i32
    %c0_i32_0 = arith.constant 0 : i32
    %c0_i32_1 = arith.constant 0 : i32
    return %arg0, %arg1, %c0_i32, %c0_i32_0 : i32, i32, i32, i32
  }
  func.func @transform_9(%arg0: i32, %arg1: i32, %arg2: i32) -> (i32, i32, i32, i32) {
    %c0_i32 = arith.constant 0 : i32
    %c0_i32_0 = arith.constant 0 : i32
    %c0_i32_1 = arith.constant 0 : i32
    return %arg0, %arg1, %c0_i32, %c0_i32_0 : i32, i32, i32, i32
  }
  func.func @transform_10(%arg0: i32, %arg1: i32, %arg2: i32) -> (i32, i32, i32, i32) {
    %c0_i32 = arith.constant 0 : i32
    %c0_i32_0 = arith.constant 0 : i32
    %c0_i32_1 = arith.constant 0 : i32
    return %arg0, %arg1, %c0_i32, %c0_i32_0 : i32, i32, i32, i32
  }
}

</mosaic_0001>

<llo_original>
// kernel: segfix_loss.1
$region0: #{segfix_loss.1}
  #allocation0 [shape = 'u32[]', space=smem, size = 0x4, offset = 0x4, fixed_abs, tag = 'smem constant byte address 0x4 - core index']
  #allocation1 [shape = 'u32[72,128]{1,0:T(1,128)}', space=vmem, size = 0x9000, scoped, tag = 'internal scratch']
  %s0 = inlined_call_operand.vmem [shape: f32[2,2,16,16], index: 0, kind: input, shape index: {}]
  %s1 = inlined_call_operand.hbm [shape: f32[2,8,16,16], index: 1, kind: input, shape index: {}]
  %s2 = inlined_call_operand.vmem [shape: f32[32,16], index: 2, kind: input, shape index: {}]
  %s3 = inlined_call_operand.vmem [shape: f32[16,32], index: 3, kind: input, shape index: {}]
  %s4 = inlined_call_operand.vmem [shape: s32[2,32,32], index: 4, kind: input, shape index: {}]
  %s5 = inlined_call_operand.vmem [shape: bf16[2,32,32], index: 5, kind: input, shape index: {}]
  %s6 = inlined_call_operand.vmem [shape: bf16[2,32,32], index: 6, kind: input, shape index: {}]
  %s7 = inlined_call_operand.vmem [shape: f32[1,2,2,32], index: 7, kind: output, shape index: {0}]
  %s8 = inlined_call_operand.vmem [shape: f32[1,2,2,32], index: 8, kind: output, shape index: {1}]
  %s9 = inlined_call_operand.vmem [shape: f32[1,2,8,32], index: 9, kind: output, shape index: {2}]
  %s10 = inlined_call_operand.vmem [shape: f32[1,2,8,32], index: 10, kind: output, shape index: {3}]
  %11 = xla_tuple %s7, %s8, %s9, %s10
  %s12 = sld [smem:[#allocation0]]
  $region93: #{segfix_loss.1} parent=0
    _
  %s14 = ssub.s32 1, %s12
  %s15 = scalar_select 0, %s14, %s12
  $region1: #{segfix_loss.1} parent=0
    #allocation2 [shape = 'u8[131072]{0}', space=vmem, size = 0x20000, scoped, tag = 'input window, operand 1']
    #allocation3 [shape = 's32[2]{0}', space=sflag, size = 0x8, scoped, tag = 'scoped memory for segfix_loss.1']
    %16 = vsyncpa [#allocation3], 0
    %s17 = scalar_lea.sflag [#allocation3], 1
    %18 = vsyncpa %s17, 0
    loop: start=0, step=1, limit=4
    $region2: #{segfix_loss.1} parent=1 // loop_pre_header
      _
    $region3: #{segfix_loss.1} parent=1 // loop_header
      %s20 = sphi 0, %s24
      %p21 = scmp.ge.s32.totalorder %s20, 4
      %s27 = sphi 0, %s46
      %s28 = sphi 0, %s42
      %s29 = sphi 0, %s38
      %s30 = sphi 0, %s27
      %s31 = sphi 0, %s28
      %s32 = sphi 0, %s29
      %s33 = sphi 0, %s30
      %s34 = sphi 0, %s31
      %s35 = sphi 0, %s32
      %s49 = sphi 0, %s51
      %s52 = sphi 0, %s49
      %s53 = sphi 0, %s52
      %s69 = sphi 0, %s53
      %s75 = sphi 0, %s77
      %s78 = sphi 0, %s75
      %s79 = sphi 0, %s78
      %s95 = sphi 0, %s79
      %s103 = sphi 0, %s105
      %s106 = sphi 0, %s103
      %s107 = sphi 0, %s106
      %s123 = sphi 0, %s107
      %s127 = sphi 0, %s127
      %s129 = sphi 0, %s127
      %s130 = sphi 0, %s129
      %s144 = sphi 0, %s130
      %s154 = sphi 0, %s156
      %s157 = sphi 0, %s154
      %s158 = sphi 0, %s157
      %s174 = sphi 0, %s158
      %s184 = sphi 0, %s186
      %s187 = sphi 0, %s184
      %s188 = sphi 0, %s187
      %s204 = sphi 0, %s188
      %s214 = sphi 0, %s216
      %s217 = sphi 0, %s214
      %s218 = sphi 0, %s217
      %s234 = sphi 0, %s218
      %s242 = sphi 0, %s244
      %s245 = sphi 0, %s242
      %s246 = sphi 0, %s245
      %s262 = sphi 0, %s246
      %s270 = sphi 0, %s272
      %s273 = sphi 0, %s270
      %s274 = sphi 0, %s273
      %s290 = sphi 0, %s274
      %s298 = sphi 0, %s300
      %s301 = sphi 0, %s298
      %s302 = sphi 0, %s301
      %s318 = sphi 0, %s302
      %s326 = sphi 0, %s328
      %s329 = sphi 0, %s326
      %s330 = sphi 0, %s329
      %s346 = sphi 0, %s330
    $region4: #{segfix_loss.1} parent=1 // loop_header_branch
      %23 = sbr.rel (%p21) target = $region8
    $region5: #{segfix_loss.1} parent=1 // loop_body
      %s25 = ssub.s32 %s20, 1
      %s26 = ssub.s32 %s20, 2
      %s36 = sadd.s32 1, %s29
      %p37 = scmp.ge.s32.totalorder %s36, 1
      %s38 = scalar_select %p37, 0, %s36
      %s39 = sadd.s32 1, %s28
      %s40 = scalar_select %p37, %s39, %s28
      %p41 = scmp.ge.s32.totalorder %s40, 2
      %s42 = scalar_select %p41, 0, %s40
      %s43 = sadd.s32 1, %s27
      %s44 = scalar_select %p41, %s43, %s27
      %p45 = scmp.ge.s32.totalorder %s44, 1
      %s46 = scalar_select %p45, 0, %s44
      %s47 = ssub.s32 %s28, %s42
      %p48 = scmp.eq.s32.totalorder %s47, 0
      %s50 = sadd.s32 %s49, 1
      %s51 = scalar_select %p48, %s49, %s50
      %p54 = pneg %p48
      %p55 = scmp.eq.s32.totalorder %s20, 1
      %p56 = por %p54, %p55
      %p57 = scmp.ne.s32.totalorder %s49, %s52
      %p58 = scmp.eq.s32.totalorder %s20, 0
      %p59 = por %p57, %p58
      %p60 = scmp.ne.s32.totalorder %s49, %s52
      %p61 = scmp.eq.s32.totalorder %s25, 1
      %p62 = por %p60, %p61
      %p63 = scmp.ne.s32.totalorder %s52, %s53
      %p64 = scmp.eq.s32.totalorder %s25, 0
      %p65 = por %p63, %p64
      %p66 = scmp.ne.s32.totalorder %s52, %s53
      %p67 = scmp.eq.s32.totalorder %s26, 1
      %p68 = por %p66, %p67
      %p70 = scmp.ne.s32.totalorder %s53, %s69
      %p71 = scmp.eq.s32.totalorder %s26, 0
      %p72 = por %p70, %p71
      %s73 = ssub.s32 %s28, %s42
      %p74 = scmp.eq.s32.totalorder %s73, 0
      %s76 = sadd.s32 %s75, 1
      %s77 = scalar_select %p74, %s75, %s76
      %p80 = pneg %p74
      %p81 = scmp.eq.s32.totalorder %s20, 1
      %p82 = por %p80, %p81
      %p83 = scmp.ne.s32.totalorder %s75, %s78
      %p84 = scmp.eq.s32.totalorder %s20, 0
      %p85 = por %p83, %p84
      %p86 = scmp.ne.s32.totalorder %s75, %s78
      %p87 = scmp.eq.s32.totalorder %s25, 1
      %p88 = por %p86, %p87
      %p89 = scmp.ne.s32.totalorder %s78, %s79
      %p90 = scmp.eq.s32.totalorder %s25, 0
      %p91 = por %p89, %p90
      %p92 = scmp.ne.s32.totalorder %s78, %s79
      %p93 = scmp.eq.s32.totalorder %s26, 1
      %p94 = por %p92, %p93
      %p96 = scmp.ne.s32.totalorder %s79, %s95
      %p97 = scmp.eq.s32.totalorder %s26, 0
      %p98 = por %p96, %p97
      %s99 = sadd.s32 %s27, %s29
      %s100 = sadd.s32 %s46, %s38
      %s101 = ssub.s32 %s99, %s100
      %p102 = scmp.eq.s32.totalorder %s101, 0
      %s104 = sadd.s32 %s103, 1
      %s105 = scalar_select %p102, %s103, %s104
      %p108 = pneg %p102
      %p109 = scmp.eq.s32.totalorder %s20, 1
      %p110 = por %p108, %p109
      %p111 = scmp.ne.s32.totalorder %s103, %s106
      %p112 = scmp.eq.s32.totalorder %s20, 0
      %p113 = por %p111, %p112
      %p114 = scmp.ne.s32.totalorder %s103, %s106
      %p115 = scmp.eq.s32.totalorder %s25, 1
      %p116 = por %p114, %p115
      %p117 = scmp.ne.s32.totalorder %s106, %s107
      %p118 = scmp.eq.s32.totalorder %s25, 0
      %p119 = por %p117, %p118
      %p120 = scmp.ne.s32.totalorder %s106, %s107
      %p121 = scmp.eq.s32.totalorder %s26, 1
      %p122 = por %p120, %p121
      %p124 = scmp.ne.s32.totalorder %s107, %s123
      %p125 = scmp.eq.s32.totalorder %s26, 0
      %p126 = por %p124, %p125
      %s128 = sadd.s32 %s127, 1
      %p131 = scmp.eq.s32.totalorder %s20, 1
      %p132 = scmp.ne.s32.totalorder %s127, %s129
      %p133 = scmp.eq.s32.totalorder %s20, 0
      %p134 = por %p132, %p133
      %p135 = scmp.ne.s32.totalorder %s127, %s129
      %p136 = scmp.eq.s32.totalorder %s25, 1
      %p137 = por %p135, %p136
      %p138 = scmp.ne.s32.totalorder %s129, %s130
      %p139 = scmp.eq.s32.totalorder %s25, 0
      %p140 = por %p138, %p139
      %p141 = scmp.ne.s32.totalorder %s129, %s130
      %p142 = scmp.eq.s32.totalorder %s26, 1
      %p143 = por %p141, %p142
      %p145 = scmp.ne.s32.totalorder %s130, %s144
      %p146 = scmp.eq.s32.totalorder %s26, 0
      %p147 = por %p145, %p146
      %s148 = sadd.s32 %s27, %s29
      %s149 = sadd.s32 %s46, %s38
      %s150 = ssub.s32 %s28, %s42
      %s151 = ssub.s32 %s148, %s149
      %s152 = sor.u32 %s150, %s151
      %p153 = scmp.eq.s32.totalorder %s152, 0
      %s155 = sadd.s32 %s154, 1
      %s156 = scalar_select %p153, %s154, %s155
      %p159 = pneg %p153
      %p160 = scmp.eq.s32.totalorder %s20, 1
      %p161 = por %p159, %p160
      %p162 = scmp.ne.s32.totalorder %s154, %s157
      %p163 = scmp.eq.s32.totalorder %s20, 0
      %p164 = por %p162, %p163
      %p165 = scmp.ne.s32.totalorder %s154, %s157
      %p166 = scmp.eq.s32.totalorder %s25, 1
      %p167 = por %p165, %p166
      %p168 = scmp.ne.s32.totalorder %s157, %s158
      %p169 = scmp.eq.s32.totalorder %s25, 0
      %p170 = por %p168, %p169
      %p171 = scmp.ne.s32.totalorder %s157, %s158
      %p172 = scmp.eq.s32.totalorder %s26, 1
      %p173 = por %p171, %p172
      %p175 = scmp.ne.s32.totalorder %s158, %s174
      %p176 = scmp.eq.s32.totalorder %s26, 0
      %p177 = por %p175, %p176
      %s178 = sadd.s32 %s27, %s29
      %s179 = sadd.s32 %s46, %s38
      %s180 = ssub.s32 %s28, %s42
      %s181 = ssub.s32 %s178, %s179
      %s182 = sor.u32 %s180, %s181
      %p183 = scmp.eq.s32.totalorder %s182, 0
      %s185 = sadd.s32 %s184, 1
      %s186 = scalar_select %p183, %s184, %s185
      %p189 = pneg %p183
      %p190 = scmp.eq.s32.totalorder %s20, 1
      %p191 = por %p189, %p190
      %p192 = scmp.ne.s32.totalorder %s184, %s187
      %p193 = scmp.eq.s32.totalorder %s20, 0
      %p194 = por %p192, %p193
      %p195 = scmp.ne.s32.totalorder %s184, %s187
      %p196 = scmp.eq.s32.totalorder %s25, 1
      %p197 = por %p195, %p196
      %p198 = scmp.ne.s32.totalorder %s187, %s188
      %p199 = scmp.eq.s32.totalorder %s25, 0
      %p200 = por %p198, %p199
      %p201 = scmp.ne.s32.totalorder %s187, %s188
      %p202 = scmp.eq.s32.totalorder %s26, 1
      %p203 = por %p201, %p202
      %p205 = scmp.ne.s32.totalorder %s188, %s204
      %p206 = scmp.eq.s32.totalorder %s26, 0
      %p207 = por %p205, %p206
      %s208 = sadd.s32 %s27, %s29
      %s209 = sadd.s32 %s46, %s38
      %s210 = ssub.s32 %s28, %s42
      %s211 = ssub.s32 %s208, %s209
      %s212 = sor.u32 %s210, %s211
      %p213 = scmp.eq.s32.totalorder %s212, 0
      %s215 = sadd.s32 %s214, 1
      %s216 = scalar_select %p213, %s214, %s215
      %p219 = pneg %p213
      %p220 = scmp.eq.s32.totalorder %s20, 1
      %p221 = por %p219, %p220
      %p222 = scmp.ne.s32.totalorder %s214, %s217
      %p223 = scmp.eq.s32.totalorder %s20, 0
      %p224 = por %p222, %p223
      %p225 = scmp.ne.s32.totalorder %s214, %s217
      %p226 = scmp.eq.s32.totalorder %s25, 1
      %p227 = por %p225, %p226
      %p228 = scmp.ne.s32.totalorder %s217, %s218
      %p229 = scmp.eq.s32.totalorder %s25, 0
      %p230 = por %p228, %p229
      %p231 = scmp.ne.s32.totalorder %s217, %s218
      %p232 = scmp.eq.s32.totalorder %s26, 1
      %p233 = por %p231, %p232
      %p235 = scmp.ne.s32.totalorder %s218, %s234
      %p236 = scmp.eq.s32.totalorder %s26, 0
      %p237 = por %p235, %p236
      %s238 = ssub.s32 %s27, %s46
      %s239 = ssub.s32 %s28, %s42
      %s240 = sor.u32 %s238, %s239
      %p241 = scmp.eq.s32.totalorder %s240, 0
      %s243 = sadd.s32 %s242, 1
      %s244 = scalar_select %p241, %s242, %s243
      %p247 = pneg %p241
      %p248 = scmp.eq.s32.totalorder %s20, 1
      %p249 = por %p247, %p248
      %p250 = scmp.ne.s32.totalorder %s242, %s245
      %p251 = scmp.eq.s32.totalorder %s20, 0
      %p252 = por %p250, %p251
      %p253 = scmp.ne.s32.totalorder %s242, %s245
      %p254 = scmp.eq.s32.totalorder %s25, 1
      %p255 = por %p253, %p254
      %p256 = scmp.ne.s32.totalorder %s245, %s246
      %p257 = scmp.eq.s32.totalorder %s25, 0
      %p258 = por %p256, %p257
      %p259 = scmp.ne.s32.totalorder %s245, %s246
      %p260 = scmp.eq.s32.totalorder %s26, 1
      %p261 = por %p259, %p260
      %p263 = scmp.ne.s32.totalorder %s246, %s262
      %p264 = scmp.eq.s32.totalorder %s26, 0
      %p265 = por %p263, %p264
      %s266 = ssub.s32 %s27, %s46
      %s267 = ssub.s32 %s28, %s42
      %s268 = sor.u32 %s266, %s267
      %p269 = scmp.eq.s32.totalorder %s268, 0
      %s271 = sadd.s32 %s270, 1
      %s272 = scalar_select %p269, %s270, %s271
      %p275 = pneg %p269
      %p276 = scmp.eq.s32.totalorder %s20, 1
      %p277 = por %p275, %p276
      %p278 = scmp.ne.s32.totalorder %s270, %s273
      %p279 = scmp.eq.s32.totalorder %s20, 0
      %p280 = por %p278, %p279
      %p281 = scmp.ne.s32.totalorder %s270, %s273
      %p282 = scmp.eq.s32.totalorder %s25, 1
      %p283 = por %p281, %p282
      %p284 = scmp.ne.s32.totalorder %s273, %s274
      %p285 = scmp.eq.s32.totalorder %s25, 0
      %p286 = por %p284, %p285
      %p287 = scmp.ne.s32.totalorder %s273, %s274
      %p288 = scmp.eq.s32.totalorder %s26, 1
      %p289 = por %p287, %p288
      %p291 = scmp.ne.s32.totalorder %s274, %s290
      %p292 = scmp.eq.s32.totalorder %s26, 0
      %p293 = por %p291, %p292
      %s294 = ssub.s32 %s27, %s46
      %s295 = ssub.s32 %s28, %s42
      %s296 = sor.u32 %s294, %s295
      %p297 = scmp.eq.s32.totalorder %s296, 0
      %s299 = sadd.s32 %s298, 1
      %s300 = scalar_select %p297, %s298, %s299
      %p303 = pneg %p297
      %p304 = scmp.eq.s32.totalorder %s20, 1
      %p305 = por %p303, %p304
      %p306 = scmp.ne.s32.totalorder %s298, %s301
      %p307 = scmp.eq.s32.totalorder %s20, 0
      %p308 = por %p306, %p307
      %p309 = scmp.ne.s32.totalorder %s298, %s301
      %p310 = scmp.eq.s32.totalorder %s25, 1
      %p311 = por %p309, %p310
      %p312 = scmp.ne.s32.totalorder %s301, %s302
      %p313 = scmp.eq.s32.totalorder %s25, 0
      %p314 = por %p312, %p313
      %p315 = scmp.ne.s32.totalorder %s301, %s302
      %p316 = scmp.eq.s32.totalorder %s26, 1
      %p317 = por %p315, %p316
      %p319 = scmp.ne.s32.totalorder %s302, %s318
      %p320 = scmp.eq.s32.totalorder %s26, 0
      %p321 = por %p319, %p320
      %s322 = ssub.s32 %s27, %s46
      %s323 = ssub.s32 %s28, %s42
      %s324 = sor.u32 %s322, %s323
      %p325 = scmp.eq.s32.totalorder %s324, 0
      %s327 = sadd.s32 %s326, 1
      %s328 = scalar_select %p325, %s326, %s327
      %p331 = pneg %p325
      %p332 = scmp.eq.s32.totalorder %s20, 1
      %p333 = por %p331, %p332
      %p334 = scmp.ne.s32.totalorder %s326, %s329
      %p335 = scmp.eq.s32.totalorder %s20, 0
      %p336 = por %p334, %p335
      %p337 = scmp.ne.s32.totalorder %s326, %s329
      %p338 = scmp.eq.s32.totalorder %s25, 1
      %p339 = por %p337, %p338
      %p340 = scmp.ne.s32.totalorder %s329, %s330
      %p341 = scmp.eq.s32.totalorder %s25, 0
      %p342 = por %p340, %p341
      %p343 = scmp.ne.s32.totalorder %s329, %s330
      %p344 = scmp.eq.s32.totalorder %s26, 1
      %p345 = por %p343, %p344
      %p347 = scmp.ne.s32.totalorder %s330, %s346
      %p348 = scmp.eq.s32.totalorder %s26, 0
      %p349 = por %p347, %p348
      %p350 = scmp.le.s32.totalorder 1, %s20
      %p351 = scmp.lt.s32.totalorder %s20, 3
      %p352 = pnand %p350, %p351
      %p353 = pneg %p352
      // Predicated region
      $region9: #{segfix_loss.1} parent=5 // pred_check
        _
      $region10: #{segfix_loss.1} parent=5 // pred_check_branch
        %355 = sbr.rel (%p352) target = $region12
      $region11: #{segfix_loss.1} parent=5 // pred_region
        %s356 = ssub.s32 %s20, 1
        // Predicated region
        $region13: #{segfix_loss.1} parent=11 // pred_check
          %p357 = pneg %p119
        $region14: #{segfix_loss.1} parent=11 // pred_check_branch
          %359 = sbr.rel (%p357) target = $region16
        $region15: #{segfix_loss.1} parent=11 // pred_region
          %s360 = sadd.s32 %s30, %s32
          %s361 = smul.u32 4, %s360
          %p362 = scmp.lt.s32.totalorder %s361, 3
          %s363 = scalar_select %p362, %s361, 3
          %s364 = smul.addr %s363, 8
          %s365 = scalar_lea.vmem %s2, %s364
          %s366 = sadd.s32 %s30, %s32
          %s367 = smul.u32 4, %s366
        $region16: #{segfix_loss.1} parent=11 // pred_fallthru
          _
        // Predicated region
        $region17: #{segfix_loss.1} parent=11 // pred_check
          %p368 = pneg %p140
        $region18: #{segfix_loss.1} parent=11 // pred_check_branch
          %370 = sbr.rel (%p368) target = $region20
        $region19: #{segfix_loss.1} parent=11 // pred_region
          _
        $region20: #{segfix_loss.1} parent=11 // pred_fallthru
          _
      $region12: #{segfix_loss.1} parent=5 // pred_fallthru
        _
      %p371 = scmp.lt.s32.totalorder %s20, 2
      // Predicated region
      $region21: #{segfix_loss.1} parent=5 // pred_check
        %p372 = pneg %p371
      $region22: #{segfix_loss.1} parent=5 // pred_check_branch
        %374 = sbr.rel (%p372) target = $region24
      $region23: #{segfix_loss.1} parent=5 // pred_region
        // Predicated region
        $region25: #{segfix_loss.1} parent=23 // pred_check
          %p375 = pneg %p59
        $region26: #{segfix_loss.1} parent=23 // pred_check_branch
          %377 = sbr.rel (%p375) target = $region28
        $region27: #{segfix_loss.1} parent=23 // pred_region
          %p378 = scmp.lt.s32.totalorder %s28, 1
          %s379 = scalar_select %p378, %s28, 1
          %s380 = smul.addr %s379, 4
          %s381 = smul.addr %s380, 8
          %s382 = scalar_lea.vmem %s0, %s381
        $region28: #{segfix_loss.1} parent=23 // pred_fallthru
          _
        // Predicated region
        $region29: #{segfix_loss.1} parent=23 // pred_check
          %p383 = pneg %p85
        $region30: #{segfix_loss.1} parent=23 // pred_check_branch
          %385 = sbr.rel (%p383) target = $region32
        $region31: #{segfix_loss.1} parent=23 // pred_region
          %s386 = sand.u32 %s75, 1
          %s387 = scalar_lea.sflag [#allocation3], %s386
          %s388 = sand.u32 %s75, 1
          %s389 = smul.addr %s388, 128
          %s390 = scalar_lea.vmem [#allocation2], %s389
          %392 = vsyncadd %s387, 0
          %s393 = smul.addr %s28, 16
          %s394 = smul.addr %s393, 8
          %s395 = scalar_lea.hbm %s1, %s394
          %s396 = sshll.u32 %s395, 4
          %s397 = int_to_ptr.hbm [resolvable:$true] %s396
          %s398 = sshll.u32 %s390, 4
          %s399 = int_to_ptr.vmem [resolvable:$true] %s398
          %404 = dma.hbm_to_vmem [thread:$0]  %s397, 2048, %s399, %s387, 128, 128, 8
        $region32: #{segfix_loss.1} parent=23 // pred_fallthru
          _
        // Predicated region
        $region33: #{segfix_loss.1} parent=23 // pred_check
          %p405 = pneg %p164
        $region34: #{segfix_loss.1} parent=23 // pred_check_branch
          %407 = sbr.rel (%p405) target = $region36
        $region35: #{segfix_loss.1} parent=23 // pred_region
          %s408 = sadd.s32 %s27, %s29
          %s409 = smul.u32 4, %s408
          %p410 = scmp.lt.s32.totalorder %s28, 1
          %s411 = scalar_select %p410, %s28, 1
          %p412 = scmp.lt.s32.totalorder %s409, 3
          %s413 = scalar_select %p412, %s409, 3
          %s414 = smul.addr %s411, 4
          %s415 = sadd.s32 %s413, %s414
          %s416 = smul.addr %s415, 8
          %s417 = scalar_lea.vmem %s4, %s416
          %s418 = sadd.s32 %s27, %s29
          %s419 = smul.u32 4, %s418
        $region36: #{segfix_loss.1} parent=23 // pred_fallthru
          _
        // Predicated region
        $region37: #{segfix_loss.1} parent=23 // pred_check
          %p420 = pneg %p194
        $region38: #{segfix_loss.1} parent=23 // pred_check_branch
          %422 = sbr.rel (%p420) target = $region40
        $region39: #{segfix_loss.1} parent=23 // pred_region
          %s423 = sadd.s32 %s27, %s29
          %s424 = smul.u32 4, %s423
          %p425 = scmp.lt.s32.totalorder %s28, 1
          %s426 = scalar_select %p425, %s28, 1
          %p427 = scmp.lt.s32.totalorder %s424, 3
          %s428 = scalar_select %p427, %s424, 3
          %s429 = smul.addr %s426, 4
          %s430 = sadd.s32 %s428, %s429
          %s431 = smul.addr %s430, 4
          %s432 = scalar_lea.vmem %s5, %s431
          %s433 = sadd.s32 %s27, %s29
          %s434 = smul.u32 4, %s433
        $region40: #{segfix_loss.1} parent=23 // pred_fallthru
          _
        // Predicated region
        $region41: #{segfix_loss.1} parent=23 // pred_check
          %p435 = pneg %p224
        $region42: #{segfix_loss.1} parent=23 // pred_check_branch
          %437 = sbr.rel (%p435) target = $region44
        $region43: #{segfix_loss.1} parent=23 // pred_region
          %s438 = sadd.s32 %s27, %s29
          %s439 = smul.u32 4, %s438
          %p440 = scmp.lt.s32.totalorder %s28, 1
          %s441 = scalar_select %p440, %s28, 1
          %p442 = scmp.lt.s32.totalorder %s439, 3
          %s443 = scalar_select %p442, %s439, 3
          %s444 = smul.addr %s441, 4
          %s445 = sadd.s32 %s443, %s444
          %s446 = smul.addr %s445, 4
          %s447 = scalar_lea.vmem %s6, %s446
          %s448 = sadd.s32 %s27, %s29
          %s449 = smul.u32 4, %s448
        $region44: #{segfix_loss.1} parent=23 // pred_fallthru
          _
      $region24: #{segfix_loss.1} parent=5 // pred_fallthru
        _
      %p450 = scmp.le.s32.totalorder 1, %s20
      %p451 = scmp.lt.s32.totalorder %s20, 3
      %p452 = pnand %p450, %p451
      %p453 = pneg %p452
      // Predicated region
      $region45: #{segfix_loss.1} parent=5 // pred_check
        _
      $region46: #{segfix_loss.1} parent=5 // pred_check_branch
        %455 = sbr.rel (%p452) target = $region48
      $region47: #{segfix_loss.1} parent=5 // pred_region
        %s456 = ssub.s32 %s20, 1
        %s457 = sand.u32 %s78, 1
        %s458 = scalar_lea.sflag [#allocation3], %s457
        %s459 = sand.u32 %s78, 1
        %s460 = smul.addr %s459, 128
        %s461 = scalar_lea.vmem [#allocation2], %s460
        // Predicated region
        $region49: #{segfix_loss.1} parent=47 // pred_check
          %p462 = pneg %p91
        $region50: #{segfix_loss.1} parent=47 // pred_check_branch
          %464 = sbr.rel (%p462) target = $region52
        $region51: #{segfix_loss.1} parent=47 // pred_region
          %466 = dma.done %s458, 2048
        $region52: #{segfix_loss.1} parent=47 // pred_fallthru
          _
        %p467 = scmp.lt.s32.totalorder %s31, 1
        %s468 = scalar_select %p467, %s31, 1
        %s469 = smul.addr %s468, 4
        %s470 = smul.addr %s469, 8
        %s471 = scalar_lea.vmem %s0, %s470
        %p472 = pneg %p65
        %p473 = pneg %p62
        %s474 = sand.u32 %s78, 1
        %s475 = scalar_lea.sflag [#allocation3], %s474
        %s476 = sand.u32 %s78, 1
        %s477 = smul.addr %s476, 128
        %s478 = scalar_lea.vmem [#allocation2], %s477
        %p479 = pneg %p91
        %p480 = pneg %p88
        %s481 = sadd.s32 %s30, %s32
        %s482 = smul.u32 4, %s481
        %p483 = scmp.lt.s32.totalorder %s482, 3
        %s484 = scalar_select %p483, %s482, 3
        %s485 = smul.addr %s484, 8
        %s486 = scalar_lea.vmem %s2, %s485
        %p487 = pneg %p119
        %p488 = pneg %p116
        %p489 = pneg %p140
        %p490 = pneg %p137
        %s491 = sadd.s32 %s30, %s32
        %s492 = smul.u32 4, %s491
        %p493 = scmp.lt.s32.totalorder %s31, 1
        %s494 = scalar_select %p493, %s31, 1
        %p495 = scmp.lt.s32.totalorder %s492, 3
        %s496 = scalar_select %p495, %s492, 3
        %s497 = smul.addr %s494, 4
        %s498 = sadd.s32 %s496, %s497
        %s499 = smul.addr %s498, 8
        %s500 = scalar_lea.vmem %s4, %s499
        %p501 = pneg %p170
        %p502 = pneg %p167
        %s503 = sadd.s32 %s30, %s32
        %s504 = smul.u32 4, %s503
        %p505 = scmp.lt.s32.totalorder %s31, 1
        %s506 = scalar_select %p505, %s31, 1
        %p507 = scmp.lt.s32.totalorder %s504, 3
        %s508 = scalar_select %p507, %s504, 3
        %s509 = smul.addr %s506, 4
        %s510 = sadd.s32 %s508, %s509
        %s511 = smul.addr %s510, 4
        %s512 = scalar_lea.vmem %s5, %s511
        %p513 = pneg %p200
        %p514 = pneg %p197
        %s515 = sadd.s32 %s30, %s32
        %s516 = smul.u32 4, %s515
        %p517 = scmp.lt.s32.totalorder %s31, 1
        %s518 = scalar_select %p517, %s31, 1
        %p519 = scmp.lt.s32.totalorder %s516, 3
        %s520 = scalar_select %p519, %s516, 3
        %s521 = smul.addr %s518, 4
        %s522 = sadd.s32 %s520, %s521
        %s523 = smul.addr %s522, 4
        %s524 = scalar_lea.vmem %s6, %s523
        %p525 = pneg %p230
        %p526 = pneg %p227
        %p527 = pneg %p258
        %p528 = pneg %p255
        %p529 = scmp.lt.s32.totalorder %s30, 0
        %s530 = scalar_select %p529, %s30, 0
        %p531 = scmp.lt.s32.totalorder %s31, 1
        %s532 = scalar_select %p531, %s31, 1
        %s533 = smul.addr %s530, 2
        %s534 = sadd.s32 %s532, %s533
        %s535 = smul.addr %s534, 2
        %s536 = scalar_lea.vmem %s7, %s535
        %p537 = pneg %p286
        %p538 = pneg %p283
        %p539 = scmp.lt.s32.totalorder %s30, 0
        %s540 = scalar_select %p539, %s30, 0
        %p541 = scmp.lt.s32.totalorder %s31, 1
        %s542 = scalar_select %p541, %s31, 1
        %s543 = smul.addr %s540, 2
        %s544 = sadd.s32 %s542, %s543
        %s545 = smul.addr %s544, 2
        %s546 = scalar_lea.vmem %s8, %s545
        %p547 = pneg %p314
        %p548 = pneg %p311
        %p549 = scmp.lt.s32.totalorder %s30, 0
        %s550 = scalar_select %p549, %s30, 0
        %p551 = scmp.lt.s32.totalorder %s31, 1
        %s552 = scalar_select %p551, %s31, 1
        %s553 = smul.addr %s550, 2
        %s554 = sadd.s32 %s552, %s553
        %s555 = smul.addr %s554, 8
        %s556 = scalar_lea.vmem %s9, %s555
        %p557 = pneg %p342
        %p558 = pneg %p339
        %p559 = scmp.lt.s32.totalorder %s30, 0
        %s560 = scalar_select %p559, %s30, 0
        %p561 = scmp.lt.s32.totalorder %s31, 1
        %s562 = scalar_select %p561, %s31, 1
        %s563 = smul.addr %s560, 2
        %s564 = sadd.s32 %s562, %s563
        %s565 = smul.addr %s564, 8
        %s566 = scalar_lea.vmem %s10, %s565
        %p567 = scmp.lt.s32.totalorder %s31, 1
        %s568 = scalar_select %p567, %s31, 1
        %s569 = smul.addr %s568, 4
        %s570 = smul.addr %s569, 8
        %s571 = scalar_lea.vmem %s0, %s570
        %s572 = sadd.s32 %s30, %s32
        %s573 = smul.u32 4, %s572
        %p574 = scmp.lt.s32.totalorder %s573, 3
        %s575 = scalar_select %p574, %s573, 3
        %s576 = smul.addr %s575, 8
        %s577 = scalar_lea.vmem %s2, %s576
        %s578 = sadd.s32 %s30, %s32
        %s579 = smul.u32 4, %s578
        %s580 = sadd.s32 %s30, %s32
        %s581 = smul.u32 4, %s580
        %p582 = scmp.lt.s32.totalorder %s31, 1
        %s583 = scalar_select %p582, %s31, 1
        %p584 = scmp.lt.s32.totalorder %s581, 3
        %s585 = scalar_select %p584, %s581, 3
        %s586 = smul.addr %s583, 4
        %s587 = sadd.s32 %s585, %s586
        %s588 = smul.addr %s587, 8
        %s589 = scalar_lea.vmem %s4, %s588
        %s590 = sadd.s32 %s30, %s32
        %s591 = smul.u32 4, %s590
        %s592 = sadd.s32 %s30, %s32
        %s593 = smul.u32 4, %s592
        %p594 = scmp.lt.s32.totalorder %s31, 1
        %s595 = scalar_select %p594, %s31, 1
        %p596 = scmp.lt.s32.totalorder %s593, 3
        %s597 = scalar_select %p596, %s593, 3
        %s598 = smul.addr %s595, 4
        %s599 = sadd.s32 %s597, %s598
        %s600 = smul.addr %s599, 4
        %s601 = scalar_lea.vmem %s5, %s600
        %s602 = sadd.s32 %s30, %s32
        %s603 = smul.u32 4, %s602
        %s604 = sadd.s32 %s30, %s32
        %s605 = smul.u32 4, %s604
        %p606 = scmp.lt.s32.totalorder %s31, 1
        %s607 = scalar_select %p606, %s31, 1
        %p608 = scmp.lt.s32.totalorder %s605, 3
        %s609 = scalar_select %p608, %s605, 3
        %s610 = smul.addr %s607, 4
        %s611 = sadd.s32 %s609, %s610
        %s612 = smul.addr %s611, 4
        %s613 = scalar_lea.vmem %s6, %s612
        %s614 = sadd.s32 %s30, %s32
        %s615 = smul.u32 4, %s614
        %p616 = scmp.lt.s32.totalorder %s30, 0
        %s617 = scalar_select %p616, %s30, 0
        %p618 = scmp.lt.s32.totalorder %s31, 1
        %s619 = scalar_select %p618, %s31, 1
        %s620 = smul.addr %s617, 2
        %s621 = sadd.s32 %s619, %s620
        %s622 = smul.addr %s621, 2
        %s623 = scalar_lea.vmem %s7, %s622
        %p624 = scmp.lt.s32.totalorder %s30, 0
        %s625 = scalar_select %p624, %s30, 0
        %p626 = scmp.lt.s32.totalorder %s31, 1
        %s627 = scalar_select %p626, %s31, 1
        %s628 = smul.addr %s625, 2
        %s629 = sadd.s32 %s627, %s628
        %s630 = smul.addr %s629, 2
        %s631 = scalar_lea.vmem %s8, %s630
        %p632 = scmp.lt.s32.totalorder %s30, 0
        %s633 = scalar_select %p632, %s30, 0
        %p634 = scmp.lt.s32.totalorder %s31, 1
        %s635 = scalar_select %p634, %s31, 1
        %s636 = smul.addr %s633, 2
        %s637 = sadd.s32 %s635, %s636
        %s638 = smul.addr %s637, 8
        %s639 = scalar_lea.vmem %s9, %s638
        %p640 = scmp.lt.s32.totalorder %s30, 0
        %s641 = scalar_select %p640, %s30, 0
        %p642 = scmp.lt.s32.totalorder %s31, 1
        %s643 = scalar_select %p642, %s31, 1
        %s644 = smul.addr %s641, 2
        %s645 = sadd.s32 %s643, %s644
        %s646 = smul.addr %s645, 8
        %s647 = scalar_lea.vmem %s10, %s646
        %p648 = scmp.eq.s32.totalorder %s32, 0
        // Predicated region
        $region53: #{segfix_loss.1} parent=47 // pred_check
          %p649 = pneg %p648
        $region54: #{segfix_loss.1} parent=47 // pred_check_branch
          %651 = sbr.rel (%p649) target = $region56
        $region55: #{segfix_loss.1} parent=47 // pred_region
          %vm652 = vcmask 254976
          %653 = vst.msk [vmem:[%s623] sm:$0x3] %vm652, 0.0
          %654 = vst.msk [vmem:[%s631] sm:$0x3] %vm652, 0.0
          %vm655 = vcmask 261120
          %656 = vst.msk [vmem:[%s639] sm:$0xff] %vm655, 0.0
          %657 = vst.msk [vmem:[%s647] sm:$0xff] %vm655, 0.0
        $region56: #{segfix_loss.1} parent=47 // pred_fallthru
          _
        %v658 = vld [vmem:[%s577] sm:$0xff]
        %v659 = vld [vmem:[%s577 + $0x8] sm:$0xff]
        %v660 = vld [vmem:[%s577 + $0x10] sm:$0xff]
        %v661 = vld [vmem:[%s577 + $0x18] sm:$0xff]
        %v662 = vld [vmem:[%s3] sm:$0xff]
        %v663 = vld [vmem:[%s3 + $0x8] sm:$0xff]
        %v664 = vld [vmem:[%s571] sm:$0xff]
        %v665 = vld [vmem:[%s571 + $0x8] sm:$0xff]
        %vm666 = vcmask 130048
        %v668 = vsel %vm666, %v658, 0
        %v671 = vsel %vm666, %v659, 0
        %v674 = vsel %vm666, %v660, 0
        %v677 = vsel %vm666, %v661, 0
        %679 = vmatpush.msra.mxu0 0.0
        %680 = vmatpush.msra.mxu0 0.0
        %681 = vmatpush.msra.mxu0 0.0
        %682 = vmatpush.msra.mxu0 0.0
        %683 = vmatpush.msra.mxu0 0.0
        %684 = vmatpush.msra.mxu0 0.0
        %685 = vmatpush.msra.mxu0 0.0
        %686 = vmatpush.msra.mxu0 0.0
        %687 = vmatpush.msra.mxu0 0.0
        %688 = vmatpush.msra.mxu0 0.0
        %689 = vmatpush.msra.mxu0 0.0
        %690 = vmatpush.msra.mxu0 0.0
        %691 = vmatpush.msra.mxu0 0.0
        %692 = vmatpush.msra.mxu0 0.0
        %693 = vmatpush.msra.mxu0 %v665
        %694 = vmatpush.msra.mxu0 %v664
        %695 = vmatmul.f32.gmra.mxu0 %v668
        %v696 = vpop.f32.mrf.mxu0
        %v697 = vadd.f32 0.0, %v696
        %698 = vmatmul.f32.gmra.mxu0 %v671
        %v699 = vpop.f32.mrf.mxu0
        %v700 = vadd.f32 0.0, %v699
        %701 = vmatmul.f32.gmra.mxu0 %v674
        %v702 = vpop.f32.mrf.mxu0
        %v703 = vadd.f32 0.0, %v702
        %704 = vmatmul.f32.gmra.mxu0 %v677
        %v705 = vpop.f32.mrf.mxu0
        %v706 = vadd.f32 0.0, %v705
        %707 = vdwg.mxu0
        %v709 = vsel %vm666, %v697, 0
        %v712 = vsel %vm666, %v700, 0
        %v715 = vsel %vm666, %v703, 0
        %v718 = vsel %vm666, %v706, 0
        %720 = vmatpush.msra.mxu0 0.0
        %721 = vmatpush.msra.mxu0 0.0
        %722 = vmatpush.msra.mxu0 0.0
        %723 = vmatpush.msra.mxu0 0.0
        %724 = vmatpush.msra.mxu0 0.0
        %725 = vmatpush.msra.mxu0 0.0
        %726 = vmatpush.msra.mxu0 0.0
        %727 = vmatpush.msra.mxu0 0.0
        %728 = vmatpush.msra.mxu0 0.0
        %729 = vmatpush.msra.mxu0 0.0
        %730 = vmatpush.msra.mxu0 0.0
        %731 = vmatpush.msra.mxu0 0.0
        %732 = vmatpush.msra.mxu0 0.0
        %733 = vmatpush.msra.mxu0 0.0
        %734 = vmatpush.msra.mxu0 %v663
        %735 = vmatpush.msra.mxu0 %v662
        %736 = vmatmul.f32.gmra.mxu0 %v709
        %v737 = vpop.f32.mrf.mxu0
        %v738 = vadd.f32 0.0, %v737
        %739 = vmatmul.f32.gmra.mxu0 %v712
        %v740 = vpop.f32.mrf.mxu0
        %v741 = vadd.f32 0.0, %v740
        %742 = vmatmul.f32.gmra.mxu0 %v715
        %v743 = vpop.f32.mrf.mxu0
        %v744 = vadd.f32 0.0, %v743
        %745 = vmatmul.f32.gmra.mxu0 %v718
        %v746 = vpop.f32.mrf.mxu0
        %v747 = vadd.f32 0.0, %v746
        %748 = vdwg.mxu0
        %s749 = scalar_lea.vmem %s571, 16
        %v750 = vld [vmem:[%s749] sm:$0xff]
        %v751 = vld [vmem:[%s749 + $0x8] sm:$0xff]
        %752 = vmatpush.msra.mxu0 0.0
        %753 = vmatpush.msra.mxu0 0.0
        %754 = vmatpush.msra.mxu0 0.0
        %755 = vmatpush.msra.mxu0 0.0
        %756 = vmatpush.msra.mxu0 0.0
        %757 = vmatpush.msra.mxu0 0.0
        %758 = vmatpush.msra.mxu0 0.0
        %759 = vmatpush.msra.mxu0 0.0
        %760 = vmatpush.msra.mxu0 0.0
        %761 = vmatpush.msra.mxu0 0.0
        %762 = vmatpush.msra.mxu0 0.0
        %763 = vmatpush.msra.mxu0 0.0
        %764 = vmatpush.msra.mxu0 0.0
        %765 = vmatpush.msra.mxu0 0.0
        %766 = vmatpush.msra.mxu0 %v751
        %767 = vmatpush.msra.mxu0 %v750
        %768 = vmatmul.f32.gmra.mxu0 %v668
        %v769 = vpop.f32.mrf.mxu0
        %v770 = vadd.f32 0.0, %v769
        %771 = vmatmul.f32.gmra.mxu0 %v671
        %v772 = vpop.f32.mrf.mxu0
        %v773 = vadd.f32 0.0, %v772
        %774 = vmatmul.f32.gmra.mxu0 %v674
        %v775 = vpop.f32.mrf.mxu0
        %v776 = vadd.f32 0.0, %v775
        %777 = vmatmul.f32.gmra.mxu0 %v677
        %v778 = vpop.f32.mrf.mxu0
        %v779 = vadd.f32 0.0, %v778
        %780 = vdwg.mxu0
        %v782 = vsel %vm666, %v770, 0
        %v785 = vsel %vm666, %v773, 0
        %v788 = vsel %vm666, %v776, 0
        %v791 = vsel %vm666, %v779, 0
        %793 = vmatpush.msra.mxu0 0.0
        %794 = vmatpush.msra.mxu0 0.0
        %795 = vmatpush.msra.mxu0 0.0
        %796 = vmatpush.msra.mxu0 0.0
        %797 = vmatpush.msra.mxu0 0.0
        %798 = vmatpush.msra.mxu0 0.0
        %799 = vmatpush.msra.mxu0 0.0
        %800 = vmatpush.msra.mxu0 0.0
        %801 = vmatpush.msra.mxu0 0.0
        %802 = vmatpush.msra.mxu0 0.0
        %803 = vmatpush.msra.mxu0 0.0
        %804 = vmatpush.msra.mxu0 0.0
        %805 = vmatpush.msra.mxu0 0.0
        %806 = vmatpush.msra.mxu0 0.0
        %807 = vmatpush.msra.mxu0 %v663
        %808 = vmatpush.msra.mxu0 %v662
        %809 = vmatmul.f32.gmra.mxu0 %v782
        %v810 = vpop.f32.mrf.mxu0
        %v811 = vadd.f32 0.0, %v810
        %812 = vmatmul.f32.gmra.mxu0 %v785
        %v813 = vpop.f32.mrf.mxu0
        %v814 = vadd.f32 0.0, %v813
        %815 = vmatmul.f32.gmra.mxu0 %v788
        %v816 = vpop.f32.mrf.mxu0
        %v817 = vadd.f32 0.0, %v816
        %818 = vmatmul.f32.gmra.mxu0 %v791
        %v819 = vpop.f32.mrf.mxu0
        %v820 = vadd.f32 0.0, %v819
        %821 = vdwg.mxu0
        %v822 = vld [vmem:[%s589] sm:$0xff]
        %v823 = vld [vmem:[%s589 + $0x8] sm:$0xff]
        %v824 = vld [vmem:[%s589 + $0x10] sm:$0xff]
        %v825 = vld [vmem:[%s589 + $0x18] sm:$0xff]
        %v826 = vld [vmem:[%s601] sm:$0xf]
        %v827 = vld [vmem:[%s601 + $0x4] sm:$0xf]
        %v828 = vld [vmem:[%s601 + $0x8] sm:$0xf]
        %v829 = vld [vmem:[%s601 + $0xc] sm:$0xf]
        %v830 = vunpack.c.l.bf16 %v826
        %v831 = vunpack.c.l.bf16 %v827
        %v832 = vunpack.c.l.bf16 %v828
        %v833 = vunpack.c.l.bf16 %v829
        %v834 = vld [vmem:[%s613] sm:$0xf]
        %v835 = vld [vmem:[%s613 + $0x4] sm:$0xf]
        %v836 = vld [vmem:[%s613 + $0x8] sm:$0xf]
        %v837 = vld [vmem:[%s613 + $0xc] sm:$0xf]
        %v838 = vunpack.c.l.bf16 %v834
        %v839 = vunpack.c.l.bf16 %v835
        %v840 = vunpack.c.l.bf16 %v836
        %v841 = vunpack.c.l.bf16 %v837
        %vm842 = vcmp.ne.s32.totalorder %v822, 4294967295
        %vm843 = vcmp.ne.s32.totalorder %v823, 4294967295
        %vm844 = vcmp.ne.s32.totalorder %v824, 4294967295
        %vm845 = vcmp.ne.s32.totalorder %v825, 4294967295
        %vm846 = vcmp.ge.f32.partialorder %v830, 0.0
        %vm847 = vcmp.ge.f32.partialorder %v831, 0.0
        %vm848 = vcmp.ge.f32.partialorder %v832, 0.0
        %vm849 = vcmp.ge.f32.partialorder %v833, 0.0
        %vm850 = vcmp.le.f32.partialorder %v830, 5.0
        %vm851 = vcmp.le.f32.partialorder %v831, 5.0
        %vm852 = vcmp.le.f32.partialorder %v832, 5.0
        %vm853 = vcmp.le.f32.partialorder %v833, 5.0
        %vm854 = vmand %vm846, %vm850
        %vm855 = vmand %vm847, %vm851
        %vm856 = vmand %vm848, %vm852
        %vm857 = vmand %vm849, %vm853
        %v858 = vsel %vm854, 1, 0
        %v859 = vsel %vm855, 1, 0
        %v860 = vsel %vm856, 1, 0
        %v861 = vsel %vm857, 1, 0
        %v862 = vsel %vm842, %v858, 4294967295
        %v863 = vsel %vm843, %v859, 4294967295
        %v864 = vsel %vm844, %v860, 4294967295
        %v865 = vsel %vm845, %v861, 4294967295
        %vm866 = vcmp.gt.f32.partialorder %v811, %v738
        %vm867 = vcmp.gt.f32.partialorder %v814, %v741
        %vm868 = vcmp.gt.f32.partialorder %v817, %v744
        %vm869 = vcmp.gt.f32.partialorder %v820, %v747
        %v870 = vadd.f32 %v838, 157.5
        %v871 = vadd.f32 %v839, 157.5
        %v872 = vadd.f32 %v840, 157.5
        %v873 = vadd.f32 %v841, 157.5
        %v874 = vmul.f32 %v870, 0.022222223
        %v875 = vmul.f32 %v871, 0.022222223
        %v876 = vmul.f32 %v872, 0.022222223
        %v877 = vmul.f32 %v873, 0.022222223
        %v878 = vceil.f32 %v874
        %v879 = vceil.f32 %v875
        %v880 = vceil.f32 %v876
        %v881 = vceil.f32 %v877
        %v882 = vcvt.f32.s32.to.zero.pseudo %v878
        %v883 = vcvt.f32.s32.to.zero.pseudo %v879
        %v884 = vcvt.f32.s32.to.zero.pseudo %v880
        %v885 = vcvt.f32.s32.to.zero.pseudo %v881
        %vm886 = vcmp.ge.s32.totalorder %v882, 8
        %vm887 = vcmp.ge.s32.totalorder %v883, 8
        %vm888 = vcmp.ge.s32.totalorder %v884, 8
        %vm889 = vcmp.ge.s32.totalorder %v885, 8
        %v890 = vsub.s32 %v882, 8
        %v891 = vsub.s32 %v883, 8
        %v892 = vsub.s32 %v884, 8
        %v893 = vsub.s32 %v885, 8
        %v894 = vsel %vm886, %v890, %v882
        %v895 = vsel %vm887, %v891, %v883
        %v896 = vsel %vm888, %v892, %v884
        %v897 = vsel %vm889, %v893, %v885
        %vm898 = vcmp.gt.s32.totalorder %v894, 0
        %v899 = vsel %vm898, %v894, 0
        %vm900 = vcmp.gt.s32.totalorder %v895, 0
        %v901 = vsel %vm900, %v895, 0
        %vm902 = vcmp.gt.s32.totalorder %v896, 0
        %v903 = vsel %vm902, %v896, 0
        %vm904 = vcmp.gt.s32.totalorder %v897, 0
        %v905 = vsel %vm904, %v897, 0
        %vm906 = vmand %vm842, %vm866
        %vm907 = vmand %vm843, %vm867
        %vm908 = vmand %vm844, %vm868
        %vm909 = vmand %vm845, %vm869
        %v910 = vsel %vm906, %v899, 4294967295
        %v911 = vsel %vm907, %v901, 4294967295
        %v912 = vsel %vm908, %v903, 4294967295
        %v913 = vsel %vm909, %v905, 4294967295
        %v914 = vmax.f32 %v738, %v811
        %v915 = vmax.f32 %v741, %v814
        %v916 = vmax.f32 %v744, %v817
        %v917 = vmax.f32 %v747, %v820
        %v918 = vsub.f32 %v738, %v914
        %v919 = vsub.f32 %v741, %v915
        %v920 = vsub.f32 %v744, %v916
        %v921 = vsub.f32 %v747, %v917
        %v922 = vmul.f32 %v918, 1.442695
        %v923 = vpow.pop %v922
        %v924 = vmul.f32 %v919, 1.442695
        %v925 = vpow.pop %v924
        %v926 = vmul.f32 %v920, 1.442695
        %v927 = vpow.pop %v926
        %v928 = vmul.f32 %v921, 1.442695
        %v929 = vpow.pop %v928
        %v930 = vadd.f32 %v923, 0.0
        %v931 = vadd.f32 %v925, 0.0
        %v932 = vadd.f32 %v927, 0.0
        %v933 = vadd.f32 %v929, 0.0
        %v934 = vsub.f32 %v811, %v914
        %v935 = vsub.f32 %v814, %v915
        %v936 = vsub.f32 %v817, %v916
        %v937 = vsub.f32 %v820, %v917
        %v938 = vmul.f32 %v934, 1.442695
        %v939 = vpow.pop %v938
        %v940 = vmul.f32 %v935, 1.442695
        %v941 = vpow.pop %v940
        %v942 = vmul.f32 %v936, 1.442695
        %v943 = vpow.pop %v942
        %v944 = vmul.f32 %v937, 1.442695
        %v945 = vpow.pop %v944
        %v946 = vadd.f32 %v930, %v939
        %v947 = vadd.f32 %v931, %v941
        %v948 = vadd.f32 %v932, %v943
        %v949 = vadd.f32 %v933, %v945
        %v950 = vlog2.pop %v946
        %v951 = vmul.f32 %v950, 0.6931472
        %v952 = vlog2.pop %v947
        %v953 = vmul.f32 %v952, 0.6931472
        %v954 = vlog2.pop %v948
        %v955 = vmul.f32 %v954, 0.6931472
        %v956 = vlog2.pop %v949
        %v957 = vmul.f32 %v956, 0.6931472
        %v958 = vadd.f32 %v951, %v914
        %v959 = vadd.f32 %v953, %v915
        %v960 = vadd.f32 %v955, %v916
        %v961 = vadd.f32 %v957, %v917
        %vm962 = vcmp.eq.s32.totalorder %v862, 0
        %vm963 = vcmp.eq.s32.totalorder %v863, 0
        %vm964 = vcmp.eq.s32.totalorder %v864, 0
        %vm965 = vcmp.eq.s32.totalorder %v865, 0
        %v966 = vsel %vm962, %v738, 0.0
        %v967 = vsel %vm963, %v741, 0.0
        %v968 = vsel %vm964, %v744, 0.0
        %v969 = vsel %vm965, %v747, 0.0
        %vm970 = vcmp.eq.s32.totalorder %v862, 1
        %vm971 = vcmp.eq.s32.totalorder %v863, 1
        %vm972 = vcmp.eq.s32.totalorder %v864, 1
        %vm973 = vcmp.eq.s32.totalorder %v865, 1
        %v974 = vsel %vm970, %v811, %v966
        %v975 = vsel %vm971, %v814, %v967
        %v976 = vsel %vm972, %v817, %v968
        %v977 = vsel %vm973, %v820, %v969
        %v978 = vsub.f32 %v958, %v974
        %v979 = vsub.f32 %v959, %v975
        %v980 = vsub.f32 %v960, %v976
        %v981 = vsub.f32 %v961, %v977
        %v982 = vld [vmem:[%s623] sm:$0x1]
        %v983 = vsel %vm962, %v978, 0.0
        %v984 = vsel %vm963, %v979, 0.0
        %v985 = vsel %vm964, %v980, 0.0
        %v986 = vsel %vm965, %v981, 0.0
        %vm987 = vcmask 261120
        %v988 = vsel %vm987, %v983, 0.0
        %v989 = vsel %vm987, %v984, 0.0
        %v990 = vadd.f32 %v988, %v989
        %v991 = vsel %vm987, %v985, 0.0
        %v992 = vadd.f32 %v990, %v991
        %v993 = vsel %vm987, %v986, 0.0
        %v994 = vadd.f32 %v992, %v993
        %v995 = vrot.slane %v994, 4
        %v996 = vadd.f32 %v994, %v995
        %v997 = vrot.slane %v996, 2
        %v998 = vadd.f32 %v996, %v997
        %v999 = vrot.slane %v998, 1
        %v1000 = vadd.f32 %v998, %v999
        %v1001 = vadd.f32 %v982, %v1000
        %vm1002 = vcmask 253952
        %1003 = vst.msk [vmem:[%s623] sm:$0x1] %vm1002, %v1001
        %v1004 = vld [vmem:[%s631] sm:$0x1]
        %v1005 = vsel %vm962, 1, 0
        %v1006 = vsel %vm963, 1, 0
        %v1007 = vsel %vm964, 1, 0
        %v1008 = vsel %vm965, 1, 0
        %v1009 = vcvt.s32.f32 %v1005
        %v1010 = vcvt.s32.f32 %v1006
        %v1011 = vcvt.s32.f32 %v1007
        %v1012 = vcvt.s32.f32 %v1008
        %v1013 = vsel %vm987, %v1009, 0.0
        %v1014 = vsel %vm987, %v1010, 0.0
        %v1015 = vadd.f32 %v1013, %v1014
        %v1016 = vsel %vm987, %v1011, 0.0
        %v1017 = vadd.f32 %v1015, %v1016
        %v1018 = vsel %vm987, %v1012, 0.0
        %v1019 = vadd.f32 %v1017, %v1018
        %v1020 = vrot.slane %v1019, 4
        %v1021 = vadd.f32 %v1019, %v1020
        %v1022 = vrot.slane %v1021, 2
        %v1023 = vadd.f32 %v1021, %v1022
        %v1024 = vrot.slane %v1023, 1
        %v1025 = vadd.f32 %v1023, %v1024
        %v1026 = vadd.f32 %v1004, %v1025
        %1027 = vst.msk [vmem:[%s631] sm:$0x1] %vm1002, %v1026
        %v1028 = vld [vmem:[%s623 + $0x1] sm:$0x1]
        %v1029 = vsel %vm970, %v978, 0.0
        %v1030 = vsel %vm971, %v979, 0.0
        %v1031 = vsel %vm972, %v980, 0.0
        %v1032 = vsel %vm973, %v981, 0.0
        %v1033 = vsel %vm987, %v1029, 0.0
        %v1034 = vsel %vm987, %v1030, 0.0
        %v1035 = vadd.f32 %v1033, %v1034
        %v1036 = vsel %vm987, %v1031, 0.0
        %v1037 = vadd.f32 %v1035, %v1036
        %v1038 = vsel %vm987, %v1032, 0.0
        %v1039 = vadd.f32 %v1037, %v1038
        %v1040 = vrot.slane %v1039, 4
        %v1041 = vadd.f32 %v1039, %v1040
        %v1042 = vrot.slane %v1041, 2
        %v1043 = vadd.f32 %v1041, %v1042
        %v1044 = vrot.slane %v1043, 1
        %v1045 = vadd.f32 %v1043, %v1044
        %v1046 = vadd.f32 %v1028, %v1045
        %1047 = vst.msk [vmem:[%s623 + $0x1] sm:$0x1] %vm1002, %v1046
        %v1048 = vld [vmem:[%s631 + $0x1] sm:$0x1]
        %v1049 = vsel %vm970, 1, 0
        %v1050 = vsel %vm971, 1, 0
        %v1051 = vsel %vm972, 1, 0
        %v1052 = vsel %vm973, 1, 0
        %v1053 = vcvt.s32.f32 %v1049
        %v1054 = vcvt.s32.f32 %v1050
        %v1055 = vcvt.s32.f32 %v1051
        %v1056 = vcvt.s32.f32 %v1052
        %v1057 = vsel %vm987, %v1053, 0.0
        %v1058 = vsel %vm987, %v1054, 0.0
        %v1059 = vadd.f32 %v1057, %v1058
        %v1060 = vsel %vm987, %v1055, 0.0
        %v1061 = vadd.f32 %v1059, %v1060
        %v1062 = vsel %vm987, %v1056, 0.0
        %v1063 = vadd.f32 %v1061, %v1062
        %v1064 = vrot.slane %v1063, 4
        %v1065 = vadd.f32 %v1063, %v1064
        %v1066 = vrot.slane %v1065, 2
        %v1067 = vadd.f32 %v1065, %v1066
        %v1068 = vrot.slane %v1067, 1
        %v1069 = vadd.f32 %v1067, %v1068
        %v1070 = vadd.f32 %v1048, %v1069
        %1071 = vst.msk [vmem:[%s631 + $0x1] sm:$0x1] %vm1002, %v1070
        %v1072 = vld [vmem:[%s461] sm:$0xff]
        %v1073 = vld [vmem:[%s461 + $0x8] sm:$0xff]
        %1074 = vmatpush.msra.mxu0 0.0
        %1075 = vmatpush.msra.mxu0 0.0
        %1076 = vmatpush.msra.mxu0 0.0
        %1077 = vmatpush.msra.mxu0 0.0
        %1078 = vmatpush.msra.mxu0 0.0
        %1079 = vmatpush.msra.mxu0 0.0
        %1080 = vmatpush.msra.mxu0 0.0
        %1081 = vmatpush.msra.mxu0 0.0
        %1082 = vmatpush.msra.mxu0 0.0
        %1083 = vmatpush.msra.mxu0 0.0
        %1084 = vmatpush.msra.mxu0 0.0
        %1085 = vmatpush.msra.mxu0 0.0
        %1086 = vmatpush.msra.mxu0 0.0
        %1087 = vmatpush.msra.mxu0 0.0
        %1088 = vmatpush.msra.mxu0 %v1073
        %1089 = vmatpush.msra.mxu0 %v1072
        %1090 = vmatmul.f32.gmra.mxu0 %v668
        %v1091 = vpop.f32.mrf.mxu0
        %v1092 = vadd.f32 0.0, %v1091
        %1093 = vmatmul.f32.gmra.mxu0 %v671
        %v1094 = vpop.f32.mrf.mxu0
        %v1095 = vadd.f32 0.0, %v1094
        %1096 = vmatmul.f32.gmra.mxu0 %v674
        %v1097 = vpop.f32.mrf.mxu0
        %v1098 = vadd.f32 0.0, %v1097
        %1099 = vmatmul.f32.gmra.mxu0 %v677
        %v1100 = vpop.f32.mrf.mxu0
        %v1101 = vadd.f32 0.0, %v1100
        %1102 = vdwg.mxu0
        %v1104 = vsel %vm666, %v1092, 0
        %v1107 = vsel %vm666, %v1095, 0
        %v1110 = vsel %vm666, %v1098, 0
        %v1113 = vsel %vm666, %v1101, 0
        %1115 = vmatpush.msra.mxu0 0.0
        %1116 = vmatpush.msra.mxu0 0.0
        %1117 = vmatpush.msra.mxu0 0.0
        %1118 = vmatpush.msra.mxu0 0.0
        %1119 = vmatpush.msra.mxu0 0.0
        %1120 = vmatpush.msra.mxu0 0.0
        %1121 = vmatpush.msra.mxu0 0.0
        %1122 = vmatpush.msra.mxu0 0.0
        %1123 = vmatpush.msra.mxu0 0.0
        %1124 = vmatpush.msra.mxu0 0.0
        %1125 = vmatpush.msra.mxu0 0.0
        %1126 = vmatpush.msra.mxu0 0.0
        %1127 = vmatpush.msra.mxu0 0.0
        %1128 = vmatpush.msra.mxu0 0.0
        %1129 = vmatpush.msra.mxu0 %v663
        %1130 = vmatpush.msra.mxu0 %v662
        %1131 = vmatmul.f32.gmra.mxu0 %v1104
        %v1132 = vpop.f32.mrf.mxu0
        %v1133 = vadd.f32 0.0, %v1132
        %1134 = vmatmul.f32.gmra.mxu0 %v1107
        %v1135 = vpop.f32.mrf.mxu0
        %v1136 = vadd.f32 0.0, %v1135
        %1137 = vmatmul.f32.gmra.mxu0 %v1110
        %v1138 = vpop.f32.mrf.mxu0
        %v1139 = vadd.f32 0.0, %v1138
        %1140 = vmatmul.f32.gmra.mxu0 %v1113
        %v1141 = vpop.f32.mrf.mxu0
        %v1142 = vadd.f32 0.0, %v1141
        %1143 = vdwg.mxu0
        %s1144 = scalar_lea.vmem %s461, 16 [#allocation2]
        %v1145 = vld [vmem:[%s1144] sm:$0xff]
        %v1146 = vld [vmem:[%s1144 + $0x8] sm:$0xff]
        %1147 = vmatpush.msra.mxu0 0.0
        %1148 = vmatpush.msra.mxu0 0.0
        %1149 = vmatpush.msra.mxu0 0.0
        %1150 = vmatpush.msra.mxu0 0.0
        %1151 = vmatpush.msra.mxu0 0.0
        %1152 = vmatpush.msra.mxu0 0.0
        %1153 = vmatpush.msra.mxu0 0.0
        %1154 = vmatpush.msra.mxu0 0.0
        %1155 = vmatpush.msra.mxu0 0.0
        %1156 = vmatpush.msra.mxu0 0.0
        %1157 = vmatpush.msra.mxu0 0.0
        %1158 = vmatpush.msra.mxu0 0.0
        %1159 = vmatpush.msra.mxu0 0.0
        %1160 = vmatpush.msra.mxu0 0.0
        %1161 = vmatpush.msra.mxu0 %v1146
        %1162 = vmatpush.msra.mxu0 %v1145
        %1163 = vmatmul.f32.gmra.mxu0 %v668
        %v1164 = vpop.f32.mrf.mxu0
        %v1165 = vadd.f32 0.0, %v1164
        %1166 = vmatmul.f32.gmra.mxu0 %v671
        %v1167 = vpop.f32.mrf.mxu0
        %v1168 = vadd.f32 0.0, %v1167
        %1169 = vmatmul.f32.gmra.mxu0 %v674
        %v1170 = vpop.f32.mrf.mxu0
        %v1171 = vadd.f32 0.0, %v1170
        %1172 = vmatmul.f32.gmra.mxu0 %v677
        %v1173 = vpop.f32.mrf.mxu0
        %v1174 = vadd.f32 0.0, %v1173
        %1175 = vdwg.mxu0
        %v1177 = vsel %vm666, %v1165, 0
        %v1180 = vsel %vm666, %v1168, 0
        %v1183 = vsel %vm666, %v1171, 0
        %v1186 = vsel %vm666, %v1174, 0
        %1188 = vmatpush.msra.mxu0 0.0
        %1189 = vmatpush.msra.mxu0 0.0
        %1190 = vmatpush.msra.mxu0 0.0
        %1191 = vmatpush.msra.mxu0 0.0
        %1192 = vmatpush.msra.mxu0 0.0
        %1193 = vmatpush.msra.mxu0 0.0
        %1194 = vmatpush.msra.mxu0 0.0
        %1195 = vmatpush.msra.mxu0 0.0
        %1196 = vmatpush.msra.mxu0 0.0
        %1197 = vmatpush.msra.mxu0 0.0
        %1198 = vmatpush.msra.mxu0 0.0
        %1199 = vmatpush.msra.mxu0 0.0
        %1200 = vmatpush.msra.mxu0 0.0
        %1201 = vmatpush.msra.mxu0 0.0
        %1202 = vmatpush.msra.mxu0 %v663
        %1203 = vmatpush.msra.mxu0 %v662
        %1204 = vmatmul.f32.gmra.mxu0 %v1177
        %v1205 = vpop.f32.mrf.mxu0
        %v1206 = vadd.f32 0.0, %v1205
        %1207 = vmatmul.f32.gmra.mxu0 %v1180
        %v1208 = vpop.f32.mrf.mxu0
        %v1209 = vadd.f32 0.0, %v1208
        %1210 = vmatmul.f32.gmra.mxu0 %v1183
        %v1211 = vpop.f32.mrf.mxu0
        %v1212 = vadd.f32 0.0, %v1211
        %1213 = vmatmul.f32.gmra.mxu0 %v1186
        %v1214 = vpop.f32.mrf.mxu0
        %v1215 = vadd.f32 0.0, %v1214
        %1216 = vdwg.mxu0
        %s1217 = scalar_lea.vmem %s461, 32 [#allocation2]
        %v1218 = vld [vmem:[%s1217] sm:$0xff]
        %v1219 = vld [vmem:[%s1217 + $0x8] sm:$0xff]
        %1220 = vmatpush.msra.mxu0 0.0
        %1221 = vmatpush.msra.mxu0 0.0
        %1222 = vmatpush.msra.mxu0 0.0
        %1223 = vmatpush.msra.mxu0 0.0
        %1224 = vmatpush.msra.mxu0 0.0
        %1225 = vmatpush.msra.mxu0 0.0
        %1226 = vmatpush.msra.mxu0 0.0
        %1227 = vmatpush.msra.mxu0 0.0
        %1228 = vmatpush.msra.mxu0 0.0
        %1229 = vmatpush.msra.mxu0 0.0
        %1230 = vmatpush.msra.mxu0 0.0
        %1231 = vmatpush.msra.mxu0 0.0
        %1232 = vmatpush.msra.mxu0 0.0
        %1233 = vmatpush.msra.mxu0 0.0
        %1234 = vmatpush.msra.mxu0 %v1219
        %1235 = vmatpush.msra.mxu0 %v1218
        %1236 = vmatmul.f32.gmra.mxu0 %v668
        %v1237 = vpop.f32.mrf.mxu0
        %v1238 = vadd.f32 0.0, %v1237
        %1239 = vmatmul.f32.gmra.mxu0 %v671
        %v1240 = vpop.f32.mrf.mxu0
        %v1241 = vadd.f32 0.0, %v1240
        %1242 = vmatmul.f32.gmra.mxu0 %v674
        %v1243 = vpop.f32.mrf.mxu0
        %v1244 = vadd.f32 0.0, %v1243
        %1245 = vmatmul.f32.gmra.mxu0 %v677
        %v1246 = vpop.f32.mrf.mxu0
        %v1247 = vadd.f32 0.0, %v1246
        %1248 = vdwg.mxu0
        %v1250 = vsel %vm666, %v1238, 0
        %v1253 = vsel %vm666, %v1241, 0
        %v1256 = vsel %vm666, %v1244, 0
        %v1259 = vsel %vm666, %v1247, 0
        %1261 = vmatpush.msra.mxu0 0.0
        %1262 = vmatpush.msra.mxu0 0.0
        %1263 = vmatpush.msra.mxu0 0.0
        %1264 = vmatpush.msra.mxu0 0.0
        %1265 = vmatpush.msra.mxu0 0.0
        %1266 = vmatpush.msra.mxu0 0.0
        %1267 = vmatpush.msra.mxu0 0.0
        %1268 = vmatpush.msra.mxu0 0.0
        %1269 = vmatpush.msra.mxu0 0.0
        %1270 = vmatpush.msra.mxu0 0.0
        %1271 = vmatpush.msra.mxu0 0.0
        %1272 = vmatpush.msra.mxu0 0.0
        %1273 = vmatpush.msra.mxu0 0.0
        %1274 = vmatpush.msra.mxu0 0.0
        %1275 = vmatpush.msra.mxu0 %v663
        %1276 = vmatpush.msra.mxu0 %v662
        %1277 = vmatmul.f32.gmra.mxu0 %v1250
        %v1278 = vpop.f32.mrf.mxu0
        %v1279 = vadd.f32 0.0, %v1278
        %1280 = vmatmul.f32.gmra.mxu0 %v1253
        %v1281 = vpop.f32.mrf.mxu0
        %v1282 = vadd.f32 0.0, %v1281
        %1283 = vmatmul.f32.gmra.mxu0 %v1256
        %v1284 = vpop.f32.mrf.mxu0
        %v1285 = vadd.f32 0.0, %v1284
        %1286 = vmatmul.f32.gmra.mxu0 %v1259
        %v1287 = vpop.f32.mrf.mxu0
        %v1288 = vadd.f32 0.0, %v1287
        %1289 = vdwg.mxu0
        %s1290 = scalar_lea.vmem %s461, 48 [#allocation2]
        %v1291 = vld [vmem:[%s1290] sm:$0xff]
        %v1292 = vld [vmem:[%s1290 + $0x8] sm:$0xff]
        %1293 = vmatpush.msra.mxu0 0.0
        %1294 = vmatpush.msra.mxu0 0.0
        %1295 = vmatpush.msra.mxu0 0.0
        %1296 = vmatpush.msra.mxu0 0.0
        %1297 = vmatpush.msra.mxu0 0.0
        %1298 = vmatpush.msra.mxu0 0.0
        %1299 = vmatpush.msra.mxu0 0.0
        %1300 = vmatpush.msra.mxu0 0.0
        %1301 = vmatpush.msra.mxu0 0.0
        %1302 = vmatpush.msra.mxu0 0.0
        %1303 = vmatpush.msra.mxu0 0.0
        %1304 = vmatpush.msra.mxu0 0.0
        %1305 = vmatpush.msra.mxu0 0.0
        %1306 = vmatpush.msra.mxu0 0.0
        %1307 = vmatpush.msra.mxu0 %v1292
        %1308 = vmatpush.msra.mxu0 %v1291
        %1309 = vmatmul.f32.gmra.mxu0 %v668
        %v1310 = vpop.f32.mrf.mxu0
        %v1311 = vadd.f32 0.0, %v1310
        %1312 = vmatmul.f32.gmra.mxu0 %v671
        %v1313 = vpop.f32.mrf.mxu0
        %v1314 = vadd.f32 0.0, %v1313
        %1315 = vmatmul.f32.gmra.mxu0 %v674
        %v1316 = vpop.f32.mrf.mxu0
        %v1317 = vadd.f32 0.0, %v1316
        %1318 = vmatmul.f32.gmra.mxu0 %v677
        %v1319 = vpop.f32.mrf.mxu0
        %v1320 = vadd.f32 0.0, %v1319
        %1321 = vdwg.mxu0
        %v1323 = vsel %vm666, %v1311, 0
        %v1326 = vsel %vm666, %v1314, 0
        %v1329 = vsel %vm666, %v1317, 0
        %v1332 = vsel %vm666, %v1320, 0
        %1334 = vmatpush.msra.mxu0 0.0
        %1335 = vmatpush.msra.mxu0 0.0
        %1336 = vmatpush.msra.mxu0 0.0
        %1337 = vmatpush.msra.mxu0 0.0
        %1338 = vmatpush.msra.mxu0 0.0
        %1339 = vmatpush.msra.mxu0 0.0
        %1340 = vmatpush.msra.mxu0 0.0
        %1341 = vmatpush.msra.mxu0 0.0
        %1342 = vmatpush.msra.mxu0 0.0
        %1343 = vmatpush.msra.mxu0 0.0
        %1344 = vmatpush.msra.mxu0 0.0
        %1345 = vmatpush.msra.mxu0 0.0
        %1346 = vmatpush.msra.mxu0 0.0
        %1347 = vmatpush.msra.mxu0 0.0
        %1348 = vmatpush.msra.mxu0 %v663
        %1349 = vmatpush.msra.mxu0 %v662
        %1350 = vmatmul.f32.gmra.mxu0 %v1323
        %v1351 = vpop.f32.mrf.mxu0
        %v1352 = vadd.f32 0.0, %v1351
        %1353 = vmatmul.f32.gmra.mxu0 %v1326
        %v1354 = vpop.f32.mrf.mxu0
        %v1355 = vadd.f32 0.0, %v1354
        %1356 = vmatmul.f32.gmra.mxu0 %v1329
        %v1357 = vpop.f32.mrf.mxu0
        %v1358 = vadd.f32 0.0, %v1357
        %1359 = vmatmul.f32.gmra.mxu0 %v1332
        %v1360 = vpop.f32.mrf.mxu0
        %v1361 = vadd.f32 0.0, %v1360
        %1362 = vdwg.mxu0
        %s1363 = scalar_lea.vmem %s461, 64 [#allocation2]
        %v1364 = vld [vmem:[%s1363] sm:$0xff]
        %v1365 = vld [vmem:[%s1363 + $0x8] sm:$0xff]
        %1366 = vmatpush.msra.mxu0 0.0
        %1367 = vmatpush.msra.mxu0 0.0
        %1368 = vmatpush.msra.mxu0 0.0
        %1369 = vmatpush.msra.mxu0 0.0
        %1370 = vmatpush.msra.mxu0 0.0
        %1371 = vmatpush.msra.mxu0 0.0
        %1372 = vmatpush.msra.mxu0 0.0
        %1373 = vmatpush.msra.mxu0 0.0
        %1374 = vmatpush.msra.mxu0 0.0
        %1375 = vmatpush.msra.mxu0 0.0
        %1376 = vmatpush.msra.mxu0 0.0
        %1377 = vmatpush.msra.mxu0 0.0
        %1378 = vmatpush.msra.mxu0 0.0
        %1379 = vmatpush.msra.mxu0 0.0
        %1380 = vmatpush.msra.mxu0 %v1365
        %1381 = vmatpush.msra.mxu0 %v1364
        %1382 = vmatmul.f32.gmra.mxu0 %v668
        %v1383 = vpop.f32.mrf.mxu0
        %v1384 = vadd.f32 0.0, %v1383
        %1385 = vmatmul.f32.gmra.mxu0 %v671
        %v1386 = vpop.f32.mrf.mxu0
        %v1387 = vadd.f32 0.0, %v1386
        %1388 = vmatmul.f32.gmra.mxu0 %v674
        %v1389 = vpop.f32.mrf.mxu0
        %v1390 = vadd.f32 0.0, %v1389
        %1391 = vmatmul.f32.gmra.mxu0 %v677
        %v1392 = vpop.f32.mrf.mxu0
        %v1393 = vadd.f32 0.0, %v1392
        %1394 = vdwg.mxu0
        %v1396 = vsel %vm666, %v1384, 0
        %v1399 = vsel %vm666, %v1387, 0
        %v1402 = vsel %vm666, %v1390, 0
        %v1405 = vsel %vm666, %v1393, 0
        %1407 = vmatpush.msra.mxu0 0.0
        %1408 = vmatpush.msra.mxu0 0.0
        %1409 = vmatpush.msra.mxu0 0.0
        %1410 = vmatpush.msra.mxu0 0.0
        %1411 = vmatpush.msra.mxu0 0.0
        %1412 = vmatpush.msra.mxu0 0.0
        %1413 = vmatpush.msra.mxu0 0.0
        %1414 = vmatpush.msra.mxu0 0.0
        %1415 = vmatpush.msra.mxu0 0.0
        %1416 = vmatpush.msra.mxu0 0.0
        %1417 = vmatpush.msra.mxu0 0.0
        %1418 = vmatpush.msra.mxu0 0.0
        %1419 = vmatpush.msra.mxu0 0.0
        %1420 = vmatpush.msra.mxu0 0.0
        %1421 = vmatpush.msra.mxu0 %v663
        %1422 = vmatpush.msra.mxu0 %v662
        %1423 = vmatmul.f32.gmra.mxu0 %v1396
        %v1424 = vpop.f32.mrf.mxu0
        %v1425 = vadd.f32 0.0, %v1424
        %1426 = vmatmul.f32.gmra.mxu0 %v1399
        %v1427 = vpop.f32.mrf.mxu0
        %v1428 = vadd.f32 0.0, %v1427
        %1429 = vmatmul.f32.gmra.mxu0 %v1402
        %v1430 = vpop.f32.mrf.mxu0
        %v1431 = vadd.f32 0.0, %v1430
        %1432 = vmatmul.f32.gmra.mxu0 %v1405
        %v1433 = vpop.f32.mrf.mxu0
        %v1434 = vadd.f32 0.0, %v1433
        %1435 = vdwg.mxu0
        %s1436 = scalar_lea.vmem %s461, 80 [#allocation2]
        %v1437 = vld [vmem:[%s1436] sm:$0xff]
        %v1438 = vld [vmem:[%s1436 + $0x8] sm:$0xff]
        %1439 = vmatpush.msra.mxu0 0.0
        %1440 = vmatpush.msra.mxu0 0.0
        %1441 = vmatpush.msra.mxu0 0.0
        %1442 = vmatpush.msra.mxu0 0.0
        %1443 = vmatpush.msra.mxu0 0.0
        %1444 = vmatpush.msra.mxu0 0.0
        %1445 = vmatpush.msra.mxu0 0.0
        %1446 = vmatpush.msra.mxu0 0.0
        %1447 = vmatpush.msra.mxu0 0.0
        %1448 = vmatpush.msra.mxu0 0.0
        %1449 = vmatpush.msra.mxu0 0.0
        %1450 = vmatpush.msra.mxu0 0.0
        %1451 = vmatpush.msra.mxu0 0.0
        %1452 = vmatpush.msra.mxu0 0.0
        %1453 = vmatpush.msra.mxu0 %v1438
        %1454 = vmatpush.msra.mxu0 %v1437
        %1455 = vmatmul.f32.gmra.mxu0 %v668
        %v1456 = vpop.f32.mrf.mxu0
        %v1457 = vadd.f32 0.0, %v1456
        %1458 = vmatmul.f32.gmra.mxu0 %v671
        %v1459 = vpop.f32.mrf.mxu0
        %v1460 = vadd.f32 0.0, %v1459
        %1461 = vmatmul.f32.gmra.mxu0 %v674
        %v1462 = vpop.f32.mrf.mxu0
        %v1463 = vadd.f32 0.0, %v1462
        %1464 = vmatmul.f32.gmra.mxu0 %v677
        %v1465 = vpop.f32.mrf.mxu0
        %v1466 = vadd.f32 0.0, %v1465
        %1467 = vdwg.mxu0
        %v1469 = vsel %vm666, %v1457, 0
        %v1472 = vsel %vm666, %v1460, 0
        %v1475 = vsel %vm666, %v1463, 0
        %v1478 = vsel %vm666, %v1466, 0
        %1480 = vmatpush.msra.mxu0 0.0
        %1481 = vmatpush.msra.mxu0 0.0
        %1482 = vmatpush.msra.mxu0 0.0
        %1483 = vmatpush.msra.mxu0 0.0
        %1484 = vmatpush.msra.mxu0 0.0
        %1485 = vmatpush.msra.mxu0 0.0
        %1486 = vmatpush.msra.mxu0 0.0
        %1487 = vmatpush.msra.mxu0 0.0
        %1488 = vmatpush.msra.mxu0 0.0
        %1489 = vmatpush.msra.mxu0 0.0
        %1490 = vmatpush.msra.mxu0 0.0
        %1491 = vmatpush.msra.mxu0 0.0
        %1492 = vmatpush.msra.mxu0 0.0
        %1493 = vmatpush.msra.mxu0 0.0
        %1494 = vmatpush.msra.mxu0 %v663
        %1495 = vmatpush.msra.mxu0 %v662
        %1496 = vmatmul.f32.gmra.mxu0 %v1469
        %v1497 = vpop.f32.mrf.mxu0
        %v1498 = vadd.f32 0.0, %v1497
        %1499 = vmatmul.f32.gmra.mxu0 %v1472
        %v1500 = vpop.f32.mrf.mxu0
        %v1501 = vadd.f32 0.0, %v1500
        %1502 = vmatmul.f32.gmra.mxu0 %v1475
        %v1503 = vpop.f32.mrf.mxu0
        %v1504 = vadd.f32 0.0, %v1503
        %1505 = vmatmul.f32.gmra.mxu0 %v1478
        %v1506 = vpop.f32.mrf.mxu0
        %v1507 = vadd.f32 0.0, %v1506
        %1508 = vdwg.mxu0
        %s1509 = scalar_lea.vmem %s461, 96 [#allocation2]
        %v1510 = vld [vmem:[%s1509] sm:$0xff]
        %v1511 = vld [vmem:[%s1509 + $0x8] sm:$0xff]
        %1512 = vmatpush.msra.mxu0 0.0
        %1513 = vmatpush.msra.mxu0 0.0
        %1514 = vmatpush.msra.mxu0 0.0
        %1515 = vmatpush.msra.mxu0 0.0
        %1516 = vmatpush.msra.mxu0 0.0
        %1517 = vmatpush.msra.mxu0 0.0
        %1518 = vmatpush.msra.mxu0 0.0
        %1519 = vmatpush.msra.mxu0 0.0
        %1520 = vmatpush.msra.mxu0 0.0
        %1521 = vmatpush.msra.mxu0 0.0
        %1522 = vmatpush.msra.mxu0 0.0
        %1523 = vmatpush.msra.mxu0 0.0
        %1524 = vmatpush.msra.mxu0 0.0
        %1525 = vmatpush.msra.mxu0 0.0
        %1526 = vmatpush.msra.mxu0 %v1511
        %1527 = vmatpush.msra.mxu0 %v1510
        %1528 = vmatmul.f32.gmra.mxu0 %v668
        %v1529 = vpop.f32.mrf.mxu0
        %v1530 = vadd.f32 0.0, %v1529
        %1531 = vmatmul.f32.gmra.mxu0 %v671
        %v1532 = vpop.f32.mrf.mxu0
        %v1533 = vadd.f32 0.0, %v1532
        %1534 = vmatmul.f32.gmra.mxu0 %v674
        %v1535 = vpop.f32.mrf.mxu0
        %v1536 = vadd.f32 0.0, %v1535
        %1537 = vmatmul.f32.gmra.mxu0 %v677
        %v1538 = vpop.f32.mrf.mxu0
        %v1539 = vadd.f32 0.0, %v1538
        %1540 = vdwg.mxu0
        %v1542 = vsel %vm666, %v1530, 0
        %v1545 = vsel %vm666, %v1533, 0
        %v1548 = vsel %vm666, %v1536, 0
        %v1551 = vsel %vm666, %v1539, 0
        %1553 = vmatpush.msra.mxu0 0.0
        %1554 = vmatpush.msra.mxu0 0.0
        %1555 = vmatpush.msra.mxu0 0.0
        %1556 = vmatpush.msra.mxu0 0.0
        %1557 = vmatpush.msra.mxu0 0.0
        %1558 = vmatpush.msra.mxu0 0.0
        %1559 = vmatpush.msra.mxu0 0.0
        %1560 = vmatpush.msra.mxu0 0.0
        %1561 = vmatpush.msra.mxu0 0.0
        %1562 = vmatpush.msra.mxu0 0.0
        %1563 = vmatpush.msra.mxu0 0.0
        %1564 = vmatpush.msra.mxu0 0.0
        %1565 = vmatpush.msra.mxu0 0.0
        %1566 = vmatpush.msra.mxu0 0.0
        %1567 = vmatpush.msra.mxu0 %v663
        %1568 = vmatpush.msra.mxu0 %v662
        %1569 = vmatmul.f32.gmra.mxu0 %v1542
        %v1570 = vpop.f32.mrf.mxu0
        %v1571 = vadd.f32 0.0, %v1570
        %1572 = vmatmul.f32.gmra.mxu0 %v1545
        %v1573 = vpop.f32.mrf.mxu0
        %v1574 = vadd.f32 0.0, %v1573
        %1575 = vmatmul.f32.gmra.mxu0 %v1548
        %v1576 = vpop.f32.mrf.mxu0
        %v1577 = vadd.f32 0.0, %v1576
        %1578 = vmatmul.f32.gmra.mxu0 %v1551
        %v1579 = vpop.f32.mrf.mxu0
        %v1580 = vadd.f32 0.0, %v1579
        %1581 = vdwg.mxu0
        %s1582 = scalar_lea.vmem %s461, 112 [#allocation2]
        %v1583 = vld [vmem:[%s1582] sm:$0xff]
        %v1584 = vld [vmem:[%s1582 + $0x8] sm:$0xff]
        %1585 = vmatpush.msra.mxu0 0.0
        %1586 = vmatpush.msra.mxu0 0.0
        %1587 = vmatpush.msra.mxu0 0.0
        %1588 = vmatpush.msra.mxu0 0.0
        %1589 = vmatpush.msra.mxu0 0.0
        %1590 = vmatpush.msra.mxu0 0.0
        %1591 = vmatpush.msra.mxu0 0.0
        %1592 = vmatpush.msra.mxu0 0.0
        %1593 = vmatpush.msra.mxu0 0.0
        %1594 = vmatpush.msra.mxu0 0.0
        %1595 = vmatpush.msra.mxu0 0.0
        %1596 = vmatpush.msra.mxu0 0.0
        %1597 = vmatpush.msra.mxu0 0.0
        %1598 = vmatpush.msra.mxu0 0.0
        %1599 = vmatpush.msra.mxu0 %v1584
        %1600 = vmatpush.msra.mxu0 %v1583
        %1601 = vmatmul.f32.gmra.mxu0 %v668
        %v1602 = vpop.f32.mrf.mxu0
        %v1603 = vadd.f32 0.0, %v1602
        %1604 = vmatmul.f32.gmra.mxu0 %v671
        %v1605 = vpop.f32.mrf.mxu0
        %v1606 = vadd.f32 0.0, %v1605
        %1607 = vmatmul.f32.gmra.mxu0 %v674
        %v1608 = vpop.f32.mrf.mxu0
        %v1609 = vadd.f32 0.0, %v1608
        %1610 = vmatmul.f32.gmra.mxu0 %v677
        %v1611 = vpop.f32.mrf.mxu0
        %v1612 = vadd.f32 0.0, %v1611
        %1613 = vdwg.mxu0
        %v1615 = vsel %vm666, %v1603, 0
        %v1618 = vsel %vm666, %v1606, 0
        %v1621 = vsel %vm666, %v1609, 0
        %v1624 = vsel %vm666, %v1612, 0
        %1626 = vmatpush.msra.mxu0 0.0
        %1627 = vmatpush.msra.mxu0 0.0
        %1628 = vmatpush.msra.mxu0 0.0
        %1629 = vmatpush.msra.mxu0 0.0
        %1630 = vmatpush.msra.mxu0 0.0
        %1631 = vmatpush.msra.mxu0 0.0
        %1632 = vmatpush.msra.mxu0 0.0
        %1633 = vmatpush.msra.mxu0 0.0
        %1634 = vmatpush.msra.mxu0 0.0
        %1635 = vmatpush.msra.mxu0 0.0
        %1636 = vmatpush.msra.mxu0 0.0
        %1637 = vmatpush.msra.mxu0 0.0
        %1638 = vmatpush.msra.mxu0 0.0
        %1639 = vmatpush.msra.mxu0 0.0
        %1640 = vmatpush.msra.mxu0 %v663
        %1641 = vmatpush.msra.mxu0 %v662
        %1642 = vmatmul.f32.gmra.mxu0 %v1615
        %v1643 = vpop.f32.mrf.mxu0
        %v1644 = vadd.f32 0.0, %v1643
        %1645 = vmatmul.f32.gmra.mxu0 %v1618
        %v1646 = vpop.f32.mrf.mxu0
        %v1647 = vadd.f32 0.0, %v1646
        %1648 = vmatmul.f32.gmra.mxu0 %v1621
        %v1649 = vpop.f32.mrf.mxu0
        %v1650 = vadd.f32 0.0, %v1649
        %1651 = vmatmul.f32.gmra.mxu0 %v1624
        %v1652 = vpop.f32.mrf.mxu0
        %v1653 = vadd.f32 0.0, %v1652
        %1654 = vdwg.mxu0
        %v1655 = vmax.f32 %v1133, %v1206
        %v1656 = vmax.f32 %v1136, %v1209
        %v1657 = vmax.f32 %v1139, %v1212
        %v1658 = vmax.f32 %v1142, %v1215
        %v1659 = vmax.f32 %v1655, %v1279
        %v1660 = vmax.f32 %v1656, %v1282
        %v1661 = vmax.f32 %v1657, %v1285
        %v1662 = vmax.f32 %v1658, %v1288
        %v1663 = vmax.f32 %v1659, %v1352
        %v1664 = vmax.f32 %v1660, %v1355
        %v1665 = vmax.f32 %v1661, %v1358
        %v1666 = vmax.f32 %v1662, %v1361
        %v1667 = vmax.f32 %v1663, %v1425
        %v1668 = vmax.f32 %v1664, %v1428
        %v1669 = vmax.f32 %v1665, %v1431
        %v1670 = vmax.f32 %v1666, %v1434
        %v1671 = vmax.f32 %v1667, %v1498
        %v1672 = vmax.f32 %v1668, %v1501
        %v1673 = vmax.f32 %v1669, %v1504
        %v1674 = vmax.f32 %v1670, %v1507
        %v1675 = vmax.f32 %v1671, %v1571
        %v1676 = vmax.f32 %v1672, %v1574
        %v1677 = vmax.f32 %v1673, %v1577
        %v1678 = vmax.f32 %v1674, %v1580
        %v1679 = vmax.f32 %v1675, %v1644
        %v1680 = vmax.f32 %v1676, %v1647
        %v1681 = vmax.f32 %v1677, %v1650
        %v1682 = vmax.f32 %v1678, %v1653
        %v1683 = vsub.f32 %v1133, %v1679
        %v1684 = vsub.f32 %v1136, %v1680
        %v1685 = vsub.f32 %v1139, %v1681
        %v1686 = vsub.f32 %v1142, %v1682
        %v1687 = vmul.f32 %v1683, 1.442695
        %v1688 = vpow.pop %v1687
        %v1689 = vmul.f32 %v1684, 1.442695
        %v1690 = vpow.pop %v1689
        %v1691 = vmul.f32 %v1685, 1.442695
        %v1692 = vpow.pop %v1691
        %v1693 = vmul.f32 %v1686, 1.442695
        %v1694 = vpow.pop %v1693
        %v1695 = vadd.f32 %v1688, 0.0
        %v1696 = vadd.f32 %v1690, 0.0
        %v1697 = vadd.f32 %v1692, 0.0
        %v1698 = vadd.f32 %v1694, 0.0
        %v1699 = vsub.f32 %v1206, %v1679
        %v1700 = vsub.f32 %v1209, %v1680
        %v1701 = vsub.f32 %v1212, %v1681
        %v1702 = vsub.f32 %v1215, %v1682
        %v1703 = vmul.f32 %v1699, 1.442695
        %v1704 = vpow.pop %v1703
        %v1705 = vmul.f32 %v1700, 1.442695
        %v1706 = vpow.pop %v1705
        %v1707 = vmul.f32 %v1701, 1.442695
        %v1708 = vpow.pop %v1707
        %v1709 = vmul.f32 %v1702, 1.442695
        %v1710 = vpow.pop %v1709
        %v1711 = vadd.f32 %v1695, %v1704
        %v1712 = vadd.f32 %v1696, %v1706
        %v1713 = vadd.f32 %v1697, %v1708
        %v1714 = vadd.f32 %v1698, %v1710
        %v1715 = vsub.f32 %v1279, %v1679
        %v1716 = vsub.f32 %v1282, %v1680
        %v1717 = vsub.f32 %v1285, %v1681
        %v1718 = vsub.f32 %v1288, %v1682
        %v1719 = vmul.f32 %v1715, 1.442695
        %v1720 = vpow.pop %v1719
        %v1721 = vmul.f32 %v1716, 1.442695
        %v1722 = vpow.pop %v1721
        %v1723 = vmul.f32 %v1717, 1.442695
        %v1724 = vpow.pop %v1723
        %v1725 = vmul.f32 %v1718, 1.442695
        %v1726 = vpow.pop %v1725
        %v1727 = vadd.f32 %v1711, %v1720
        %v1728 = vadd.f32 %v1712, %v1722
        %v1729 = vadd.f32 %v1713, %v1724
        %v1730 = vadd.f32 %v1714, %v1726
        %v1731 = vsub.f32 %v1352, %v1679
        %v1732 = vsub.f32 %v1355, %v1680
        %v1733 = vsub.f32 %v1358, %v1681
        %v1734 = vsub.f32 %v1361, %v1682
        %v1735 = vmul.f32 %v1731, 1.442695
        %v1736 = vpow.pop %v1735
        %v1737 = vmul.f32 %v1732, 1.442695
        %v1738 = vpow.pop %v1737
        %v1739 = vmul.f32 %v1733, 1.442695
        %v1740 = vpow.pop %v1739
        %v1741 = vmul.f32 %v1734, 1.442695
        %v1742 = vpow.pop %v1741
        %v1743 = vadd.f32 %v1727, %v1736
        %v1744 = vadd.f32 %v1728, %v1738
        %v1745 = vadd.f32 %v1729, %v1740
        %v1746 = vadd.f32 %v1730, %v1742
        %v1747 = vsub.f32 %v1425, %v1679
        %v1748 = vsub.f32 %v1428, %v1680
        %v1749 = vsub.f32 %v1431, %v1681
        %v1750 = vsub.f32 %v1434, %v1682
        %v1751 = vmul.f32 %v1747, 1.442695
        %v1752 = vpow.pop %v1751
        %v1753 = vmul.f32 %v1748, 1.442695
        %v1754 = vpow.pop %v1753
        %v1755 = vmul.f32 %v1749, 1.442695
        %v1756 = vpow.pop %v1755
        %v1757 = vmul.f32 %v1750, 1.442695
        %v1758 = vpow.pop %v1757
        %v1759 = vadd.f32 %v1743, %v1752
        %v1760 = vadd.f32 %v1744, %v1754
        %v1761 = vadd.f32 %v1745, %v1756
        %v1762 = vadd.f32 %v1746, %v1758
        %v1763 = vsub.f32 %v1498, %v1679
        %v1764 = vsub.f32 %v1501, %v1680
        %v1765 = vsub.f32 %v1504, %v1681
        %v1766 = vsub.f32 %v1507, %v1682
        %v1767 = vmul.f32 %v1763, 1.442695
        %v1768 = vpow.pop %v1767
        %v1769 = vmul.f32 %v1764, 1.442695
        %v1770 = vpow.pop %v1769
        %v1771 = vmul.f32 %v1765, 1.442695
        %v1772 = vpow.pop %v1771
        %v1773 = vmul.f32 %v1766, 1.442695
        %v1774 = vpow.pop %v1773
        %v1775 = vadd.f32 %v1759, %v1768
        %v1776 = vadd.f32 %v1760, %v1770
        %v1777 = vadd.f32 %v1761, %v1772
        %v1778 = vadd.f32 %v1762, %v1774
        %v1779 = vsub.f32 %v1571, %v1679
        %v1780 = vsub.f32 %v1574, %v1680
        %v1781 = vsub.f32 %v1577, %v1681
        %v1782 = vsub.f32 %v1580, %v1682
        %v1783 = vmul.f32 %v1779, 1.442695
        %v1784 = vpow.pop %v1783
        %v1785 = vmul.f32 %v1780, 1.442695
        %v1786 = vpow.pop %v1785
        %v1787 = vmul.f32 %v1781, 1.442695
        %v1788 = vpow.pop %v1787
        %v1789 = vmul.f32 %v1782, 1.442695
        %v1790 = vpow.pop %v1789
        %v1791 = vadd.f32 %v1775, %v1784
        %v1792 = vadd.f32 %v1776, %v1786
        %v1793 = vadd.f32 %v1777, %v1788
        %v1794 = vadd.f32 %v1778, %v1790
        %v1795 = vsub.f32 %v1644, %v1679
        %v1796 = vsub.f32 %v1647, %v1680
        %v1797 = vsub.f32 %v1650, %v1681
        %v1798 = vsub.f32 %v1653, %v1682
        %v1799 = vmul.f32 %v1795, 1.442695
        %v1800 = vpow.pop %v1799
        %v1801 = vmul.f32 %v1796, 1.442695
        %v1802 = vpow.pop %v1801
        %v1803 = vmul.f32 %v1797, 1.442695
        %v1804 = vpow.pop %v1803
        %v1805 = vmul.f32 %v1798, 1.442695
        %v1806 = vpow.pop %v1805
        %v1807 = vadd.f32 %v1791, %v1800
        %v1808 = vadd.f32 %v1792, %v1802
        %v1809 = vadd.f32 %v1793, %v1804
        %v1810 = vadd.f32 %v1794, %v1806
        %v1811 = vlog2.pop %v1807
        %v1812 = vmul.f32 %v1811, 0.6931472
        %v1813 = vlog2.pop %v1808
        %v1814 = vmul.f32 %v1813, 0.6931472
        %v1815 = vlog2.pop %v1809
        %v1816 = vmul.f32 %v1815, 0.6931472
        %v1817 = vlog2.pop %v1810
        %v1818 = vmul.f32 %v1817, 0.6931472
        %v1819 = vadd.f32 %v1812, %v1679
        %v1820 = vadd.f32 %v1814, %v1680
        %v1821 = vadd.f32 %v1816, %v1681
        %v1822 = vadd.f32 %v1818, %v1682
        %vm1823 = vcmp.eq.s32.totalorder %v910, 0
        %vm1824 = vcmp.eq.s32.totalorder %v911, 0
        %vm1825 = vcmp.eq.s32.totalorder %v912, 0
        %vm1826 = vcmp.eq.s32.totalorder %v913, 0
        %v1827 = vsel %vm1823, %v1133, 0.0
        %v1828 = vsel %vm1824, %v1136, 0.0
        %v1829 = vsel %vm1825, %v1139, 0.0
        %v1830 = vsel %vm1826, %v1142, 0.0
        %vm1831 = vcmp.eq.s32.totalorder %v910, 1
        %vm1832 = vcmp.eq.s32.totalorder %v911, 1
        %vm1833 = vcmp.eq.s32.totalorder %v912, 1
        %vm1834 = vcmp.eq.s32.totalorder %v913, 1
        %v1835 = vsel %vm1831, %v1206, %v1827
        %v1836 = vsel %vm1832, %v1209, %v1828
        %v1837 = vsel %vm1833, %v1212, %v1829
        %v1838 = vsel %vm1834, %v1215, %v1830
        %vm1839 = vcmp.eq.s32.totalorder %v910, 2
        %vm1840 = vcmp.eq.s32.totalorder %v911, 2
        %vm1841 = vcmp.eq.s32.totalorder %v912, 2
        %vm1842 = vcmp.eq.s32.totalorder %v913, 2
        %v1843 = vsel %vm1839, %v1279, %v1835
        %v1844 = vsel %vm1840, %v1282, %v1836
        %v1845 = vsel %vm1841, %v1285, %v1837
        %v1846 = vsel %vm1842, %v1288, %v1838
        %vm1847 = vcmp.eq.s32.totalorder %v910, 3
        %vm1848 = vcmp.eq.s32.totalorder %v911, 3
        %vm1849 = vcmp.eq.s32.totalorder %v912, 3
        %vm1850 = vcmp.eq.s32.totalorder %v913, 3
        %v1851 = vsel %vm1847, %v1352, %v1843
        %v1852 = vsel %vm1848, %v1355, %v1844
        %v1853 = vsel %vm1849, %v1358, %v1845
        %v1854 = vsel %vm1850, %v1361, %v1846
        %vm1855 = vcmp.eq.s32.totalorder %v910, 4
        %vm1856 = vcmp.eq.s32.totalorder %v911, 4
        %vm1857 = vcmp.eq.s32.totalorder %v912, 4
        %vm1858 = vcmp.eq.s32.totalorder %v913, 4
        %v1859 = vsel %vm1855, %v1425, %v1851
        %v1860 = vsel %vm1856, %v1428, %v1852
        %v1861 = vsel %vm1857, %v1431, %v1853
        %v1862 = vsel %vm1858, %v1434, %v1854
        %vm1863 = vcmp.eq.s32.totalorder %v910, 5
        %vm1864 = vcmp.eq.s32.totalorder %v911, 5
        %vm1865 = vcmp.eq.s32.totalorder %v912, 5
        %vm1866 = vcmp.eq.s32.totalorder %v913, 5
        %v1867 = vsel %vm1863, %v1498, %v1859
        %v1868 = vsel %vm1864, %v1501, %v1860
        %v1869 = vsel %vm1865, %v1504, %v1861
        %v1870 = vsel %vm1866, %v1507, %v1862
        %vm1871 = vcmp.eq.s32.totalorder %v910, 6
        %vm1872 = vcmp.eq.s32.totalorder %v911, 6
        %vm1873 = vcmp.eq.s32.totalorder %v912, 6
        %vm1874 = vcmp.eq.s32.totalorder %v913, 6
        %v1875 = vsel %vm1871, %v1571, %v1867
        %v1876 = vsel %vm1872, %v1574, %v1868
        %v1877 = vsel %vm1873, %v1577, %v1869
        %v1878 = vsel %vm1874, %v1580, %v1870
        %vm1879 = vcmp.eq.s32.totalorder %v910, 7
        %vm1880 = vcmp.eq.s32.totalorder %v911, 7
        %vm1881 = vcmp.eq.s32.totalorder %v912, 7
        %vm1882 = vcmp.eq.s32.totalorder %v913, 7
        %v1883 = vsel %vm1879, %v1644, %v1875
        %v1884 = vsel %vm1880, %v1647, %v1876
        %v1885 = vsel %vm1881, %v1650, %v1877
        %v1886 = vsel %vm1882, %v1653, %v1878
        %v1887 = vsub.f32 %v1819, %v1883
        %v1888 = vsub.f32 %v1820, %v1884
        %v1889 = vsub.f32 %v1821, %v1885
        %v1890 = vsub.f32 %v1822, %v1886
        %v1891 = vld [vmem:[%s639] sm:$0x1]
        %v1892 = vsel %vm1823, %v1887, 0.0
        %v1893 = vsel %vm1824, %v1888, 0.0
        %v1894 = vsel %vm1825, %v1889, 0.0
        %v1895 = vsel %vm1826, %v1890, 0.0
        %v1896 = vsel %vm987, %v1892, 0.0
        %v1897 = vsel %vm987, %v1893, 0.0
        %v1898 = vadd.f32 %v1896, %v1897
        %v1899 = vsel %vm987, %v1894, 0.0
        %v1900 = vadd.f32 %v1898, %v1899
        %v1901 = vsel %vm987, %v1895, 0.0
        %v1902 = vadd.f32 %v1900, %v1901
        %v1903 = vrot.slane %v1902, 4
        %v1904 = vadd.f32 %v1902, %v1903
        %v1905 = vrot.slane %v1904, 2
        %v1906 = vadd.f32 %v1904, %v1905
        %v1907 = vrot.slane %v1906, 1
        %v1908 = vadd.f32 %v1906, %v1907
        %v1909 = vadd.f32 %v1891, %v1908
        %1910 = vst.msk [vmem:[%s639] sm:$0x1] %vm1002, %v1909
        %v1911 = vld [vmem:[%s647] sm:$0x1]
        %v1912 = vsel %vm1823, 1, 0
        %v1913 = vsel %vm1824, 1, 0
        %v1914 = vsel %vm1825, 1, 0
        %v1915 = vsel %vm1826, 1, 0
        %v1916 = vcvt.s32.f32 %v1912
        %v1917 = vcvt.s32.f32 %v1913
        %v1918 = vcvt.s32.f32 %v1914
        %v1919 = vcvt.s32.f32 %v1915
        %v1920 = vsel %vm987, %v1916, 0.0
        %v1921 = vsel %vm987, %v1917, 0.0
        %v1922 = vadd.f32 %v1920, %v1921
        %v1923 = vsel %vm987, %v1918, 0.0
        %v1924 = vadd.f32 %v1922, %v1923
        %v1925 = vsel %vm987, %v1919, 0.0
        %v1926 = vadd.f32 %v1924, %v1925
        %v1927 = vrot.slane %v1926, 4
        %v1928 = vadd.f32 %v1926, %v1927
        %v1929 = vrot.slane %v1928, 2
        %v1930 = vadd.f32 %v1928, %v1929
        %v1931 = vrot.slane %v1930, 1
        %v1932 = vadd.f32 %v1930, %v1931
        %v1933 = vadd.f32 %v1911, %v1932
        %1934 = vst.msk [vmem:[%s647] sm:$0x1] %vm1002, %v1933
        %v1935 = vld [vmem:[%s639 + $0x1] sm:$0x1]
        %v1936 = vsel %vm1831, %v1887, 0.0
        %v1937 = vsel %vm1832, %v1888, 0.0
        %v1938 = vsel %vm1833, %v1889, 0.0
        %v1939 = vsel %vm1834, %v1890, 0.0
        %v1940 = vsel %vm987, %v1936, 0.0
        %v1941 = vsel %vm987, %v1937, 0.0
        %v1942 = vadd.f32 %v1940, %v1941
        %v1943 = vsel %vm987, %v1938, 0.0
        %v1944 = vadd.f32 %v1942, %v1943
        %v1945 = vsel %vm987, %v1939, 0.0
        %v1946 = vadd.f32 %v1944, %v1945
        %v1947 = vrot.slane %v1946, 4
        %v1948 = vadd.f32 %v1946, %v1947
        %v1949 = vrot.slane %v1948, 2
        %v1950 = vadd.f32 %v1948, %v1949
        %v1951 = vrot.slane %v1950, 1
        %v1952 = vadd.f32 %v1950, %v1951
        %v1953 = vadd.f32 %v1935, %v1952
        %1954 = vst.msk [vmem:[%s639 + $0x1] sm:$0x1] %vm1002, %v1953
        %v1955 = vld [vmem:[%s647 + $0x1] sm:$0x1]
        %v1956 = vsel %vm1831, 1, 0
        %v1957 = vsel %vm1832, 1, 0
        %v1958 = vsel %vm1833, 1, 0
        %v1959 = vsel %vm1834, 1, 0
        %v1960 = vcvt.s32.f32 %v1956
        %v1961 = vcvt.s32.f32 %v1957
        %v1962 = vcvt.s32.f32 %v1958
        %v1963 = vcvt.s32.f32 %v1959
        %v1964 = vsel %vm987, %v1960, 0.0
        %v1965 = vsel %vm987, %v1961, 0.0
        %v1966 = vadd.f32 %v1964, %v1965
        %v1967 = vsel %vm987, %v1962, 0.0
        %v1968 = vadd.f32 %v1966, %v1967
        %v1969 = vsel %vm987, %v1963, 0.0
        %v1970 = vadd.f32 %v1968, %v1969
        %v1971 = vrot.slane %v1970, 4
        %v1972 = vadd.f32 %v1970, %v1971
        %v1973 = vrot.slane %v1972, 2
        %v1974 = vadd.f32 %v1972, %v1973
        %v1975 = vrot.slane %v1974, 1
        %v1976 = vadd.f32 %v1974, %v1975
        %v1977 = vadd.f32 %v1955, %v1976
        %1978 = vst.msk [vmem:[%s647 + $0x1] sm:$0x1] %vm1002, %v1977
        %v1979 = vld [vmem:[%s639 + $0x2] sm:$0x1]
        %v1980 = vsel %vm1839, %v1887, 0.0
        %v1981 = vsel %vm1840, %v1888, 0.0
        %v1982 = vsel %vm1841, %v1889, 0.0
        %v1983 = vsel %vm1842, %v1890, 0.0
        %v1984 = vsel %vm987, %v1980, 0.0
        %v1985 = vsel %vm987, %v1981, 0.0
        %v1986 = vadd.f32 %v1984, %v1985
        %v1987 = vsel %vm987, %v1982, 0.0
        %v1988 = vadd.f32 %v1986, %v1987
        %v1989 = vsel %vm987, %v1983, 0.0
        %v1990 = vadd.f32 %v1988, %v1989
        %v1991 = vrot.slane %v1990, 4
        %v1992 = vadd.f32 %v1990, %v1991
        %v1993 = vrot.slane %v1992, 2
        %v1994 = vadd.f32 %v1992, %v1993
        %v1995 = vrot.slane %v1994, 1
        %v1996 = vadd.f32 %v1994, %v1995
        %v1997 = vadd.f32 %v1979, %v1996
        %1998 = vst.msk [vmem:[%s639 + $0x2] sm:$0x1] %vm1002, %v1997
        %v1999 = vld [vmem:[%s647 + $0x2] sm:$0x1]
        %v2000 = vsel %vm1839, 1, 0
        %v2001 = vsel %vm1840, 1, 0
        %v2002 = vsel %vm1841, 1, 0
        %v2003 = vsel %vm1842, 1, 0
        %v2004 = vcvt.s32.f32 %v2000
        %v2005 = vcvt.s32.f32 %v2001
        %v2006 = vcvt.s32.f32 %v2002
        %v2007 = vcvt.s32.f32 %v2003
        %v2008 = vsel %vm987, %v2004, 0.0
        %v2009 = vsel %vm987, %v2005, 0.0
        %v2010 = vadd.f32 %v2008, %v2009
        %v2011 = vsel %vm987, %v2006, 0.0
        %v2012 = vadd.f32 %v2010, %v2011
        %v2013 = vsel %vm987, %v2007, 0.0
        %v2014 = vadd.f32 %v2012, %v2013
        %v2015 = vrot.slane %v2014, 4
        %v2016 = vadd.f32 %v2014, %v2015
        %v2017 = vrot.slane %v2016, 2
        %v2018 = vadd.f32 %v2016, %v2017
        %v2019 = vrot.slane %v2018, 1
        %v2020 = vadd.f32 %v2018, %v2019
        %v2021 = vadd.f32 %v1999, %v2020
        %2022 = vst.msk [vmem:[%s647 + $0x2] sm:$0x1] %vm1002, %v2021
        %v2023 = vld [vmem:[%s639 + $0x3] sm:$0x1]
        %v2024 = vsel %vm1847, %v1887, 0.0
        %v2025 = vsel %vm1848, %v1888, 0.0
        %v2026 = vsel %vm1849, %v1889, 0.0
        %v2027 = vsel %vm1850, %v1890, 0.0
        %v2028 = vsel %vm987, %v2024, 0.0
        %v2029 = vsel %vm987, %v2025, 0.0
        %v2030 = vadd.f32 %v2028, %v2029
        %v2031 = vsel %vm987, %v2026, 0.0
        %v2032 = vadd.f32 %v2030, %v2031
        %v2033 = vsel %vm987, %v2027, 0.0
        %v2034 = vadd.f32 %v2032, %v2033
        %v2035 = vrot.slane %v2034, 4
        %v2036 = vadd.f32 %v2034, %v2035
        %v2037 = vrot.slane %v2036, 2
        %v2038 = vadd.f32 %v2036, %v2037
        %v2039 = vrot.slane %v2038, 1
        %v2040 = vadd.f32 %v2038, %v2039
        %v2041 = vadd.f32 %v2023, %v2040
        %2042 = vst.msk [vmem:[%s639 + $0x3] sm:$0x1] %vm1002, %v2041
        %v2043 = vld [vmem:[%s647 + $0x3] sm:$0x1]
        %v2044 = vsel %vm1847, 1, 0
        %v2045 = vsel %vm1848, 1, 0
        %v2046 = vsel %vm1849, 1, 0
        %v2047 = vsel %vm1850, 1, 0
        %v2048 = vcvt.s32.f32 %v2044
        %v2049 = vcvt.s32.f32 %v2045
        %v2050 = vcvt.s32.f32 %v2046
        %v2051 = vcvt.s32.f32 %v2047
        %v2052 = vsel %vm987, %v2048, 0.0
        %v2053 = vsel %vm987, %v2049, 0.0
        %v2054 = vadd.f32 %v2052, %v2053
        %v2055 = vsel %vm987, %v2050, 0.0
        %v2056 = vadd.f32 %v2054, %v2055
        %v2057 = vsel %vm987, %v2051, 0.0
        %v2058 = vadd.f32 %v2056, %v2057
        %v2059 = vrot.slane %v2058, 4
        %v2060 = vadd.f32 %v2058, %v2059
        %v2061 = vrot.slane %v2060, 2
        %v2062 = vadd.f32 %v2060, %v2061
        %v2063 = vrot.slane %v2062, 1
        %v2064 = vadd.f32 %v2062, %v2063
        %v2065 = vadd.f32 %v2043, %v2064
        %2066 = vst.msk [vmem:[%s647 + $0x3] sm:$0x1] %vm1002, %v2065
        %v2067 = vld [vmem:[%s639 + $0x4] sm:$0x1]
        %v2068 = vsel %vm1855, %v1887, 0.0
        %v2069 = vsel %vm1856, %v1888, 0.0
        %v2070 = vsel %vm1857, %v1889, 0.0
        %v2071 = vsel %vm1858, %v1890, 0.0
        %v2072 = vsel %vm987, %v2068, 0.0
        %v2073 = vsel %vm987, %v2069, 0.0
        %v2074 = vadd.f32 %v2072, %v2073
        %v2075 = vsel %vm987, %v2070, 0.0
        %v2076 = vadd.f32 %v2074, %v2075
        %v2077 = vsel %vm987, %v2071, 0.0
        %v2078 = vadd.f32 %v2076, %v2077
        %v2079 = vrot.slane %v2078, 4
        %v2080 = vadd.f32 %v2078, %v2079
        %v2081 = vrot.slane %v2080, 2
        %v2082 = vadd.f32 %v2080, %v2081
        %v2083 = vrot.slane %v2082, 1
        %v2084 = vadd.f32 %v2082, %v2083
        %v2085 = vadd.f32 %v2067, %v2084
        %2086 = vst.msk [vmem:[%s639 + $0x4] sm:$0x1] %vm1002, %v2085
        %v2087 = vld [vmem:[%s647 + $0x4] sm:$0x1]
        %v2088 = vsel %vm1855, 1, 0
        %v2089 = vsel %vm1856, 1, 0
        %v2090 = vsel %vm1857, 1, 0
        %v2091 = vsel %vm1858, 1, 0
        %v2092 = vcvt.s32.f32 %v2088
        %v2093 = vcvt.s32.f32 %v2089
        %v2094 = vcvt.s32.f32 %v2090
        %v2095 = vcvt.s32.f32 %v2091
        %v2096 = vsel %vm987, %v2092, 0.0
        %v2097 = vsel %vm987, %v2093, 0.0
        %v2098 = vadd.f32 %v2096, %v2097
        %v2099 = vsel %vm987, %v2094, 0.0
        %v2100 = vadd.f32 %v2098, %v2099
        %v2101 = vsel %vm987, %v2095, 0.0
        %v2102 = vadd.f32 %v2100, %v2101
        %v2103 = vrot.slane %v2102, 4
        %v2104 = vadd.f32 %v2102, %v2103
        %v2105 = vrot.slane %v2104, 2
        %v2106 = vadd.f32 %v2104, %v2105
        %v2107 = vrot.slane %v2106, 1
        %v2108 = vadd.f32 %v2106, %v2107
        %v2109 = vadd.f32 %v2087, %v2108
        %2110 = vst.msk [vmem:[%s647 + $0x4] sm:$0x1] %vm1002, %v2109
        %v2111 = vld [vmem:[%s639 + $0x5] sm:$0x1]
        %v2112 = vsel %vm1863, %v1887, 0.0
        %v2113 = vsel %vm1864, %v1888, 0.0
        %v2114 = vsel %vm1865, %v1889, 0.0
        %v2115 = vsel %vm1866, %v1890, 0.0
        %v2116 = vsel %vm987, %v2112, 0.0
        %v2117 = vsel %vm987, %v2113, 0.0
        %v2118 = vadd.f32 %v2116, %v2117
        %v2119 = vsel %vm987, %v2114, 0.0
        %v2120 = vadd.f32 %v2118, %v2119
        %v2121 = vsel %vm987, %v2115, 0.0
        %v2122 = vadd.f32 %v2120, %v2121
        %v2123 = vrot.slane %v2122, 4
        %v2124 = vadd.f32 %v2122, %v2123
        %v2125 = vrot.slane %v2124, 2
        %v2126 = vadd.f32 %v2124, %v2125
        %v2127 = vrot.slane %v2126, 1
        %v2128 = vadd.f32 %v2126, %v2127
        %v2129 = vadd.f32 %v2111, %v2128
        %2130 = vst.msk [vmem:[%s639 + $0x5] sm:$0x1] %vm1002, %v2129
        %v2131 = vld [vmem:[%s647 + $0x5] sm:$0x1]
        %v2132 = vsel %vm1863, 1, 0
        %v2133 = vsel %vm1864, 1, 0
        %v2134 = vsel %vm1865, 1, 0
        %v2135 = vsel %vm1866, 1, 0
        %v2136 = vcvt.s32.f32 %v2132
        %v2137 = vcvt.s32.f32 %v2133
        %v2138 = vcvt.s32.f32 %v2134
        %v2139 = vcvt.s32.f32 %v2135
        %v2140 = vsel %vm987, %v2136, 0.0
        %v2141 = vsel %vm987, %v2137, 0.0
        %v2142 = vadd.f32 %v2140, %v2141
        %v2143 = vsel %vm987, %v2138, 0.0
        %v2144 = vadd.f32 %v2142, %v2143
        %v2145 = vsel %vm987, %v2139, 0.0
        %v2146 = vadd.f32 %v2144, %v2145
        %v2147 = vrot.slane %v2146, 4
        %v2148 = vadd.f32 %v2146, %v2147
        %v2149 = vrot.slane %v2148, 2
        %v2150 = vadd.f32 %v2148, %v2149
        %v2151 = vrot.slane %v2150, 1
        %v2152 = vadd.f32 %v2150, %v2151
        %v2153 = vadd.f32 %v2131, %v2152
        %2154 = vst.msk [vmem:[%s647 + $0x5] sm:$0x1] %vm1002, %v2153
        %v2155 = vld [vmem:[%s639 + $0x6] sm:$0x1]
        %v2156 = vsel %vm1871, %v1887, 0.0
        %v2157 = vsel %vm1872, %v1888, 0.0
        %v2158 = vsel %vm1873, %v1889, 0.0
        %v2159 = vsel %vm1874, %v1890, 0.0
        %v2160 = vsel %vm987, %v2156, 0.0
        %v2161 = vsel %vm987, %v2157, 0.0
        %v2162 = vadd.f32 %v2160, %v2161
        %v2163 = vsel %vm987, %v2158, 0.0
        %v2164 = vadd.f32 %v2162, %v2163
        %v2165 = vsel %vm987, %v2159, 0.0
        %v2166 = vadd.f32 %v2164, %v2165
        %v2167 = vrot.slane %v2166, 4
        %v2168 = vadd.f32 %v2166, %v2167
        %v2169 = vrot.slane %v2168, 2
        %v2170 = vadd.f32 %v2168, %v2169
        %v2171 = vrot.slane %v2170, 1
        %v2172 = vadd.f32 %v2170, %v2171
        %v2173 = vadd.f32 %v2155, %v2172
        %2174 = vst.msk [vmem:[%s639 + $0x6] sm:$0x1] %vm1002, %v2173
        %v2175 = vld [vmem:[%s647 + $0x6] sm:$0x1]
        %v2176 = vsel %vm1871, 1, 0
        %v2177 = vsel %vm1872, 1, 0
        %v2178 = vsel %vm1873, 1, 0
        %v2179 = vsel %vm1874, 1, 0
        %v2180 = vcvt.s32.f32 %v2176
        %v2181 = vcvt.s32.f32 %v2177
        %v2182 = vcvt.s32.f32 %v2178
        %v2183 = vcvt.s32.f32 %v2179
        %v2184 = vsel %vm987, %v2180, 0.0
        %v2185 = vsel %vm987, %v2181, 0.0
        %v2186 = vadd.f32 %v2184, %v2185
        %v2187 = vsel %vm987, %v2182, 0.0
        %v2188 = vadd.f32 %v2186, %v2187
        %v2189 = vsel %vm987, %v2183, 0.0
        %v2190 = vadd.f32 %v2188, %v2189
        %v2191 = vrot.slane %v2190, 4
        %v2192 = vadd.f32 %v2190, %v2191
        %v2193 = vrot.slane %v2192, 2
        %v2194 = vadd.f32 %v2192, %v2193
        %v2195 = vrot.slane %v2194, 1
        %v2196 = vadd.f32 %v2194, %v2195
        %v2197 = vadd.f32 %v2175, %v2196
        %2198 = vst.msk [vmem:[%s647 + $0x6] sm:$0x1] %vm1002, %v2197
        %v2199 = vld [vmem:[%s639 + $0x7] sm:$0x1]
        %v2200 = vsel %vm1879, %v1887, 0.0
        %v2201 = vsel %vm1880, %v1888, 0.0
        %v2202 = vsel %vm1881, %v1889, 0.0
        %v2203 = vsel %vm1882, %v1890, 0.0
        %v2204 = vsel %vm987, %v2200, 0.0
        %v2205 = vsel %vm987, %v2201, 0.0
        %v2206 = vadd.f32 %v2204, %v2205
        %v2207 = vsel %vm987, %v2202, 0.0
        %v2208 = vadd.f32 %v2206, %v2207
        %v2209 = vsel %vm987, %v2203, 0.0
        %v2210 = vadd.f32 %v2208, %v2209
        %v2211 = vrot.slane %v2210, 4
        %v2212 = vadd.f32 %v2210, %v2211
        %v2213 = vrot.slane %v2212, 2
        %v2214 = vadd.f32 %v2212, %v2213
        %v2215 = vrot.slane %v2214, 1
        %v2216 = vadd.f32 %v2214, %v2215
        %v2217 = vadd.f32 %v2199, %v2216
        %2218 = vst.msk [vmem:[%s639 + $0x7] sm:$0x1] %vm1002, %v2217
        %v2219 = vld [vmem:[%s647 + $0x7] sm:$0x1]
        %v2220 = vsel %vm1879, 1, 0
        %v2221 = vsel %vm1880, 1, 0
        %v2222 = vsel %vm1881, 1, 0
        %v2223 = vsel %vm1882, 1, 0
        %v2224 = vcvt.s32.f32 %v2220
        %v2225 = vcvt.s32.f32 %v2221
        %v2226 = vcvt.s32.f32 %v2222
        %v2227 = vcvt.s32.f32 %v2223
        %v2228 = vsel %vm987, %v2224, 0.0
        %v2229 = vsel %vm987, %v2225, 0.0
        %v2230 = vadd.f32 %v2228, %v2229
        %v2231 = vsel %vm987, %v2226, 0.0
        %v2232 = vadd.f32 %v2230, %v2231
        %v2233 = vsel %vm987, %v2227, 0.0
        %v2234 = vadd.f32 %v2232, %v2233
        %v2235 = vrot.slane %v2234, 4
        %v2236 = vadd.f32 %v2234, %v2235
        %v2237 = vrot.slane %v2236, 2
        %v2238 = vadd.f32 %v2236, %v2237
        %v2239 = vrot.slane %v2238, 1
        %v2240 = vadd.f32 %v2238, %v2239
        %v2241 = vadd.f32 %v2219, %v2240
        %2242 = vst.msk [vmem:[%s647 + $0x7] sm:$0x1] %vm1002, %v2241
        %p2243 = scmp.lt.s32.totalorder %s30, 0
        %s2244 = scalar_select %p2243, %s30, 0
        %p2245 = scmp.lt.s32.totalorder %s31, 1
        %s2246 = scalar_select %p2245, %s31, 1
        %s2247 = smul.addr %s2244, 2
        %s2248 = sadd.s32 %s2246, %s2247
        %s2249 = smul.addr %s2248, 2
        %s2250 = scalar_lea.vmem %s7, %s2249
        %p2251 = scmp.lt.s32.totalorder %s30, 0
        %s2252 = scalar_select %p2251, %s30, 0
        %p2253 = scmp.lt.s32.totalorder %s31, 1
        %s2254 = scalar_select %p2253, %s31, 1
        %s2255 = smul.addr %s2252, 2
        %s2256 = sadd.s32 %s2254, %s2255
        %s2257 = smul.addr %s2256, 2
        %s2258 = scalar_lea.vmem %s8, %s2257
        %p2259 = scmp.lt.s32.totalorder %s30, 0
        %s2260 = scalar_select %p2259, %s30, 0
        %p2261 = scmp.lt.s32.totalorder %s31, 1
        %s2262 = scalar_select %p2261, %s31, 1
        %s2263 = smul.addr %s2260, 2
        %s2264 = sadd.s32 %s2262, %s2263
        %s2265 = smul.addr %s2264, 8
        %s2266 = scalar_lea.vmem %s9, %s2265
        %p2267 = scmp.lt.s32.totalorder %s30, 0
        %s2268 = scalar_select %p2267, %s30, 0
        %p2269 = scmp.lt.s32.totalorder %s31, 1
        %s2270 = scalar_select %p2269, %s31, 1
        %s2271 = smul.addr %s2268, 2
        %s2272 = sadd.s32 %s2270, %s2271
        %s2273 = smul.addr %s2272, 8
        %s2274 = scalar_lea.vmem %s10, %s2273
        // Predicated region
        $region57: #{segfix_loss.1} parent=47 // pred_check
          %p2275 = pneg %p255
        $region58: #{segfix_loss.1} parent=47 // pred_check_branch
          %2277 = sbr.rel (%p2275) target = $region60
        $region59: #{segfix_loss.1} parent=47 // pred_region
          _
        $region60: #{segfix_loss.1} parent=47 // pred_fallthru
          _
        // Predicated region
        $region61: #{segfix_loss.1} parent=47 // pred_check
          %p2278 = pneg %p283
        $region62: #{segfix_loss.1} parent=47 // pred_check_branch
          %2280 = sbr.rel (%p2278) target = $region64
        $region63: #{segfix_loss.1} parent=47 // pred_region
          _
        $region64: #{segfix_loss.1} parent=47 // pred_fallthru
          _
        // Predicated region
        $region65: #{segfix_loss.1} parent=47 // pred_check
          %p2281 = pneg %p311
        $region66: #{segfix_loss.1} parent=47 // pred_check_branch
          %2283 = sbr.rel (%p2281) target = $region68
        $region67: #{segfix_loss.1} parent=47 // pred_region
          _
        $region68: #{segfix_loss.1} parent=47 // pred_fallthru
          _
        // Predicated region
        $region69: #{segfix_loss.1} parent=47 // pred_check
          %p2284 = pneg %p339
        $region70: #{segfix_loss.1} parent=47 // pred_check_branch
          %2286 = sbr.rel (%p2284) target = $region72
        $region71: #{segfix_loss.1} parent=47 // pred_region
          _
        $region72: #{segfix_loss.1} parent=47 // pred_fallthru
          _
      $region48: #{segfix_loss.1} parent=5 // pred_fallthru
        _
      %p2287 = scmp.le.s32.totalorder 2, %s20
      // Predicated region
      $region73: #{segfix_loss.1} parent=5 // pred_check
        %p2288 = pneg %p2287
      $region74: #{segfix_loss.1} parent=5 // pred_check_branch
        %2290 = sbr.rel (%p2288) target = $region76
      $region75: #{segfix_loss.1} parent=5 // pred_region
        %s2291 = ssub.s32 %s20, 2
        // Predicated region
        $region77: #{segfix_loss.1} parent=75 // pred_check
          %p2292 = pneg %p261
        $region78: #{segfix_loss.1} parent=75 // pred_check_branch
          %2294 = sbr.rel (%p2292) target = $region80
        $region79: #{segfix_loss.1} parent=75 // pred_region
          %p2295 = scmp.lt.s32.totalorder %s33, 0
          %s2296 = scalar_select %p2295, %s33, 0
          %p2297 = scmp.lt.s32.totalorder %s34, 1
          %s2298 = scalar_select %p2297, %s34, 1
          %s2299 = smul.addr %s2296, 2
          %s2300 = sadd.s32 %s2298, %s2299
          %s2301 = smul.addr %s2300, 2
          %s2302 = scalar_lea.vmem %s7, %s2301
        $region80: #{segfix_loss.1} parent=75 // pred_fallthru
          _
        // Predicated region
        $region81: #{segfix_loss.1} parent=75 // pred_check
          %p2303 = pneg %p289
        $region82: #{segfix_loss.1} parent=75 // pred_check_branch
          %2305 = sbr.rel (%p2303) target = $region84
        $region83: #{segfix_loss.1} parent=75 // pred_region
          %p2306 = scmp.lt.s32.totalorder %s33, 0
          %s2307 = scalar_select %p2306, %s33, 0
          %p2308 = scmp.lt.s32.totalorder %s34, 1
          %s2309 = scalar_select %p2308, %s34, 1
          %s2310 = smul.addr %s2307, 2
          %s2311 = sadd.s32 %s2309, %s2310
          %s2312 = smul.addr %s2311, 2
          %s2313 = scalar_lea.vmem %s8, %s2312
        $region84: #{segfix_loss.1} parent=75 // pred_fallthru
          _
        // Predicated region
        $region85: #{segfix_loss.1} parent=75 // pred_check
          %p2314 = pneg %p317
        $region86: #{segfix_loss.1} parent=75 // pred_check_branch
          %2316 = sbr.rel (%p2314) target = $region88
        $region87: #{segfix_loss.1} parent=75 // pred_region
          %p2317 = scmp.lt.s32.totalorder %s33, 0
          %s2318 = scalar_select %p2317, %s33, 0
          %p2319 = scmp.lt.s32.totalorder %s34, 1
          %s2320 = scalar_select %p2319, %s34, 1
          %s2321 = smul.addr %s2318, 2
          %s2322 = sadd.s32 %s2320, %s2321
          %s2323 = smul.addr %s2322, 8
          %s2324 = scalar_lea.vmem %s9, %s2323
        $region88: #{segfix_loss.1} parent=75 // pred_fallthru
          _
        // Predicated region
        $region89: #{segfix_loss.1} parent=75 // pred_check
          %p2325 = pneg %p345
        $region90: #{segfix_loss.1} parent=75 // pred_check_branch
          %2327 = sbr.rel (%p2325) target = $region92
        $region91: #{segfix_loss.1} parent=75 // pred_region
          %p2328 = scmp.lt.s32.totalorder %s33, 0
          %s2329 = scalar_select %p2328, %s33, 0
          %p2330 = scmp.lt.s32.totalorder %s34, 1
          %s2331 = scalar_select %p2330, %s34, 1
          %s2332 = smul.addr %s2329, 2
          %s2333 = sadd.s32 %s2331, %s2332
          %s2334 = smul.addr %s2333, 8
          %s2335 = scalar_lea.vmem %s10, %s2334
        $region92: #{segfix_loss.1} parent=75 // pred_fallthru
          _
      $region76: #{segfix_loss.1} parent=5 // pred_fallthru
        _
    $region6: #{segfix_loss.1} parent=1 // loop_footer
      %s24 = sadd.s32 1, %s20
    $region7: #{segfix_loss.1} parent=1 // loop_footer_branch
      %19 = sbr.rel target = $region3
    $region8: #{segfix_loss.1} parent=1 // loop_exit
      _
    %2336 = vsyncpa [#allocation3], 1
    %s2337 = scalar_lea.sflag [#allocation3], 1
    %2338 = vsyncpa %s2337, 1

</llo_original>
